<compile_context>
chip_gen: v7x
topology: tpu7x:2x2x1
jax: 0.10.0
libtpu: 0.0.40
codegen_flags: <defaults>
</compile_context>

<pallas_src>
import math

import jax
import jax.numpy as jnp
import numpy as np
from jax.experimental import pallas as pl
from jax.experimental.pallas import tpu as pltpu


# ----------------------------- configuration -------------------------------
NUM_CONV_FILTERS = (8, 16)      # num_conv_filters
CONV_SIZE = 5                   # conv_size
NUM_HIDDEN = 32                 # num_hidden_nodes
DROPOUT_RATE = 0.25             # dropout_rate (inference -> identity)
IMG = 28                        # input spatial size implied by the module
NUM_CLASSES = 10

F1, F2 = NUM_CONV_FILTERS
C1 = IMG - CONV_SIZE + 1        # conv1 output spatial (24)
P1 = C1 // 2                    # after 2x2 max-pool   (12)
C2 = P1 - CONV_SIZE + 1         # conv2 output spatial  (8)
P2 = C2 // 2                    # after 2x2 max-pool    (4)
INTERMEDIATE = P2 * P2 * F2     # flattened features  (256)
assert C1 % 2 == 0 and C2 % 2 == 0, "this kernel assumes even conv outputs"
assert INTERMEDIATE == (((IMG - CONV_SIZE + 1) // 2 - CONV_SIZE + 1) // 2) ** 2 * F2

L1 = C1 * F1                    # conv1 lane width  (lane = w*F1 + c)  = 192
L1P = P1 * F1                   # pooled conv1 lane width              =  96
L2 = C2 * F2                    # conv2 lane width  (lane = w*F2 + c)  = 128
L2P = P2 * F2                   # pooled conv2 lane width              =  64


# ------------------------------- the kernel --------------------------------
def _fused_kernel(x_ref, w1_ref, b1_ref, s1e_ref, s1o_ref,
                  w2_ref, b2_ref, s2e_ref, s2o_ref,
                  fc1w_ref, fc1b_ref, fc2w_ref, fc2b_ref,
                  o_ref, hp1_scr, hp2_scr):
    """Full network for one batch tile.

    x_ref:  (BT, 28, 28)                 f32 images (Cin = 1)
    w1_ref: (KS, 28, C1*F1)              conv1 banded matrices (per kh)
    b1_ref: (1, C1*F1)                   conv1 bias broadcast over lanes
    s1e/s1o: (C1*F1, P1*F1)              even/odd W-pool selection matrices
    w2_ref: (KS, P1*F1, C2*F2)           conv2 banded matrices (per kh)
    b2_ref: (1, C2*F2)
    s2e/s2o: (C2*F2, P2*F2)
    fc1w_ref: (INTERMEDIATE, NUM_HIDDEN) rows permuted to HWC flatten order
    fc1b_ref: (1, NUM_HIDDEN)
    fc2w_ref: (NUM_HIDDEN, 10), fc2b_ref: (1, 10)
    o_ref:  (BT, 10)                     log-probabilities
    hp1_scr: VMEM (C1, P1*F1), hp2_scr: VMEM (C2, P2*F2)  (H-pool staging)
    """
    bt = x_ref.shape[0]

    for b in range(bt):                           # static, bt is small
        img = x_ref[b]                            # (28, 28)

        # ---- conv1: CONV_SIZE banded matmuls, lanes = (w*F1 + c) ----------
        acc = jnp.zeros((C1, L1), jnp.float32)
        for kh in range(CONV_SIZE):
            acc = acc + jnp.dot(img[kh:kh + C1, :], w1_ref[kh],
                                preferred_element_type=jnp.float32)
        conv1 = acc + b1_ref[...]                 # (24, 192)

        # ---- 2x2 max-pool + ReLU ------------------------------------------
        wpool1 = jnp.maximum(
            jnp.dot(conv1, s1e_ref[...], preferred_element_type=jnp.float32),
            jnp.dot(conv1, s1o_ref[...], preferred_element_type=jnp.float32))
        hp1_scr[...] = wpool1                     # (24, 96)
        p1 = jnp.maximum(
            jnp.maximum(hp1_scr[pl.ds(0, P1, 2), :],
                        hp1_scr[pl.ds(1, P1, 2), :]), 0.0)   # (12, 96)

        # ---- conv2 (dropout2d == identity at inference) --------------------
        acc2 = jnp.zeros((C2, L2), jnp.float32)
        for kh in range(CONV_SIZE):
            acc2 = acc2 + jnp.dot(p1[kh:kh + C2, :], w2_ref[kh],
                                  preferred_element_type=jnp.float32)
        conv2 = acc2 + b2_ref[...]                # (8, 128)

        # ---- 2x2 max-pool + ReLU ------------------------------------------
        wpool2 = jnp.maximum(
            jnp.dot(conv2, s2e_ref[...], preferred_element_type=jnp.float32),
            jnp.dot(conv2, s2o_ref[...], preferred_element_type=jnp.float32))
        hp2_scr[...] = wpool2                     # (8, 64)
        p2 = jnp.maximum(
            jnp.maximum(hp2_scr[pl.ds(0, P2, 2), :],
                        hp2_scr[pl.ds(1, P2, 2), :]), 0.0)   # (4, 64)

        # ---- fc1 (+ReLU): consume the (P2, P2*F2) slab in row blocks -------
        # feature index = h*64 + w*16 + c  (fc1 rows were permuted host-side)
        hacc = jnp.zeros((1, NUM_HIDDEN), jnp.float32)
        for h in range(P2):
            hacc = hacc + jnp.dot(p2[h:h + 1, :],
                                  fc1w_ref[pl.ds(h * L2P, L2P), :],
                                  preferred_element_type=jnp.float32)
        hidden = jnp.maximum(hacc + fc1b_ref[...], 0.0)      # (1, 32)

        # ---- fc2 + log_softmax ---------------------------------------------
        logits = (jnp.dot(hidden, fc2w_ref[...],
                          preferred_element_type=jnp.float32)
                  + fc2b_ref[...])                            # (1, 10)
        shifted = logits - jnp.max(logits, axis=-1, keepdims=True)
        logp = shifted - jnp.log(
            jnp.sum(jnp.exp(shifted), axis=-1, keepdims=True))
        o_ref[pl.ds(b, 1), :] = logp


# ------------------------------ host wrapper --------------------------------
def experiment_network_forward(x_nchw, kernel_params, *, batch_tile=None):
    n = x_nchw.shape[0]
    assert x_nchw.shape[1:] == (1, IMG, IMG)
    x = x_nchw.reshape(n, IMG, IMG).astype(jnp.float32)   # Cin == 1: free squeeze

    if batch_tile is None:
        batch_tile = n if n <= 8 else 8
    bt = batch_tile
    assert n % bt == 0, "batch must be divisible by the batch tile"

    (w1, b1, s1e, s1o, w2, b2, s2e, s2o, fc1w, fc1b, fc2w, fc2b) = kernel_params

    return pl.pallas_call(
        _fused_kernel,
        out_shape=jax.ShapeDtypeStruct((n, NUM_CLASSES), jnp.float32),
        grid_spec=pltpu.PrefetchScalarGridSpec(
            num_scalar_prefetch=0,
            grid=(n // bt,),
            in_specs=[
                pl.BlockSpec((bt, IMG, IMG), lambda i: (i, 0, 0)),
                pl.BlockSpec(w1.shape, lambda i: (0, 0, 0)),
                pl.BlockSpec(b1.shape, lambda i: (0, 0)),
                pl.BlockSpec(s1e.shape, lambda i: (0, 0)),
                pl.BlockSpec(s1o.shape, lambda i: (0, 0)),
                pl.BlockSpec(w2.shape, lambda i: (0, 0, 0)),
                pl.BlockSpec(b2.shape, lambda i: (0, 0)),
                pl.BlockSpec(s2e.shape, lambda i: (0, 0)),
                pl.BlockSpec(s2o.shape, lambda i: (0, 0)),
                pl.BlockSpec(fc1w.shape, lambda i: (0, 0)),
                pl.BlockSpec(fc1b.shape, lambda i: (0, 0)),
                pl.BlockSpec(fc2w.shape, lambda i: (0, 0)),
                pl.BlockSpec(fc2b.shape, lambda i: (0, 0)),
            ],
            out_specs=pl.BlockSpec((bt, NUM_CLASSES), lambda i: (i, 0)),
            scratch_shapes=[
                pltpu.VMEM((C1, L1P), jnp.float32),
                pltpu.VMEM((C2, L2P), jnp.float32),
            ]),
        compiler_params=pltpu.CompilerParams(
            dimension_semantics=("parallel",)),     # v7x: shard batch over 2 TCs
    )(x, w1, b1, s1e, s1o, w2, b2, s2e, s2o, fc1w, fc1b, fc2w, fc2b)


# ---------------------- host-side weight preparation ------------------------
def prepare_kernel_params(torch_params):
    """One-time conversion of PyTorch-layout params into kernel matrices."""
    k1 = np.asarray(torch_params["conv1_w"], np.float32)   # (F1, 1, KS, KS)
    b1 = np.asarray(torch_params["conv1_b"], np.float32)   # (F1,)
    k2 = np.asarray(torch_params["conv2_w"], np.float32)   # (F2, F1, KS, KS)
    b2 = np.asarray(torch_params["conv2_b"], np.float32)   # (F2,)
    fw1 = np.asarray(torch_params["fc1_w"], np.float32)    # (HID, INTERMEDIATE)
    fb1 = np.asarray(torch_params["fc1_b"], np.float32)    # (HID,)
    fw2 = np.asarray(torch_params["fc2_w"], np.float32)    # (10, HID)
    fb2 = np.asarray(torch_params["fc2_b"], np.float32)    # (10,)
    ks = CONV_SIZE

    # conv1 banded matrices: band[kh][u, w*F1 + c] = k1[c, 0, kh, u - w]
    w1_band = np.zeros((ks, IMG, L1), np.float32)
    for kh in range(ks):
        for w in range(C1):
            for kw in range(ks):
                w1_band[kh, w + kw, w * F1:(w + 1) * F1] = k1[:, 0, kh, kw]
    b1_lane = np.tile(b1, C1).reshape(1, L1)

    def pool_selectors(w_out, chans):
        even = np.zeros((2 * w_out * chans, w_out * chans), np.float32)
        odd = np.zeros_like(even)
        for wp in range(w_out):
            for c in range(chans):
                even[(2 * wp) * chans + c, wp * chans + c] = 1.0
                odd[(2 * wp + 1) * chans + c, wp * chans + c] = 1.0
        return even, odd

    s1e, s1o = pool_selectors(P1, F1)                       # (192, 96)

    # conv2 banded matrices: band[kh][w1*F1 + cin, wo*F2 + c] = k2[c, cin, kh, w1-wo]
    w2_band = np.zeros((ks, L1P, L2), np.float32)
    for kh in range(ks):
        for wo in range(C2):
            for kw in range(ks):
                for cin in range(F1):
                    w2_band[kh, (wo + kw) * F1 + cin, wo * F2:(wo + 1) * F2] = (
                        k2[:, cin, kh, kw])
    b2_lane = np.tile(b2, C2).reshape(1, L2)
    s2e, s2o = pool_selectors(P2, F2)                       # (128, 64)

    # fc1: permute rows from torch's CHW flatten order to HWC lane order.
    fc1_chw = fw1.T.reshape(F2, P2, P2, NUM_HIDDEN)         # [c, h, w, j]
    fc1_hwc = np.transpose(fc1_chw, (1, 2, 0, 3)).reshape(INTERMEDIATE, NUM_HIDDEN)

    j = lambda a: jnp.asarray(a, jnp.float32)
    return (j(w1_band), j(b1_lane), j(s1e), j(s1o),
            j(w2_band), j(b2_lane), j(s2e), j(s2o),
            j(fc1_hwc), j(fb1.reshape(1, -1)),
            j(fw2.T), j(fb2.reshape(1, -1)))


# ---------------------- synthetic PyTorch-layout params ---------------------
def init_torch_params(key):
    ksplit = jax.random.split(key, 8)

    def u(k, shape, fan_in):
        bound = 1.0 / math.sqrt(fan_in)
        return jax.random.uniform(k, shape, jnp.float32, -bound, bound)

    return {
        "conv1_w": u(ksplit[0], (F1, 1, CONV_SIZE, CONV_SIZE), CONV_SIZE ** 2),
        "conv1_b": u(ksplit[1], (F1,), CONV_SIZE ** 2),
        "conv2_w": u(ksplit[2], (F2, F1, CONV_SIZE, CONV_SIZE), F1 * CONV_SIZE ** 2),
        "conv2_b": u(ksplit[3], (F2,), F1 * CONV_SIZE ** 2),
        "fc1_w": u(ksplit[4], (NUM_HIDDEN, INTERMEDIATE), INTERMEDIATE),
        "fc1_b": u(ksplit[5], (NUM_HIDDEN,), INTERMEDIATE),
        "fc2_w": u(ksplit[6], (NUM_CLASSES, NUM_HIDDEN), NUM_HIDDEN),
        "fc2_b": u(ksplit[7], (NUM_CLASSES,), NUM_HIDDEN),
    }


# --------------------- pure-JAX reference (eval mode) -----------------------
def reference_forward(torch_params, x_nchw):
    p = torch_params
    y = jax.lax.conv_general_dilated(
        x_nchw, p["conv1_w"], (1, 1), "VALID",
        dimension_numbers=("NCHW", "OIHW", "NCHW"))
    y = y + p["conv1_b"][None, :, None, None]
    n, c, h, w = y.shape
    y = jnp.maximum(y.reshape(n, c, h // 2, 2, w // 2, 2).max(axis=(3, 5)), 0.0)
    y = jax.lax.conv_general_dilated(
        y, p["conv2_w"], (1, 1), "VALID",
        dimension_numbers=("NCHW", "OIHW", "NCHW"))
    y = y + p["conv2_b"][None, :, None, None]
    n, c, h, w = y.shape
    y = jnp.maximum(y.reshape(n, c, h // 2, 2, w // 2, 2).max(axis=(3, 5)), 0.0)
    y = y.reshape(n, -1)
    y = jnp.maximum(y @ p["fc1_w"].T + p["fc1_b"], 0.0)
    y = y @ p["fc2_w"].T + p["fc2_b"]
    return jax.nn.log_softmax(y, axis=-1)


# ----------------------------------- main ------------------------------------
if __name__ == "__main__":
    key = jax.random.PRNGKey(0)
    pkey, xkey = jax.random.split(key)
    torch_params = init_torch_params(pkey)
    kernel_params = prepare_kernel_params(torch_params)

    batch = 2
    x = jax.random.normal(xkey, (batch, 1, IMG, IMG), jnp.float32)

    out = jax.block_until_ready(
        jax.jit(experiment_network_forward)(x, kernel_params))
    assert out.shape == (batch, NUM_CLASSES)
    assert bool(jnp.all(jnp.isfinite(out)))

    ref = jax.block_until_ready(jax.jit(reference_forward)(torch_params, x))
    max_err = float(jnp.max(jnp.abs(out - ref)))
    assert max_err < 5e-2, f"kernel/reference mismatch: {max_err}"
    # log-probs must exponentiate-sum to one
    assert bool(jnp.all(jnp.abs(jnp.sum(jnp.exp(out), axis=-1) - 1.0) < 1e-3))

    print("KERNEL_OK")
</pallas_src>

<mosaic_0001>
module attributes {stable_mosaic.version = 11 : i64} {
  func.func @_fused_kernel(%arg0: i32, %arg1: memref<2x28x28xf32, #tpu.memory_space<vmem>>, %arg2: memref<5x28x192xf32, #tpu.memory_space<vmem>>, %arg3: memref<1x192xf32, #tpu.memory_space<vmem>>, %arg4: memref<192x96xf32, #tpu.memory_space<vmem>>, %arg5: memref<192x96xf32, #tpu.memory_space<vmem>>, %arg6: memref<5x96x128xf32, #tpu.memory_space<vmem>>, %arg7: memref<1x128xf32, #tpu.memory_space<vmem>>, %arg8: memref<128x64xf32, #tpu.memory_space<vmem>>, %arg9: memref<128x64xf32, #tpu.memory_space<vmem>>, %arg10: memref<256x32xf32, #tpu.memory_space<vmem>>, %arg11: memref<1x32xf32, #tpu.memory_space<vmem>>, %arg12: memref<32x10xf32, #tpu.memory_space<vmem>>, %arg13: memref<1x10xf32, #tpu.memory_space<vmem>>, %arg14: memref<2x10xf32, #tpu.memory_space<vmem>>, %arg15: memref<24x96xf32, #tpu.memory_space<vmem>>, %arg16: memref<8x64xf32, #tpu.memory_space<vmem>>) attributes {dimension_semantics = [#tpu.dimension_semantics<parallel>], iteration_bounds = array<i64: 1>, scalar_prefetch = 0 : i64, scratch_operands = 2 : i64, tpu.core_type = #tpu.core_type<tc>, window_params = [{transform_indices = @transform_0, window_bounds = array<i64: 2, 28, 28>}, {pipeline_mode = #tpu.pipeline_mode<synchronous>, transform_indices = @transform_1, window_bounds = array<i64: 5, 28, 192>}, {pipeline_mode = #tpu.pipeline_mode<synchronous>, transform_indices = @transform_2, window_bounds = array<i64: 1, 192>}, {pipeline_mode = #tpu.pipeline_mode<synchronous>, transform_indices = @transform_3, window_bounds = array<i64: 192, 96>}, {pipeline_mode = #tpu.pipeline_mode<synchronous>, transform_indices = @transform_4, window_bounds = array<i64: 192, 96>}, {pipeline_mode = #tpu.pipeline_mode<synchronous>, transform_indices = @transform_5, window_bounds = array<i64: 5, 96, 128>}, {pipeline_mode = #tpu.pipeline_mode<synchronous>, transform_indices = @transform_6, window_bounds = array<i64: 1, 128>}, {pipeline_mode = #tpu.pipeline_mode<synchronous>, transform_indices = @transform_7, window_bounds = array<i64: 128, 64>}, {pipeline_mode = #tpu.pipeline_mode<synchronous>, transform_indices = @transform_8, window_bounds = array<i64: 128, 64>}, {pipeline_mode = #tpu.pipeline_mode<synchronous>, transform_indices = @transform_9, window_bounds = array<i64: 256, 32>}, {pipeline_mode = #tpu.pipeline_mode<synchronous>, transform_indices = @transform_10, window_bounds = array<i64: 1, 32>}, {pipeline_mode = #tpu.pipeline_mode<synchronous>, transform_indices = @transform_11, window_bounds = array<i64: 32, 10>}, {pipeline_mode = #tpu.pipeline_mode<synchronous>, transform_indices = @transform_12, window_bounds = array<i64: 1, 10>}, {transform_indices = @transform_13, window_bounds = array<i64: 2, 10>}]} {
    %c0 = arith.constant 0 : index
    %c0_0 = arith.constant 0 : index
    %c0_1 = arith.constant 0 : index
    %0 = vector.load %arg1[%c0, %c0_0, %c0_1] : memref<2x28x28xf32, #tpu.memory_space<vmem>>, vector<1x28x28xf32>
    %1 = vector.shape_cast %0 : vector<1x28x28xf32> to vector<28x28xf32>
    %cst = arith.constant 0.000000e+00 : f32
    %2 = vector.broadcast %cst : f32 to vector<24x192xf32>
    %3 = vector.extract_strided_slice %1 {offsets = [0, 0], sizes = [24, 28], strides = [1, 1]} : vector<28x28xf32> to vector<24x28xf32>
    %c0_2 = arith.constant 0 : index
    %c0_3 = arith.constant 0 : index
    %c0_4 = arith.constant 0 : index
    %4 = vector.load %arg2[%c0_2, %c0_3, %c0_4] : memref<5x28x192xf32, #tpu.memory_space<vmem>>, vector<1x28x192xf32>
    %5 = vector.shape_cast %4 : vector<1x28x192xf32> to vector<28x192xf32>
    %cst_5 = arith.constant dense<0.000000e+00> : vector<24x192xf32>
    %6 = tpu.matmul %3, %5, %cst_5 {dimension_numbers = #tpu.dot_dimension_numbers<[1], [0], [0], [1], [0, 0, 1, 1], [], []>} : vector<24x28xf32>, vector<28x192xf32>, vector<24x192xf32> -> vector<24x192xf32>
    %7 = arith.addf %2, %6 : vector<24x192xf32>
    %8 = vector.extract_strided_slice %1 {offsets = [1, 0], sizes = [24, 28], strides = [1, 1]} : vector<28x28xf32> to vector<24x28xf32>
    %c1 = arith.constant 1 : index
    %c0_6 = arith.constant 0 : index
    %c0_7 = arith.constant 0 : index
    %9 = vector.load %arg2[%c1, %c0_6, %c0_7] : memref<5x28x192xf32, #tpu.memory_space<vmem>>, vector<1x28x192xf32>
    %10 = vector.shape_cast %9 : vector<1x28x192xf32> to vector<28x192xf32>
    %cst_8 = arith.constant dense<0.000000e+00> : vector<24x192xf32>
    %11 = tpu.matmul %8, %10, %cst_8 {dimension_numbers = #tpu.dot_dimension_numbers<[1], [0], [0], [1], [0, 0, 1, 1], [], []>} : vector<24x28xf32>, vector<28x192xf32>, vector<24x192xf32> -> vector<24x192xf32>
    %12 = arith.addf %7, %11 : vector<24x192xf32>
    %13 = vector.extract_strided_slice %1 {offsets = [2, 0], sizes = [24, 28], strides = [1, 1]} : vector<28x28xf32> to vector<24x28xf32>
    %c2 = arith.constant 2 : index
    %c0_9 = arith.constant 0 : index
    %c0_10 = arith.constant 0 : index
    %14 = vector.load %arg2[%c2, %c0_9, %c0_10] : memref<5x28x192xf32, #tpu.memory_space<vmem>>, vector<1x28x192xf32>
    %15 = vector.shape_cast %14 : vector<1x28x192xf32> to vector<28x192xf32>
    %cst_11 = arith.constant dense<0.000000e+00> : vector<24x192xf32>
    %16 = tpu.matmul %13, %15, %cst_11 {dimension_numbers = #tpu.dot_dimension_numbers<[1], [0], [0], [1], [0, 0, 1, 1], [], []>} : vector<24x28xf32>, vector<28x192xf32>, vector<24x192xf32> -> vector<24x192xf32>
    %17 = arith.addf %12, %16 : vector<24x192xf32>
    %18 = vector.extract_strided_slice %1 {offsets = [3, 0], sizes = [24, 28], strides = [1, 1]} : vector<28x28xf32> to vector<24x28xf32>
    %c3 = arith.constant 3 : index
    %c0_12 = arith.constant 0 : index
    %c0_13 = arith.constant 0 : index
    %19 = vector.load %arg2[%c3, %c0_12, %c0_13] : memref<5x28x192xf32, #tpu.memory_space<vmem>>, vector<1x28x192xf32>
    %20 = vector.shape_cast %19 : vector<1x28x192xf32> to vector<28x192xf32>
    %cst_14 = arith.constant dense<0.000000e+00> : vector<24x192xf32>
    %21 = tpu.matmul %18, %20, %cst_14 {dimension_numbers = #tpu.dot_dimension_numbers<[1], [0], [0], [1], [0, 0, 1, 1], [], []>} : vector<24x28xf32>, vector<28x192xf32>, vector<24x192xf32> -> vector<24x192xf32>
    %22 = arith.addf %17, %21 : vector<24x192xf32>
    %23 = vector.extract_strided_slice %1 {offsets = [4, 0], sizes = [24, 28], strides = [1, 1]} : vector<28x28xf32> to vector<24x28xf32>
    %c4 = arith.constant 4 : index
    %c0_15 = arith.constant 0 : index
    %c0_16 = arith.constant 0 : index
    %24 = vector.load %arg2[%c4, %c0_15, %c0_16] : memref<5x28x192xf32, #tpu.memory_space<vmem>>, vector<1x28x192xf32>
    %25 = vector.shape_cast %24 : vector<1x28x192xf32> to vector<28x192xf32>
    %cst_17 = arith.constant dense<0.000000e+00> : vector<24x192xf32>
    %26 = tpu.matmul %23, %25, %cst_17 {dimension_numbers = #tpu.dot_dimension_numbers<[1], [0], [0], [1], [0, 0, 1, 1], [], []>} : vector<24x28xf32>, vector<28x192xf32>, vector<24x192xf32> -> vector<24x192xf32>
    %27 = arith.addf %22, %26 : vector<24x192xf32>
    %c0_18 = arith.constant 0 : index
    %c0_19 = arith.constant 0 : index
    %28 = vector.load %arg3[%c0_18, %c0_19] : memref<1x192xf32, #tpu.memory_space<vmem>>, vector<1x192xf32>
    %29 = vector.broadcast %28 : vector<1x192xf32> to vector<24x192xf32>
    %30 = arith.addf %27, %29 : vector<24x192xf32>
    %c0_20 = arith.constant 0 : index
    %c0_21 = arith.constant 0 : index
    %31 = vector.load %arg4[%c0_20, %c0_21] : memref<192x96xf32, #tpu.memory_space<vmem>>, vector<192x96xf32>
    %cst_22 = arith.constant dense<0.000000e+00> : vector<24x96xf32>
    %32 = tpu.matmul %30, %31, %cst_22 {dimension_numbers = #tpu.dot_dimension_numbers<[1], [0], [0], [1], [0, 0, 1, 1], [], []>} : vector<24x192xf32>, vector<192x96xf32>, vector<24x96xf32> -> vector<24x96xf32>
    %c0_23 = arith.constant 0 : index
    %c0_24 = arith.constant 0 : index
    %33 = vector.load %arg5[%c0_23, %c0_24] : memref<192x96xf32, #tpu.memory_space<vmem>>, vector<192x96xf32>
    %cst_25 = arith.constant dense<0.000000e+00> : vector<24x96xf32>
    %34 = tpu.matmul %30, %33, %cst_25 {dimension_numbers = #tpu.dot_dimension_numbers<[1], [0], [0], [1], [0, 0, 1, 1], [], []>} : vector<24x192xf32>, vector<192x96xf32>, vector<24x96xf32> -> vector<24x96xf32>
    %35 = arith.maximumf %32, %34 : vector<24x96xf32>
    %c0_26 = arith.constant 0 : index
    %c0_27 = arith.constant 0 : index
    %36 = vector.load %arg15[%c0_26, %c0_27] : memref<24x96xf32, #tpu.memory_space<vmem>>, vector<24x96xf32>
    tpu.vector_store %arg15[%c0_26, %c0_27], %35 {strides = array<i32>} : memref<24x96xf32, #tpu.memory_space<vmem>>, vector<24x96xf32>,
    %c0_28 = arith.constant 0 : index
    %c0_29 = arith.constant 0 : index
    %37 = tpu.strided_load %arg15[%c0_28, %c0_29] {strides = array<i32: 2, 1>} : memref<24x96xf32, #tpu.memory_space<vmem>>, vector<12x96xf32>
    %c1_30 = arith.constant 1 : index
    %c0_31 = arith.constant 0 : index
    %38 = tpu.strided_load %arg15[%c1_30, %c0_31] {strides = array<i32: 2, 1>} : memref<24x96xf32, #tpu.memory_space<vmem>>, vector<12x96xf32>
    %39 = arith.maximumf %37, %38 : vector<12x96xf32>
    %cst_32 = arith.constant 0.000000e+00 : f32
    %40 = vector.broadcast %cst_32 : f32 to vector<12x96xf32>
    %41 = arith.maximumf %39, %40 : vector<12x96xf32>
    %cst_33 = arith.constant 0.000000e+00 : f32
    %42 = vector.broadcast %cst_33 : f32 to vector<8x128xf32>
    %43 = vector.extract_strided_slice %41 {offsets = [0, 0], sizes = [8, 96], strides = [1, 1]} : vector<12x96xf32> to vector<8x96xf32>
    %c0_34 = arith.constant 0 : index
    %c0_35 = arith.constant 0 : index
    %c0_36 = arith.constant 0 : index
    %44 = vector.load %arg6[%c0_34, %c0_35, %c0_36] : memref<5x96x128xf32, #tpu.memory_space<vmem>>, vector<1x96x128xf32>
    %45 = vector.shape_cast %44 : vector<1x96x128xf32> to vector<96x128xf32>
    %cst_37 = arith.constant dense<0.000000e+00> : vector<8x128xf32>
    %46 = tpu.matmul %43, %45, %cst_37 {dimension_numbers = #tpu.dot_dimension_numbers<[1], [0], [0], [1], [0, 0, 1, 1], [], []>} : vector<8x96xf32>, vector<96x128xf32>, vector<8x128xf32> -> vector<8x128xf32>
    %47 = arith.addf %42, %46 : vector<8x128xf32>
    %48 = vector.extract_strided_slice %41 {offsets = [1, 0], sizes = [8, 96], strides = [1, 1]} : vector<12x96xf32> to vector<8x96xf32>
    %c1_38 = arith.constant 1 : index
    %c0_39 = arith.constant 0 : index
    %c0_40 = arith.constant 0 : index
    %49 = vector.load %arg6[%c1_38, %c0_39, %c0_40] : memref<5x96x128xf32, #tpu.memory_space<vmem>>, vector<1x96x128xf32>
    %50 = vector.shape_cast %49 : vector<1x96x128xf32> to vector<96x128xf32>
    %cst_41 = arith.constant dense<0.000000e+00> : vector<8x128xf32>
    %51 = tpu.matmul %48, %50, %cst_41 {dimension_numbers = #tpu.dot_dimension_numbers<[1], [0], [0], [1], [0, 0, 1, 1], [], []>} : vector<8x96xf32>, vector<96x128xf32>, vector<8x128xf32> -> vector<8x128xf32>
    %52 = arith.addf %47, %51 : vector<8x128xf32>
    %53 = vector.extract_strided_slice %41 {offsets = [2, 0], sizes = [8, 96], strides = [1, 1]} : vector<12x96xf32> to vector<8x96xf32>
    %c2_42 = arith.constant 2 : index
    %c0_43 = arith.constant 0 : index
    %c0_44 = arith.constant 0 : index
    %54 = vector.load %arg6[%c2_42, %c0_43, %c0_44] : memref<5x96x128xf32, #tpu.memory_space<vmem>>, vector<1x96x128xf32>
    %55 = vector.shape_cast %54 : vector<1x96x128xf32> to vector<96x128xf32>
    %cst_45 = arith.constant dense<0.000000e+00> : vector<8x128xf32>
    %56 = tpu.matmul %53, %55, %cst_45 {dimension_numbers = #tpu.dot_dimension_numbers<[1], [0], [0], [1], [0, 0, 1, 1], [], []>} : vector<8x96xf32>, vector<96x128xf32>, vector<8x128xf32> -> vector<8x128xf32>
    %57 = arith.addf %52, %56 : vector<8x128xf32>
    %58 = vector.extract_strided_slice %41 {offsets = [3, 0], sizes = [8, 96], strides = [1, 1]} : vector<12x96xf32> to vector<8x96xf32>
    %c3_46 = arith.constant 3 : index
    %c0_47 = arith.constant 0 : index
    %c0_48 = arith.constant 0 : index
    %59 = vector.load %arg6[%c3_46, %c0_47, %c0_48] : memref<5x96x128xf32, #tpu.memory_space<vmem>>, vector<1x96x128xf32>
    %60 = vector.shape_cast %59 : vector<1x96x128xf32> to vector<96x128xf32>
    %cst_49 = arith.constant dense<0.000000e+00> : vector<8x128xf32>
    %61 = tpu.matmul %58, %60, %cst_49 {dimension_numbers = #tpu.dot_dimension_numbers<[1], [0], [0], [1], [0, 0, 1, 1], [], []>} : vector<8x96xf32>, vector<96x128xf32>, vector<8x128xf32> -> vector<8x128xf32>
    %62 = arith.addf %57, %61 : vector<8x128xf32>
    %63 = vector.extract_strided_slice %41 {offsets = [4, 0], sizes = [8, 96], strides = [1, 1]} : vector<12x96xf32> to vector<8x96xf32>
    %c4_50 = arith.constant 4 : index
    %c0_51 = arith.constant 0 : index
    %c0_52 = arith.constant 0 : index
    %64 = vector.load %arg6[%c4_50, %c0_51, %c0_52] : memref<5x96x128xf32, #tpu.memory_space<vmem>>, vector<1x96x128xf32>
    %65 = vector.shape_cast %64 : vector<1x96x128xf32> to vector<96x128xf32>
    %cst_53 = arith.constant dense<0.000000e+00> : vector<8x128xf32>
    %66 = tpu.matmul %63, %65, %cst_53 {dimension_numbers = #tpu.dot_dimension_numbers<[1], [0], [0], [1], [0, 0, 1, 1], [], []>} : vector<8x96xf32>, vector<96x128xf32>, vector<8x128xf32> -> vector<8x128xf32>
    %67 = arith.addf %62, %66 : vector<8x128xf32>
    %c0_54 = arith.constant 0 : index
    %c0_55 = arith.constant 0 : index
    %68 = vector.load %arg7[%c0_54, %c0_55] : memref<1x128xf32, #tpu.memory_space<vmem>>, vector<1x128xf32>
    %69 = vector.broadcast %68 : vector<1x128xf32> to vector<8x128xf32>
    %70 = arith.addf %67, %69 : vector<8x128xf32>
    %c0_56 = arith.constant 0 : index
    %c0_57 = arith.constant 0 : index
    %71 = vector.load %arg8[%c0_56, %c0_57] : memref<128x64xf32, #tpu.memory_space<vmem>>, vector<128x64xf32>
    %cst_58 = arith.constant dense<0.000000e+00> : vector<8x64xf32>
    %72 = tpu.matmul %70, %71, %cst_58 {dimension_numbers = #tpu.dot_dimension_numbers<[1], [0], [0], [1], [0, 0, 1, 1], [], []>} : vector<8x128xf32>, vector<128x64xf32>, vector<8x64xf32> -> vector<8x64xf32>
    %c0_59 = arith.constant 0 : index
    %c0_60 = arith.constant 0 : index
    %73 = vector.load %arg9[%c0_59, %c0_60] : memref<128x64xf32, #tpu.memory_space<vmem>>, vector<128x64xf32>
    %cst_61 = arith.constant dense<0.000000e+00> : vector<8x64xf32>
    %74 = tpu.matmul %70, %73, %cst_61 {dimension_numbers = #tpu.dot_dimension_numbers<[1], [0], [0], [1], [0, 0, 1, 1], [], []>} : vector<8x128xf32>, vector<128x64xf32>, vector<8x64xf32> -> vector<8x64xf32>
    %75 = arith.maximumf %72, %74 : vector<8x64xf32>
    %c0_62 = arith.constant 0 : index
    %c0_63 = arith.constant 0 : index
    %76 = vector.load %arg16[%c0_62, %c0_63] : memref<8x64xf32, #tpu.memory_space<vmem>>, vector<8x64xf32>
    tpu.vector_store %arg16[%c0_62, %c0_63], %75 {strides = array<i32>} : memref<8x64xf32, #tpu.memory_space<vmem>>, vector<8x64xf32>,
    %c0_64 = arith.constant 0 : index
    %c0_65 = arith.constant 0 : index
    %77 = tpu.strided_load %arg16[%c0_64, %c0_65] {strides = array<i32: 2, 1>} : memref<8x64xf32, #tpu.memory_space<vmem>>, vector<4x64xf32>
    %c1_66 = arith.constant 1 : index
    %c0_67 = arith.constant 0 : index
    %78 = tpu.strided_load %arg16[%c1_66, %c0_67] {strides = array<i32: 2, 1>} : memref<8x64xf32, #tpu.memory_space<vmem>>, vector<4x64xf32>
    %79 = arith.maximumf %77, %78 : vector<4x64xf32>
    %cst_68 = arith.constant 0.000000e+00 : f32
    %80 = vector.broadcast %cst_68 : f32 to vector<4x64xf32>
    %81 = arith.maximumf %79, %80 : vector<4x64xf32>
    %cst_69 = arith.constant 0.000000e+00 : f32
    %82 = vector.broadcast %cst_69 : f32 to vector<1x32xf32>
    %83 = vector.extract_strided_slice %81 {offsets = [0, 0], sizes = [1, 64], strides = [1, 1]} : vector<4x64xf32> to vector<1x64xf32>
    %c0_70 = arith.constant 0 : index
    %c0_71 = arith.constant 0 : index
    %84 = vector.load %arg10[%c0_70, %c0_71] : memref<256x32xf32, #tpu.memory_space<vmem>>, vector<64x32xf32>
    %cst_72 = arith.constant dense<0.000000e+00> : vector<1x32xf32>
    %85 = tpu.matmul %83, %84, %cst_72 {dimension_numbers = #tpu.dot_dimension_numbers<[1], [0], [0], [1], [0, 0, 1, 1], [], []>} : vector<1x64xf32>, vector<64x32xf32>, vector<1x32xf32> -> vector<1x32xf32>
    %86 = arith.addf %82, %85 : vector<1x32xf32>
    %87 = vector.extract_strided_slice %81 {offsets = [1, 0], sizes = [1, 64], strides = [1, 1]} : vector<4x64xf32> to vector<1x64xf32>
    %c64 = arith.constant 64 : index
    %c0_73 = arith.constant 0 : index
    %88 = vector.load %arg10[%c64, %c0_73] : memref<256x32xf32, #tpu.memory_space<vmem>>, vector<64x32xf32>
    %cst_74 = arith.constant dense<0.000000e+00> : vector<1x32xf32>
    %89 = tpu.matmul %87, %88, %cst_74 {dimension_numbers = #tpu.dot_dimension_numbers<[1], [0], [0], [1], [0, 0, 1, 1], [], []>} : vector<1x64xf32>, vector<64x32xf32>, vector<1x32xf32> -> vector<1x32xf32>
    %90 = arith.addf %86, %89 : vector<1x32xf32>
    %91 = vector.extract_strided_slice %81 {offsets = [2, 0], sizes = [1, 64], strides = [1, 1]} : vector<4x64xf32> to vector<1x64xf32>
    %c128 = arith.constant 128 : index
    %c0_75 = arith.constant 0 : index
    %92 = vector.load %arg10[%c128, %c0_75] : memref<256x32xf32, #tpu.memory_space<vmem>>, vector<64x32xf32>
    %cst_76 = arith.constant dense<0.000000e+00> : vector<1x32xf32>
    %93 = tpu.matmul %91, %92, %cst_76 {dimension_numbers = #tpu.dot_dimension_numbers<[1], [0], [0], [1], [0, 0, 1, 1], [], []>} : vector<1x64xf32>, vector<64x32xf32>, vector<1x32xf32> -> vector<1x32xf32>
    %94 = arith.addf %90, %93 : vector<1x32xf32>
    %95 = vector.extract_strided_slice %81 {offsets = [3, 0], sizes = [1, 64], strides = [1, 1]} : vector<4x64xf32> to vector<1x64xf32>
    %c192 = arith.constant 192 : index
    %c0_77 = arith.constant 0 : index
    %96 = vector.load %arg10[%c192, %c0_77] : memref<256x32xf32, #tpu.memory_space<vmem>>, vector<64x32xf32>
    %cst_78 = arith.constant dense<0.000000e+00> : vector<1x32xf32>
    %97 = tpu.matmul %95, %96, %cst_78 {dimension_numbers = #tpu.dot_dimension_numbers<[1], [0], [0], [1], [0, 0, 1, 1], [], []>} : vector<1x64xf32>, vector<64x32xf32>, vector<1x32xf32> -> vector<1x32xf32>
    %98 = arith.addf %94, %97 : vector<1x32xf32>
    %c0_79 = arith.constant 0 : index
    %c0_80 = arith.constant 0 : index
    %99 = vector.load %arg11[%c0_79, %c0_80] : memref<1x32xf32, #tpu.memory_space<vmem>>, vector<1x32xf32>
    %100 = arith.addf %98, %99 : vector<1x32xf32>
    %cst_81 = arith.constant 0.000000e+00 : f32
    %101 = vector.broadcast %cst_81 : f32 to vector<1x32xf32>
    %102 = arith.maximumf %100, %101 : vector<1x32xf32>
    %c0_82 = arith.constant 0 : index
    %c0_83 = arith.constant 0 : index
    %103 = vector.load %arg12[%c0_82, %c0_83] : memref<32x10xf32, #tpu.memory_space<vmem>>, vector<32x10xf32>
    %cst_84 = arith.constant dense<0.000000e+00> : vector<1x10xf32>
    %104 = tpu.matmul %102, %103, %cst_84 {dimension_numbers = #tpu.dot_dimension_numbers<[1], [0], [0], [1], [0, 0, 1, 1], [], []>} : vector<1x32xf32>, vector<32x10xf32>, vector<1x10xf32> -> vector<1x10xf32>
    %c0_85 = arith.constant 0 : index
    %c0_86 = arith.constant 0 : index
    %105 = vector.load %arg13[%c0_85, %c0_86] : memref<1x10xf32, #tpu.memory_space<vmem>>, vector<1x10xf32>
    %106 = arith.addf %104, %105 : vector<1x10xf32>
    %cst_87 = arith.constant dense<0xFF800000> : vector<1xf32>
    %107 = vector.multi_reduction <maximumf>, %106, %cst_87 [1] : vector<1x10xf32> to vector<1xf32>
    %108 = vector.shape_cast %107 : vector<1xf32> to vector<1x1xf32>
    %109 = vector.broadcast %108 : vector<1x1xf32> to vector<1x10xf32>
    %110 = arith.subf %106, %109 : vector<1x10xf32>
    %111 = math.exp %110 : vector<1x10xf32>
    %cst_88 = arith.constant dense<0.000000e+00> : vector<1xf32>
    %112 = vector.multi_reduction <add>, %111, %cst_88 [1] : vector<1x10xf32> to vector<1xf32>
    %113 = vector.shape_cast %112 : vector<1xf32> to vector<1x1xf32>
    %114 = math.log %113 : vector<1x1xf32>
    %115 = vector.broadcast %114 : vector<1x1xf32> to vector<1x10xf32>
    %116 = arith.subf %110, %115 : vector<1x10xf32>
    %c0_89 = arith.constant 0 : index
    %c0_90 = arith.constant 0 : index
    %117 = vector.load %arg14[%c0_89, %c0_90] : memref<2x10xf32, #tpu.memory_space<vmem>>, vector<1x10xf32>
    tpu.vector_store %arg14[%c0_89, %c0_90], %116 {strides = array<i32>} : memref<2x10xf32, #tpu.memory_space<vmem>>, vector<1x10xf32>,
    %c1_91 = arith.constant 1 : index
    %c0_92 = arith.constant 0 : index
    %c0_93 = arith.constant 0 : index
    %118 = vector.load %arg1[%c1_91, %c0_92, %c0_93] : memref<2x28x28xf32, #tpu.memory_space<vmem>>, vector<1x28x28xf32>
    %119 = vector.shape_cast %118 : vector<1x28x28xf32> to vector<28x28xf32>
    %cst_94 = arith.constant 0.000000e+00 : f32
    %120 = vector.broadcast %cst_94 : f32 to vector<24x192xf32>
    %121 = vector.extract_strided_slice %119 {offsets = [0, 0], sizes = [24, 28], strides = [1, 1]} : vector<28x28xf32> to vector<24x28xf32>
    %c0_95 = arith.constant 0 : index
    %c0_96 = arith.constant 0 : index
    %c0_97 = arith.constant 0 : index
    %122 = vector.load %arg2[%c0_95, %c0_96, %c0_97] : memref<5x28x192xf32, #tpu.memory_space<vmem>>, vector<1x28x192xf32>
    %123 = vector.shape_cast %122 : vector<1x28x192xf32> to vector<28x192xf32>
    %cst_98 = arith.constant dense<0.000000e+00> : vector<24x192xf32>
    %124 = tpu.matmul %121, %123, %cst_98 {dimension_numbers = #tpu.dot_dimension_numbers<[1], [0], [0], [1], [0, 0, 1, 1], [], []>} : vector<24x28xf32>, vector<28x192xf32>, vector<24x192xf32> -> vector<24x192xf32>
    %125 = arith.addf %120, %124 : vector<24x192xf32>
    %126 = vector.extract_strided_slice %119 {offsets = [1, 0], sizes = [24, 28], strides = [1, 1]} : vector<28x28xf32> to vector<24x28xf32>
    %c1_99 = arith.constant 1 : index
    %c0_100 = arith.constant 0 : index
    %c0_101 = arith.constant 0 : index
    %127 = vector.load %arg2[%c1_99, %c0_100, %c0_101] : memref<5x28x192xf32, #tpu.memory_space<vmem>>, vector<1x28x192xf32>
    %128 = vector.shape_cast %127 : vector<1x28x192xf32> to vector<28x192xf32>
    %cst_102 = arith.constant dense<0.000000e+00> : vector<24x192xf32>
    %129 = tpu.matmul %126, %128, %cst_102 {dimension_numbers = #tpu.dot_dimension_numbers<[1], [0], [0], [1], [0, 0, 1, 1], [], []>} : vector<24x28xf32>, vector<28x192xf32>, vector<24x192xf32> -> vector<24x192xf32>
    %130 = arith.addf %125, %129 : vector<24x192xf32>
    %131 = vector.extract_strided_slice %119 {offsets = [2, 0], sizes = [24, 28], strides = [1, 1]} : vector<28x28xf32> to vector<24x28xf32>
    %c2_103 = arith.constant 2 : index
    %c0_104 = arith.constant 0 : index
    %c0_105 = arith.constant 0 : index
    %132 = vector.load %arg2[%c2_103, %c0_104, %c0_105] : memref<5x28x192xf32, #tpu.memory_space<vmem>>, vector<1x28x192xf32>
    %133 = vector.shape_cast %132 : vector<1x28x192xf32> to vector<28x192xf32>
    %cst_106 = arith.constant dense<0.000000e+00> : vector<24x192xf32>
    %134 = tpu.matmul %131, %133, %cst_106 {dimension_numbers = #tpu.dot_dimension_numbers<[1], [0], [0], [1], [0, 0, 1, 1], [], []>} : vector<24x28xf32>, vector<28x192xf32>, vector<24x192xf32> -> vector<24x192xf32>
    %135 = arith.addf %130, %134 : vector<24x192xf32>
    %136 = vector.extract_strided_slice %119 {offsets = [3, 0], sizes = [24, 28], strides = [1, 1]} : vector<28x28xf32> to vector<24x28xf32>
    %c3_107 = arith.constant 3 : index
    %c0_108 = arith.constant 0 : index
    %c0_109 = arith.constant 0 : index
    %137 = vector.load %arg2[%c3_107, %c0_108, %c0_109] : memref<5x28x192xf32, #tpu.memory_space<vmem>>, vector<1x28x192xf32>
    %138 = vector.shape_cast %137 : vector<1x28x192xf32> to vector<28x192xf32>
    %cst_110 = arith.constant dense<0.000000e+00> : vector<24x192xf32>
    %139 = tpu.matmul %136, %138, %cst_110 {dimension_numbers = #tpu.dot_dimension_numbers<[1], [0], [0], [1], [0, 0, 1, 1], [], []>} : vector<24x28xf32>, vector<28x192xf32>, vector<24x192xf32> -> vector<24x192xf32>
    %140 = arith.addf %135, %139 : vector<24x192xf32>
    %141 = vector.extract_strided_slice %119 {offsets = [4, 0], sizes = [24, 28], strides = [1, 1]} : vector<28x28xf32> to vector<24x28xf32>
    %c4_111 = arith.constant 4 : index
    %c0_112 = arith.constant 0 : index
    %c0_113 = arith.constant 0 : index
    %142 = vector.load %arg2[%c4_111, %c0_112, %c0_113] : memref<5x28x192xf32, #tpu.memory_space<vmem>>, vector<1x28x192xf32>
    %143 = vector.shape_cast %142 : vector<1x28x192xf32> to vector<28x192xf32>
    %cst_114 = arith.constant dense<0.000000e+00> : vector<24x192xf32>
    %144 = tpu.matmul %141, %143, %cst_114 {dimension_numbers = #tpu.dot_dimension_numbers<[1], [0], [0], [1], [0, 0, 1, 1], [], []>} : vector<24x28xf32>, vector<28x192xf32>, vector<24x192xf32> -> vector<24x192xf32>
    %145 = arith.addf %140, %144 : vector<24x192xf32>
    %c0_115 = arith.constant 0 : index
    %c0_116 = arith.constant 0 : index
    %146 = vector.load %arg3[%c0_115, %c0_116] : memref<1x192xf32, #tpu.memory_space<vmem>>, vector<1x192xf32>
    %147 = vector.broadcast %146 : vector<1x192xf32> to vector<24x192xf32>
    %148 = arith.addf %145, %147 : vector<24x192xf32>
    %c0_117 = arith.constant 0 : index
    %c0_118 = arith.constant 0 : index
    %149 = vector.load %arg4[%c0_117, %c0_118] : memref<192x96xf32, #tpu.memory_space<vmem>>, vector<192x96xf32>
    %cst_119 = arith.constant dense<0.000000e+00> : vector<24x96xf32>
    %150 = tpu.matmul %148, %149, %cst_119 {dimension_numbers = #tpu.dot_dimension_numbers<[1], [0], [0], [1], [0, 0, 1, 1], [], []>} : vector<24x192xf32>, vector<192x96xf32>, vector<24x96xf32> -> vector<24x96xf32>
    %c0_120 = arith.constant 0 : index
    %c0_121 = arith.constant 0 : index
    %151 = vector.load %arg5[%c0_120, %c0_121] : memref<192x96xf32, #tpu.memory_space<vmem>>, vector<192x96xf32>
    %cst_122 = arith.constant dense<0.000000e+00> : vector<24x96xf32>
    %152 = tpu.matmul %148, %151, %cst_122 {dimension_numbers = #tpu.dot_dimension_numbers<[1], [0], [0], [1], [0, 0, 1, 1], [], []>} : vector<24x192xf32>, vector<192x96xf32>, vector<24x96xf32> -> vector<24x96xf32>
    %153 = arith.maximumf %150, %152 : vector<24x96xf32>
    %c0_123 = arith.constant 0 : index
    %c0_124 = arith.constant 0 : index
    %154 = vector.load %arg15[%c0_123, %c0_124] : memref<24x96xf32, #tpu.memory_space<vmem>>, vector<24x96xf32>
    tpu.vector_store %arg15[%c0_123, %c0_124], %153 {strides = array<i32>} : memref<24x96xf32, #tpu.memory_space<vmem>>, vector<24x96xf32>,
    %c0_125 = arith.constant 0 : index
    %c0_126 = arith.constant 0 : index
    %155 = tpu.strided_load %arg15[%c0_125, %c0_126] {strides = array<i32: 2, 1>} : memref<24x96xf32, #tpu.memory_space<vmem>>, vector<12x96xf32>
    %c1_127 = arith.constant 1 : index
    %c0_128 = arith.constant 0 : index
    %156 = tpu.strided_load %arg15[%c1_127, %c0_128] {strides = array<i32: 2, 1>} : memref<24x96xf32, #tpu.memory_space<vmem>>, vector<12x96xf32>
    %157 = arith.maximumf %155, %156 : vector<12x96xf32>
    %cst_129 = arith.constant 0.000000e+00 : f32
    %158 = vector.broadcast %cst_129 : f32 to vector<12x96xf32>
    %159 = arith.maximumf %157, %158 : vector<12x96xf32>
    %cst_130 = arith.constant 0.000000e+00 : f32
    %160 = vector.broadcast %cst_130 : f32 to vector<8x128xf32>
    %161 = vector.extract_strided_slice %159 {offsets = [0, 0], sizes = [8, 96], strides = [1, 1]} : vector<12x96xf32> to vector<8x96xf32>
    %c0_131 = arith.constant 0 : index
    %c0_132 = arith.constant 0 : index
    %c0_133 = arith.constant 0 : index
    %162 = vector.load %arg6[%c0_131, %c0_132, %c0_133] : memref<5x96x128xf32, #tpu.memory_space<vmem>>, vector<1x96x128xf32>
    %163 = vector.shape_cast %162 : vector<1x96x128xf32> to vector<96x128xf32>
    %cst_134 = arith.constant dense<0.000000e+00> : vector<8x128xf32>
    %164 = tpu.matmul %161, %163, %cst_134 {dimension_numbers = #tpu.dot_dimension_numbers<[1], [0], [0], [1], [0, 0, 1, 1], [], []>} : vector<8x96xf32>, vector<96x128xf32>, vector<8x128xf32> -> vector<8x128xf32>
    %165 = arith.addf %160, %164 : vector<8x128xf32>
    %166 = vector.extract_strided_slice %159 {offsets = [1, 0], sizes = [8, 96], strides = [1, 1]} : vector<12x96xf32> to vector<8x96xf32>
    %c1_135 = arith.constant 1 : index
    %c0_136 = arith.constant 0 : index
    %c0_137 = arith.constant 0 : index
    %167 = vector.load %arg6[%c1_135, %c0_136, %c0_137] : memref<5x96x128xf32, #tpu.memory_space<vmem>>, vector<1x96x128xf32>
    %168 = vector.shape_cast %167 : vector<1x96x128xf32> to vector<96x128xf32>
    %cst_138 = arith.constant dense<0.000000e+00> : vector<8x128xf32>
    %169 = tpu.matmul %166, %168, %cst_138 {dimension_numbers = #tpu.dot_dimension_numbers<[1], [0], [0], [1], [0, 0, 1, 1], [], []>} : vector<8x96xf32>, vector<96x128xf32>, vector<8x128xf32> -> vector<8x128xf32>
    %170 = arith.addf %165, %169 : vector<8x128xf32>
    %171 = vector.extract_strided_slice %159 {offsets = [2, 0], sizes = [8, 96], strides = [1, 1]} : vector<12x96xf32> to vector<8x96xf32>
    %c2_139 = arith.constant 2 : index
    %c0_140 = arith.constant 0 : index
    %c0_141 = arith.constant 0 : index
    %172 = vector.load %arg6[%c2_139, %c0_140, %c0_141] : memref<5x96x128xf32, #tpu.memory_space<vmem>>, vector<1x96x128xf32>
    %173 = vector.shape_cast %172 : vector<1x96x128xf32> to vector<96x128xf32>
    %cst_142 = arith.constant dense<0.000000e+00> : vector<8x128xf32>
    %174 = tpu.matmul %171, %173, %cst_142 {dimension_numbers = #tpu.dot_dimension_numbers<[1], [0], [0], [1], [0, 0, 1, 1], [], []>} : vector<8x96xf32>, vector<96x128xf32>, vector<8x128xf32> -> vector<8x128xf32>
    %175 = arith.addf %170, %174 : vector<8x128xf32>
    %176 = vector.extract_strided_slice %159 {offsets = [3, 0], sizes = [8, 96], strides = [1, 1]} : vector<12x96xf32> to vector<8x96xf32>
    %c3_143 = arith.constant 3 : index
    %c0_144 = arith.constant 0 : index
    %c0_145 = arith.constant 0 : index
    %177 = vector.load %arg6[%c3_143, %c0_144, %c0_145] : memref<5x96x128xf32, #tpu.memory_space<vmem>>, vector<1x96x128xf32>
    %178 = vector.shape_cast %177 : vector<1x96x128xf32> to vector<96x128xf32>
    %cst_146 = arith.constant dense<0.000000e+00> : vector<8x128xf32>
    %179 = tpu.matmul %176, %178, %cst_146 {dimension_numbers = #tpu.dot_dimension_numbers<[1], [0], [0], [1], [0, 0, 1, 1], [], []>} : vector<8x96xf32>, vector<96x128xf32>, vector<8x128xf32> -> vector<8x128xf32>
    %180 = arith.addf %175, %179 : vector<8x128xf32>
    %181 = vector.extract_strided_slice %159 {offsets = [4, 0], sizes = [8, 96], strides = [1, 1]} : vector<12x96xf32> to vector<8x96xf32>
    %c4_147 = arith.constant 4 : index
    %c0_148 = arith.constant 0 : index
    %c0_149 = arith.constant 0 : index
    %182 = vector.load %arg6[%c4_147, %c0_148, %c0_149] : memref<5x96x128xf32, #tpu.memory_space<vmem>>, vector<1x96x128xf32>
    %183 = vector.shape_cast %182 : vector<1x96x128xf32> to vector<96x128xf32>
    %cst_150 = arith.constant dense<0.000000e+00> : vector<8x128xf32>
    %184 = tpu.matmul %181, %183, %cst_150 {dimension_numbers = #tpu.dot_dimension_numbers<[1], [0], [0], [1], [0, 0, 1, 1], [], []>} : vector<8x96xf32>, vector<96x128xf32>, vector<8x128xf32> -> vector<8x128xf32>
    %185 = arith.addf %180, %184 : vector<8x128xf32>
    %c0_151 = arith.constant 0 : index
    %c0_152 = arith.constant 0 : index
    %186 = vector.load %arg7[%c0_151, %c0_152] : memref<1x128xf32, #tpu.memory_space<vmem>>, vector<1x128xf32>
    %187 = vector.broadcast %186 : vector<1x128xf32> to vector<8x128xf32>
    %188 = arith.addf %185, %187 : vector<8x128xf32>
    %c0_153 = arith.constant 0 : index
    %c0_154 = arith.constant 0 : index
    %189 = vector.load %arg8[%c0_153, %c0_154] : memref<128x64xf32, #tpu.memory_space<vmem>>, vector<128x64xf32>
    %cst_155 = arith.constant dense<0.000000e+00> : vector<8x64xf32>
    %190 = tpu.matmul %188, %189, %cst_155 {dimension_numbers = #tpu.dot_dimension_numbers<[1], [0], [0], [1], [0, 0, 1, 1], [], []>} : vector<8x128xf32>, vector<128x64xf32>, vector<8x64xf32> -> vector<8x64xf32>
    %c0_156 = arith.constant 0 : index
    %c0_157 = arith.constant 0 : index
    %191 = vector.load %arg9[%c0_156, %c0_157] : memref<128x64xf32, #tpu.memory_space<vmem>>, vector<128x64xf32>
    %cst_158 = arith.constant dense<0.000000e+00> : vector<8x64xf32>
    %192 = tpu.matmul %188, %191, %cst_158 {dimension_numbers = #tpu.dot_dimension_numbers<[1], [0], [0], [1], [0, 0, 1, 1], [], []>} : vector<8x128xf32>, vector<128x64xf32>, vector<8x64xf32> -> vector<8x64xf32>
    %193 = arith.maximumf %190, %192 : vector<8x64xf32>
    %c0_159 = arith.constant 0 : index
    %c0_160 = arith.constant 0 : index
    %194 = vector.load %arg16[%c0_159, %c0_160] : memref<8x64xf32, #tpu.memory_space<vmem>>, vector<8x64xf32>
    tpu.vector_store %arg16[%c0_159, %c0_160], %193 {strides = array<i32>} : memref<8x64xf32, #tpu.memory_space<vmem>>, vector<8x64xf32>,
    %c0_161 = arith.constant 0 : index
    %c0_162 = arith.constant 0 : index
    %195 = tpu.strided_load %arg16[%c0_161, %c0_162] {strides = array<i32: 2, 1>} : memref<8x64xf32, #tpu.memory_space<vmem>>, vector<4x64xf32>
    %c1_163 = arith.constant 1 : index
    %c0_164 = arith.constant 0 : index
    %196 = tpu.strided_load %arg16[%c1_163, %c0_164] {strides = array<i32: 2, 1>} : memref<8x64xf32, #tpu.memory_space<vmem>>, vector<4x64xf32>
    %197 = arith.maximumf %195, %196 : vector<4x64xf32>
    %cst_165 = arith.constant 0.000000e+00 : f32
    %198 = vector.broadcast %cst_165 : f32 to vector<4x64xf32>
    %199 = arith.maximumf %197, %198 : vector<4x64xf32>
    %cst_166 = arith.constant 0.000000e+00 : f32
    %200 = vector.broadcast %cst_166 : f32 to vector<1x32xf32>
    %201 = vector.extract_strided_slice %199 {offsets = [0, 0], sizes = [1, 64], strides = [1, 1]} : vector<4x64xf32> to vector<1x64xf32>
    %c0_167 = arith.constant 0 : index
    %c0_168 = arith.constant 0 : index
    %202 = vector.load %arg10[%c0_167, %c0_168] : memref<256x32xf32, #tpu.memory_space<vmem>>, vector<64x32xf32>
    %cst_169 = arith.constant dense<0.000000e+00> : vector<1x32xf32>
    %203 = tpu.matmul %201, %202, %cst_169 {dimension_numbers = #tpu.dot_dimension_numbers<[1], [0], [0], [1], [0, 0, 1, 1], [], []>} : vector<1x64xf32>, vector<64x32xf32>, vector<1x32xf32> -> vector<1x32xf32>
    %204 = arith.addf %200, %203 : vector<1x32xf32>
    %205 = vector.extract_strided_slice %199 {offsets = [1, 0], sizes = [1, 64], strides = [1, 1]} : vector<4x64xf32> to vector<1x64xf32>
    %c64_170 = arith.constant 64 : index
    %c0_171 = arith.constant 0 : index
    %206 = vector.load %arg10[%c64_170, %c0_171] : memref<256x32xf32, #tpu.memory_space<vmem>>, vector<64x32xf32>
    %cst_172 = arith.constant dense<0.000000e+00> : vector<1x32xf32>
    %207 = tpu.matmul %205, %206, %cst_172 {dimension_numbers = #tpu.dot_dimension_numbers<[1], [0], [0], [1], [0, 0, 1, 1], [], []>} : vector<1x64xf32>, vector<64x32xf32>, vector<1x32xf32> -> vector<1x32xf32>
    %208 = arith.addf %204, %207 : vector<1x32xf32>
    %209 = vector.extract_strided_slice %199 {offsets = [2, 0], sizes = [1, 64], strides = [1, 1]} : vector<4x64xf32> to vector<1x64xf32>
    %c128_173 = arith.constant 128 : index
    %c0_174 = arith.constant 0 : index
    %210 = vector.load %arg10[%c128_173, %c0_174] : memref<256x32xf32, #tpu.memory_space<vmem>>, vector<64x32xf32>
    %cst_175 = arith.constant dense<0.000000e+00> : vector<1x32xf32>
    %211 = tpu.matmul %209, %210, %cst_175 {dimension_numbers = #tpu.dot_dimension_numbers<[1], [0], [0], [1], [0, 0, 1, 1], [], []>} : vector<1x64xf32>, vector<64x32xf32>, vector<1x32xf32> -> vector<1x32xf32>
    %212 = arith.addf %208, %211 : vector<1x32xf32>
    %213 = vector.extract_strided_slice %199 {offsets = [3, 0], sizes = [1, 64], strides = [1, 1]} : vector<4x64xf32> to vector<1x64xf32>
    %c192_176 = arith.constant 192 : index
    %c0_177 = arith.constant 0 : index
    %214 = vector.load %arg10[%c192_176, %c0_177] : memref<256x32xf32, #tpu.memory_space<vmem>>, vector<64x32xf32>
    %cst_178 = arith.constant dense<0.000000e+00> : vector<1x32xf32>
    %215 = tpu.matmul %213, %214, %cst_178 {dimension_numbers = #tpu.dot_dimension_numbers<[1], [0], [0], [1], [0, 0, 1, 1], [], []>} : vector<1x64xf32>, vector<64x32xf32>, vector<1x32xf32> -> vector<1x32xf32>
    %216 = arith.addf %212, %215 : vector<1x32xf32>
    %c0_179 = arith.constant 0 : index
    %c0_180 = arith.constant 0 : index
    %217 = vector.load %arg11[%c0_179, %c0_180] : memref<1x32xf32, #tpu.memory_space<vmem>>, vector<1x32xf32>
    %218 = arith.addf %216, %217 : vector<1x32xf32>
    %cst_181 = arith.constant 0.000000e+00 : f32
    %219 = vector.broadcast %cst_181 : f32 to vector<1x32xf32>
    %220 = arith.maximumf %218, %219 : vector<1x32xf32>
    %c0_182 = arith.constant 0 : index
    %c0_183 = arith.constant 0 : index
    %221 = vector.load %arg12[%c0_182, %c0_183] : memref<32x10xf32, #tpu.memory_space<vmem>>, vector<32x10xf32>
    %cst_184 = arith.constant dense<0.000000e+00> : vector<1x10xf32>
    %222 = tpu.matmul %220, %221, %cst_184 {dimension_numbers = #tpu.dot_dimension_numbers<[1], [0], [0], [1], [0, 0, 1, 1], [], []>} : vector<1x32xf32>, vector<32x10xf32>, vector<1x10xf32> -> vector<1x10xf32>
    %c0_185 = arith.constant 0 : index
    %c0_186 = arith.constant 0 : index
    %223 = vector.load %arg13[%c0_185, %c0_186] : memref<1x10xf32, #tpu.memory_space<vmem>>, vector<1x10xf32>
    %224 = arith.addf %222, %223 : vector<1x10xf32>
    %cst_187 = arith.constant dense<0xFF800000> : vector<1xf32>
    %225 = vector.multi_reduction <maximumf>, %224, %cst_187 [1] : vector<1x10xf32> to vector<1xf32>
    %226 = vector.shape_cast %225 : vector<1xf32> to vector<1x1xf32>
    %227 = vector.broadcast %226 : vector<1x1xf32> to vector<1x10xf32>
    %228 = arith.subf %224, %227 : vector<1x10xf32>
    %229 = math.exp %228 : vector<1x10xf32>
    %cst_188 = arith.constant dense<0.000000e+00> : vector<1xf32>
    %230 = vector.multi_reduction <add>, %229, %cst_188 [1] : vector<1x10xf32> to vector<1xf32>
    %231 = vector.shape_cast %230 : vector<1xf32> to vector<1x1xf32>
    %232 = math.log %231 : vector<1x1xf32>
    %233 = vector.broadcast %232 : vector<1x1xf32> to vector<1x10xf32>
    %234 = arith.subf %228, %233 : vector<1x10xf32>
    %c1_189 = arith.constant 1 : index
    %c0_190 = arith.constant 0 : index
    %235 = vector.load %arg14[%c1_189, %c0_190] : memref<2x10xf32, #tpu.memory_space<vmem>>, vector<1x10xf32>
    tpu.vector_store %arg14[%c1_189, %c0_190], %234 {strides = array<i32>} : memref<2x10xf32, #tpu.memory_space<vmem>>, vector<1x10xf32>,
    return
  }
  func.func @transform_0(%arg0: i32) -> (i32, i32, i32) {
    %c0_i32 = arith.constant 0 : i32
    %c0_i32_0 = arith.constant 0 : i32
    %c0_i32_1 = arith.constant 0 : i32
    return %arg0, %c0_i32, %c0_i32_0 : i32, i32, i32
  }
  func.func @transform_1(%arg0: i32) -> (i32, i32, i32) {
    %c0_i32 = arith.constant 0 : i32
    %c0_i32_0 = arith.constant 0 : i32
    %c0_i32_1 = arith.constant 0 : i32
    %c0_i32_2 = arith.constant 0 : i32
    return %c0_i32, %c0_i32_0, %c0_i32_1 : i32, i32, i32
  }
  func.func @transform_2(%arg0: i32) -> (i32, i32) {
    %c0_i32 = arith.constant 0 : i32
    %c0_i32_0 = arith.constant 0 : i32
    %c0_i32_1 = arith.constant 0 : i32
    return %c0_i32, %c0_i32_0 : i32, i32
  }
  func.func @transform_3(%arg0: i32) -> (i32, i32) {
    %c0_i32 = arith.constant 0 : i32
    %c0_i32_0 = arith.constant 0 : i32
    %c0_i32_1 = arith.constant 0 : i32
    return %c0_i32, %c0_i32_0 : i32, i32
  }
  func.func @transform_4(%arg0: i32) -> (i32, i32) {
    %c0_i32 = arith.constant 0 : i32
    %c0_i32_0 = arith.constant 0 : i32
    %c0_i32_1 = arith.constant 0 : i32
    return %c0_i32, %c0_i32_0 : i32, i32
  }
  func.func @transform_5(%arg0: i32) -> (i32, i32, i32) {
    %c0_i32 = arith.constant 0 : i32
    %c0_i32_0 = arith.constant 0 : i32
    %c0_i32_1 = arith.constant 0 : i32
    %c0_i32_2 = arith.constant 0 : i32
    return %c0_i32, %c0_i32_0, %c0_i32_1 : i32, i32, i32
  }
  func.func @transform_6(%arg0: i32) -> (i32, i32) {
    %c0_i32 = arith.constant 0 : i32
    %c0_i32_0 = arith.constant 0 : i32
    %c0_i32_1 = arith.constant 0 : i32
    return %c0_i32, %c0_i32_0 : i32, i32
  }
  func.func @transform_7(%arg0: i32) -> (i32, i32) {
    %c0_i32 = arith.constant 0 : i32
    %c0_i32_0 = arith.constant 0 : i32
    %c0_i32_1 = arith.constant 0 : i32
    return %c0_i32, %c0_i32_0 : i32, i32
  }
  func.func @transform_8(%arg0: i32) -> (i32, i32) {
    %c0_i32 = arith.constant 0 : i32
    %c0_i32_0 = arith.constant 0 : i32
    %c0_i32_1 = arith.constant 0 : i32
    return %c0_i32, %c0_i32_0 : i32, i32
  }
  func.func @transform_9(%arg0: i32) -> (i32, i32) {
    %c0_i32 = arith.constant 0 : i32
    %c0_i32_0 = arith.constant 0 : i32
    %c0_i32_1 = arith.constant 0 : i32
    return %c0_i32, %c0_i32_0 : i32, i32
  }
  func.func @transform_10(%arg0: i32) -> (i32, i32) {
    %c0_i32 = arith.constant 0 : i32
    %c0_i32_0 = arith.constant 0 : i32
    %c0_i32_1 = arith.constant 0 : i32
    return %c0_i32, %c0_i32_0 : i32, i32
  }
  func.func @transform_11(%arg0: i32) -> (i32, i32) {
    %c0_i32 = arith.constant 0 : i32
    %c0_i32_0 = arith.constant 0 : i32
    %c0_i32_1 = arith.constant 0 : i32
    return %c0_i32, %c0_i32_0 : i32, i32
  }
  func.func @transform_12(%arg0: i32) -> (i32, i32) {
    %c0_i32 = arith.constant 0 : i32
    %c0_i32_0 = arith.constant 0 : i32
    %c0_i32_1 = arith.constant 0 : i32
    return %c0_i32, %c0_i32_0 : i32, i32
  }
  func.func @transform_13(%arg0: i32) -> (i32, i32) {
    %c0_i32 = arith.constant 0 : i32
    %c0_i32_0 = arith.constant 0 : i32
    return %arg0, %c0_i32 : i32, i32
  }
}

</mosaic_0001>

<llo_original>
// kernel: experiment_network_forward.1
$region0: #{experiment_network_forward.1}
  #allocation0 [shape = 'u32[]', space=smem, size = 0x4, offset = 0x4, fixed_abs, tag = 'smem constant byte address 0x4 - core index']
  #allocation1 [shape = 'u32[144,128]{1,0:T(1,128)}', space=vmem, size = 0x12000, scoped, tag = 'internal scratch']
  #allocation2 [shape = 'f32[24,96]{1,0:T(8,128)}', space=vmem, size = 0x3000, scoped, tag = 'scratch operand']
  #allocation3 [shape = 'f32[8,64]{1,0:T(8,128)}', space=vmem, size = 0x1000, scoped, tag = 'scratch operand']
  %s0 = inlined_call_operand.vmem [shape: f32[2,28,28], index: 0, kind: input, shape index: {}]
  %s1 = inlined_call_operand.vmem [shape: f32[5,28,192], index: 1, kind: input, shape index: {}]
  %s2 = inlined_call_operand.vmem [shape: f32[1,192], index: 2, kind: input, shape index: {}]
  %s3 = inlined_call_operand.vmem [shape: f32[192,96], index: 3, kind: input, shape index: {}]
  %s4 = inlined_call_operand.hbm [shape: f32[192,96], index: 4, kind: input, shape index: {}]
  %s5 = inlined_call_operand.vmem [shape: f32[5,96,128], index: 5, kind: input, shape index: {}]
  %s6 = inlined_call_operand.vmem [shape: f32[1,128], index: 6, kind: input, shape index: {}]
  %s7 = inlined_call_operand.vmem [shape: f32[128,64], index: 7, kind: input, shape index: {}]
  %s8 = inlined_call_operand.vmem [shape: f32[128,64], index: 8, kind: input, shape index: {}]
  %s9 = inlined_call_operand.vmem [shape: f32[256,32], index: 9, kind: input, shape index: {}]
  %s10 = inlined_call_operand.vmem [shape: f32[1,32], index: 10, kind: input, shape index: {}]
  %s11 = inlined_call_operand.vmem [shape: f32[32,10], index: 11, kind: input, shape index: {}]
  %s12 = inlined_call_operand.vmem [shape: f32[1,10], index: 12, kind: input, shape index: {}]
  %s13 = inlined_call_operand.hbm [shape: f32[2,10], index: 13, kind: output, shape index: {}]
  %s14 = sld [smem:[#allocation0]]
  $region66: #{experiment_network_forward.1} parent=0
    _
  %s16 = ssub.s32 1, %s14
  %s17 = scalar_select 0, %s16, %s14
  $region1: #{experiment_network_forward.1} parent=0
    #allocation4 [shape = 'u8[98304]{0}', space=vmem, size = 0x18000, scoped, tag = 'input window, operand 4, single buffered']
    #allocation5 [shape = 's32[1]{0}', space=sflag, size = 0x4, scoped, tag = 'scoped memory for experiment_network_forward.1']
    #allocation6 [shape = 's32[1]{0}', space=sflag, size = 0x4, scoped, tag = 'scoped memory for experiment_network_forward.1']
    #allocation7 [shape = 'u8[1024]{0}', space=vmem, size = 0x400, scoped, tag = 'output window, operand 0, single buffered']
    %18 = vsyncpa [#allocation5], 0
    %19 = vsyncpa [#allocation6], 0
    // Predicated region
    $region2: #{experiment_network_forward.1} parent=1 // pred_check
      _
    $region3: #{experiment_network_forward.1} parent=1 // pred_check_branch
      %21 = sbr.rel (0) target = $region5
    $region4: #{experiment_network_forward.1} parent=1 // pred_region
      _
    $region5: #{experiment_network_forward.1} parent=1 // pred_fallthru
      _
    // Predicated region
    $region6: #{experiment_network_forward.1} parent=1 // pred_check
      _
    $region7: #{experiment_network_forward.1} parent=1 // pred_check_branch
      %23 = sbr.rel (0) target = $region9
    $region8: #{experiment_network_forward.1} parent=1 // pred_region
      _
    $region9: #{experiment_network_forward.1} parent=1 // pred_fallthru
      _
    // Predicated region
    $region10: #{experiment_network_forward.1} parent=1 // pred_check
      _
    $region11: #{experiment_network_forward.1} parent=1 // pred_check_branch
      %25 = sbr.rel (0) target = $region13
    $region12: #{experiment_network_forward.1} parent=1 // pred_region
      _
    $region13: #{experiment_network_forward.1} parent=1 // pred_fallthru
      _
    // Predicated region
    $region14: #{experiment_network_forward.1} parent=1 // pred_check
      _
    $region15: #{experiment_network_forward.1} parent=1 // pred_check_branch
      %27 = sbr.rel (0) target = $region17
    $region16: #{experiment_network_forward.1} parent=1 // pred_region
      _
    $region17: #{experiment_network_forward.1} parent=1 // pred_fallthru
      _
    // Predicated region
    $region18: #{experiment_network_forward.1} parent=1 // pred_check
      _
    $region19: #{experiment_network_forward.1} parent=1 // pred_check_branch
      %29 = sbr.rel (0) target = $region21
    $region20: #{experiment_network_forward.1} parent=1 // pred_region
      %s31 = ssub.s32 3072, 3072
      %32 = vsyncadd [#allocation5], %s31
      %s33 = sshll.u32 [#allocation4], 4
      %s34 = int_to_ptr.vmem [resolvable:$true] %s33
      %39 = dma.hbm_to_vmem [thread:$0]  %s4, 3072, %s34, [#allocation5], 128, 128, 8
    $region21: #{experiment_network_forward.1} parent=1 // pred_fallthru
      _
    // Predicated region
    $region22: #{experiment_network_forward.1} parent=1 // pred_check
      _
    $region23: #{experiment_network_forward.1} parent=1 // pred_check_branch
      %41 = sbr.rel (0) target = $region25
    $region24: #{experiment_network_forward.1} parent=1 // pred_region
      _
    $region25: #{experiment_network_forward.1} parent=1 // pred_fallthru
      _
    // Predicated region
    $region26: #{experiment_network_forward.1} parent=1 // pred_check
      _
    $region27: #{experiment_network_forward.1} parent=1 // pred_check_branch
      %43 = sbr.rel (0) target = $region29
    $region28: #{experiment_network_forward.1} parent=1 // pred_region
      _
    $region29: #{experiment_network_forward.1} parent=1 // pred_fallthru
      _
    // Predicated region
    $region30: #{experiment_network_forward.1} parent=1 // pred_check
      _
    $region31: #{experiment_network_forward.1} parent=1 // pred_check_branch
      %45 = sbr.rel (0) target = $region33
    $region32: #{experiment_network_forward.1} parent=1 // pred_region
      _
    $region33: #{experiment_network_forward.1} parent=1 // pred_fallthru
      _
    // Predicated region
    $region34: #{experiment_network_forward.1} parent=1 // pred_check
      _
    $region35: #{experiment_network_forward.1} parent=1 // pred_check_branch
      %47 = sbr.rel (0) target = $region37
    $region36: #{experiment_network_forward.1} parent=1 // pred_region
      _
    $region37: #{experiment_network_forward.1} parent=1 // pred_fallthru
      _
    // Predicated region
    $region38: #{experiment_network_forward.1} parent=1 // pred_check
      _
    $region39: #{experiment_network_forward.1} parent=1 // pred_check_branch
      %49 = sbr.rel (0) target = $region41
    $region40: #{experiment_network_forward.1} parent=1 // pred_region
      _
    $region41: #{experiment_network_forward.1} parent=1 // pred_fallthru
      _
    // Predicated region
    $region42: #{experiment_network_forward.1} parent=1 // pred_check
      _
    $region43: #{experiment_network_forward.1} parent=1 // pred_check_branch
      %51 = sbr.rel (0) target = $region45
    $region44: #{experiment_network_forward.1} parent=1 // pred_region
      _
    $region45: #{experiment_network_forward.1} parent=1 // pred_fallthru
      _
    // Predicated region
    $region46: #{experiment_network_forward.1} parent=1 // pred_check
      _
    $region47: #{experiment_network_forward.1} parent=1 // pred_check_branch
      %53 = sbr.rel (0) target = $region49
    $region48: #{experiment_network_forward.1} parent=1 // pred_region
      _
    $region49: #{experiment_network_forward.1} parent=1 // pred_fallthru
      _
    // Predicated region
    $region50: #{experiment_network_forward.1} parent=1 // pred_check
      _
    $region51: #{experiment_network_forward.1} parent=1 // pred_check_branch
      %55 = sbr.rel (0) target = $region53
    $region52: #{experiment_network_forward.1} parent=1 // pred_region
      _
    $region53: #{experiment_network_forward.1} parent=1 // pred_fallthru
      _
    // Predicated region
    $region54: #{experiment_network_forward.1} parent=1 // pred_check
      _
    $region55: #{experiment_network_forward.1} parent=1 // pred_check_branch
      %57 = sbr.rel (0) target = $region57
    $region56: #{experiment_network_forward.1} parent=1 // pred_region
      %58 = dma.done [#allocation5], 3072
    $region57: #{experiment_network_forward.1} parent=1 // pred_fallthru
      _
    %v59 = vld [vmem:[%s0] sm:$0xff]
    %v60 = vld [vmem:[%s0 + $0x8] sm:$0xff]
    %v61 = vld [vmem:[%s0 + $0x10] sm:$0xff]
    %v62 = vld [vmem:[%s0 + $0x18] sm:$0xf]
    %v63 = vld [vmem:[%s1] sm:$0xff]
    %v64 = vld [vmem:[%s1 + $0x8] sm:$0xff]
    %v65 = vld [vmem:[%s1 + $0x10] sm:$0xff]
    %v66 = vld [vmem:[%s1 + $0x18] sm:$0xff]
    %v67 = vld [vmem:[%s1 + $0x20] sm:$0xff]
    %v68 = vld [vmem:[%s1 + $0x28] sm:$0xff]
    %v69 = vld [vmem:[%s1 + $0x30] sm:$0xf]
    %v70 = vld [vmem:[%s1 + $0x38] sm:$0xf]
    %s71 = scalar_lea.vmem %s1, 64
    %v72 = vld [vmem:[%s71] sm:$0xff]
    %v73 = vld [vmem:[%s71 + $0x8] sm:$0xff]
    %v74 = vld [vmem:[%s71 + $0x10] sm:$0xff]
    %v75 = vld [vmem:[%s71 + $0x18] sm:$0xff]
    %v76 = vld [vmem:[%s71 + $0x20] sm:$0xff]
    %v77 = vld [vmem:[%s71 + $0x28] sm:$0xff]
    %v78 = vld [vmem:[%s71 + $0x30] sm:$0xf]
    %v79 = vld [vmem:[%s71 + $0x38] sm:$0xf]
    %vm84 = vcmask 1046528
    %v85 = vrot.slane %v59, 1
    %v86 = vrot.slane %v60, 1
    %v87 = vsel %vm84, %v85, %v86
    %v88 = vrot.slane %v61, 1
    %v89 = vsel %vm84, %v86, %v88
    %v90 = vrot.slane %v62, 1
    %v91 = vsel %vm84, %v88, %v90
    %vm92 = vcmask 228352
    %v93 = vsel %vm92, %v87, 0
    %v95 = vsel %vm92, %v89, 0
    %v97 = vsel %vm92, %v91, 0
    %vm99 = vcmask 1043456
    %v101 = vsel %vm99, %v78, 0
    %v104 = vsel %vm99, %v79, 0
    %106 = vmatprep.subr.mxu0 %v73
    %107 = vmatpush1.msra.mxu0 %v72
    %108 = vmatprep.subr.mxu0 %v75
    %109 = vmatpush1.msra.mxu0 %v74
    %110 = vmatprep.subr.mxu0 %v77
    %111 = vmatpush1.msra.mxu0 %v76
    %112 = vmatprep.subr.mxu0 %v104
    %113 = vmatpush1.msra.mxu0 %v101
    %114 = vmatprep.subr.mxu0 0.0
    %115 = vmatpush1.msra.mxu0 0.0
    %116 = vmatprep.subr.mxu0 0.0
    %117 = vmatpush1.msra.mxu0 0.0
    %118 = vmatprep.subr.mxu0 0.0
    %119 = vmatpush1.msra.mxu0 0.0
    %120 = vmatprep.subr.mxu0 0.0
    %121 = vmatpush1.msra.mxu0 0.0
    %122 = vmatprep.subr.mxu0 0.0
    %123 = vmatpush1.msra.mxu0 0.0
    %124 = vmatprep.subr.mxu0 0.0
    %125 = vmatpush1.msra.mxu0 0.0
    %126 = vmatprep.subr.mxu0 0.0
    %127 = vmatpush1.msra.mxu0 0.0
    %128 = vmatprep.subr.mxu0 0.0
    %129 = vmatpush1.msra.mxu0 0.0
    %130 = vmatprep.subr.mxu0 0.0
    %131 = vmatpush1.msra.mxu0 0.0
    %132 = vmatprep.subr.mxu0 0.0
    %133 = vmatpush1.msra.mxu0 0.0
    %134 = vmatprep.subr.mxu0 0.0
    %135 = vmatpush1.msra.mxu0 0.0
    %136 = vmatprep.subr.mxu0 0.0
    %137 = vmatpush1.msra.mxu0 0.0
    %138 = vmatprep.subr.mxu0 0.0
    %139 = vmatpush1.msra.mxu0 0.0
    %140 = vmatprep.subr.mxu0 0.0
    %141 = vmatpush1.msra.mxu0 0.0
    %142 = vmatprep.subr.mxu0 0.0
    %143 = vmatpush1.msra.mxu0 0.0
    %144 = vmatprep.subr.mxu0 0.0
    %145 = vmatpush1.msra.mxu0 0.0
    %146 = vmatprep.subr.mxu0 0.0
    %147 = vmatpush1.msra.mxu0 0.0
    %148 = vmatprep.subr.mxu0 0.0
    %149 = vmatpush1.msra.mxu0 0.0
    %150 = vmatprep.subr.mxu0 0.0
    %151 = vmatpush1.msra.mxu0 0.0
    %152 = vmatprep.subr.mxu0 0.0
    %153 = vmatpush1.msra.mxu0 0.0
    %154 = vmatprep.subr.mxu0 0.0
    %155 = vmatpush1.msra.mxu0 0.0
    %156 = vmatprep.subr.mxu0 0.0
    %157 = vmatpush1.msra.mxu0 0.0
    %158 = vmatprep.subr.mxu0 0.0
    %159 = vmatpush1.msra.mxu0 0.0
    %160 = vmatprep.subr.mxu0 0.0
    %161 = vmatpush1.msra.mxu0 0.0
    %162 = vmatprep.subr.mxu0 0.0
    %163 = vmatpush1.msra.mxu0 0.0
    %164 = vmatprep.subr.mxu0 0.0
    %165 = vmatpush1.msra.mxu0 0.0
    %166 = vmatprep.subr.mxu0 0.0
    %167 = vmatpush1.msra.mxu0 0.0
    %168 = vmatprep.subr.mxu0 0.0
    %169 = vmatpush1.msra.mxu0 0.0
    %170 = vmatprep.mubr.f32.mxu0 0.0
    %171 = vmatmul.mubr.f32.gmra.mrb[0].mxu0 %v93
    %v172 = vpop.f32.mrb[0].mxu0
    %v173 = vadd.f32 0.0, %v172
    %v174 = vpop.f32.mrb[0].mxu0
    %v175 = vadd.f32 0.0, %v174
    %176 = vmatprep.mubr.f32.mxu0 0.0
    %177 = vmatmul.mubr.f32.gmra.mrb[0].mxu0 %v95
    %v178 = vpop.f32.mrb[0].mxu0
    %v179 = vadd.f32 0.0, %v178
    %v180 = vpop.f32.mrb[0].mxu0
    %v181 = vadd.f32 0.0, %v180
    %182 = vmatprep.mubr.f32.mxu0 0.0
    %183 = vmatmul.mubr.f32.gmra.mrb[0].mxu0 %v97
    %v184 = vpop.f32.mrb[0].mxu0
    %v185 = vadd.f32 0.0, %v184
    %v186 = vpop.f32.mrb[0].mxu0
    %v187 = vadd.f32 0.0, %v186
    %188 = vdwg.mxu0
    %v189 = vsel %vm92, %v59, 0
    %v191 = vsel %vm92, %v60, 0
    %v193 = vsel %vm92, %v61, 0
    %v196 = vsel %vm99, %v69, 0
    %v199 = vsel %vm99, %v70, 0
    %201 = vmatprep.subr.mxu0 %v64
    %202 = vmatpush1.msra.mxu0 %v63
    %203 = vmatprep.subr.mxu0 %v66
    %204 = vmatpush1.msra.mxu0 %v65
    %205 = vmatprep.subr.mxu0 %v68
    %206 = vmatpush1.msra.mxu0 %v67
    %207 = vmatprep.subr.mxu0 %v199
    %208 = vmatpush1.msra.mxu0 %v196
    %209 = vmatprep.subr.mxu0 0.0
    %210 = vmatpush1.msra.mxu0 0.0
    %211 = vmatprep.subr.mxu0 0.0
    %212 = vmatpush1.msra.mxu0 0.0
    %213 = vmatprep.subr.mxu0 0.0
    %214 = vmatpush1.msra.mxu0 0.0
    %215 = vmatprep.subr.mxu0 0.0
    %216 = vmatpush1.msra.mxu0 0.0
    %217 = vmatprep.subr.mxu0 0.0
    %218 = vmatpush1.msra.mxu0 0.0
    %219 = vmatprep.subr.mxu0 0.0
    %220 = vmatpush1.msra.mxu0 0.0
    %221 = vmatprep.subr.mxu0 0.0
    %222 = vmatpush1.msra.mxu0 0.0
    %223 = vmatprep.subr.mxu0 0.0
    %224 = vmatpush1.msra.mxu0 0.0
    %225 = vmatprep.subr.mxu0 0.0
    %226 = vmatpush1.msra.mxu0 0.0
    %227 = vmatprep.subr.mxu0 0.0
    %228 = vmatpush1.msra.mxu0 0.0
    %229 = vmatprep.subr.mxu0 0.0
    %230 = vmatpush1.msra.mxu0 0.0
    %231 = vmatprep.subr.mxu0 0.0
    %232 = vmatpush1.msra.mxu0 0.0
    %233 = vmatprep.subr.mxu0 0.0
    %234 = vmatpush1.msra.mxu0 0.0
    %235 = vmatprep.subr.mxu0 0.0
    %236 = vmatpush1.msra.mxu0 0.0
    %237 = vmatprep.subr.mxu0 0.0
    %238 = vmatpush1.msra.mxu0 0.0
    %239 = vmatprep.subr.mxu0 0.0
    %240 = vmatpush1.msra.mxu0 0.0
    %241 = vmatprep.subr.mxu0 0.0
    %242 = vmatpush1.msra.mxu0 0.0
    %243 = vmatprep.subr.mxu0 0.0
    %244 = vmatpush1.msra.mxu0 0.0
    %245 = vmatprep.subr.mxu0 0.0
    %246 = vmatpush1.msra.mxu0 0.0
    %247 = vmatprep.subr.mxu0 0.0
    %248 = vmatpush1.msra.mxu0 0.0
    %249 = vmatprep.subr.mxu0 0.0
    %250 = vmatpush1.msra.mxu0 0.0
    %251 = vmatprep.subr.mxu0 0.0
    %252 = vmatpush1.msra.mxu0 0.0
    %253 = vmatprep.subr.mxu0 0.0
    %254 = vmatpush1.msra.mxu0 0.0
    %255 = vmatprep.subr.mxu0 0.0
    %256 = vmatpush1.msra.mxu0 0.0
    %257 = vmatprep.subr.mxu0 0.0
    %258 = vmatpush1.msra.mxu0 0.0
    %259 = vmatprep.subr.mxu0 0.0
    %260 = vmatpush1.msra.mxu0 0.0
    %261 = vmatprep.subr.mxu0 0.0
    %262 = vmatpush1.msra.mxu0 0.0
    %263 = vmatprep.subr.mxu0 0.0
    %264 = vmatpush1.msra.mxu0 0.0
    %265 = vmatprep.mubr.f32.mxu0 0.0
    %266 = vmatmul.mubr.f32.gmra.mrb[0].mxu0 %v189
    %v267 = vpop.f32.mrb[0].mxu0
    %v268 = vadd.f32 %v173, %v267
    %v269 = vpop.f32.mrb[0].mxu0
    %v270 = vadd.f32 %v175, %v269
    %271 = vmatprep.mubr.f32.mxu0 0.0
    %272 = vmatmul.mubr.f32.gmra.mrb[0].mxu0 %v191
    %v273 = vpop.f32.mrb[0].mxu0
    %v274 = vadd.f32 %v179, %v273
    %v275 = vpop.f32.mrb[0].mxu0
    %v276 = vadd.f32 %v181, %v275
    %277 = vmatprep.mubr.f32.mxu0 0.0
    %278 = vmatmul.mubr.f32.gmra.mrb[0].mxu0 %v193
    %v279 = vpop.f32.mrb[0].mxu0
    %v280 = vadd.f32 %v185, %v279
    %v281 = vpop.f32.mrb[0].mxu0
    %v282 = vadd.f32 %v187, %v281
    %283 = vdwg.mxu0
    %s284 = scalar_lea.vmem %s1, 128
    %v285 = vld [vmem:[%s284] sm:$0xff]
    %v286 = vld [vmem:[%s284 + $0x8] sm:$0xff]
    %v287 = vld [vmem:[%s284 + $0x10] sm:$0xff]
    %v288 = vld [vmem:[%s284 + $0x18] sm:$0xff]
    %v289 = vld [vmem:[%s284 + $0x20] sm:$0xff]
    %v290 = vld [vmem:[%s284 + $0x28] sm:$0xff]
    %v291 = vld [vmem:[%s284 + $0x30] sm:$0xf]
    %v292 = vld [vmem:[%s284 + $0x38] sm:$0xf]
    %vm293 = vcmask 1045504
    %v294 = vrot.slane %v59, 2
    %v295 = vrot.slane %v60, 2
    %v296 = vsel %vm293, %v294, %v295
    %v297 = vrot.slane %v61, 2
    %v298 = vsel %vm293, %v295, %v297
    %v299 = vrot.slane %v62, 2
    %v300 = vsel %vm293, %v297, %v299
    %v301 = vsel %vm92, %v296, 0
    %v303 = vsel %vm92, %v298, 0
    %v305 = vsel %vm92, %v300, 0
    %v308 = vsel %vm99, %v291, 0
    %v311 = vsel %vm99, %v292, 0
    %313 = vmatprep.subr.mxu0 %v286
    %314 = vmatpush1.msra.mxu0 %v285
    %315 = vmatprep.subr.mxu0 %v288
    %316 = vmatpush1.msra.mxu0 %v287
    %317 = vmatprep.subr.mxu0 %v290
    %318 = vmatpush1.msra.mxu0 %v289
    %319 = vmatprep.subr.mxu0 %v311
    %320 = vmatpush1.msra.mxu0 %v308
    %321 = vmatprep.subr.mxu0 0.0
    %322 = vmatpush1.msra.mxu0 0.0
    %323 = vmatprep.subr.mxu0 0.0
    %324 = vmatpush1.msra.mxu0 0.0
    %325 = vmatprep.subr.mxu0 0.0
    %326 = vmatpush1.msra.mxu0 0.0
    %327 = vmatprep.subr.mxu0 0.0
    %328 = vmatpush1.msra.mxu0 0.0
    %329 = vmatprep.subr.mxu0 0.0
    %330 = vmatpush1.msra.mxu0 0.0
    %331 = vmatprep.subr.mxu0 0.0
    %332 = vmatpush1.msra.mxu0 0.0
    %333 = vmatprep.subr.mxu0 0.0
    %334 = vmatpush1.msra.mxu0 0.0
    %335 = vmatprep.subr.mxu0 0.0
    %336 = vmatpush1.msra.mxu0 0.0
    %337 = vmatprep.subr.mxu0 0.0
    %338 = vmatpush1.msra.mxu0 0.0
    %339 = vmatprep.subr.mxu0 0.0
    %340 = vmatpush1.msra.mxu0 0.0
    %341 = vmatprep.subr.mxu0 0.0
    %342 = vmatpush1.msra.mxu0 0.0
    %343 = vmatprep.subr.mxu0 0.0
    %344 = vmatpush1.msra.mxu0 0.0
    %345 = vmatprep.subr.mxu0 0.0
    %346 = vmatpush1.msra.mxu0 0.0
    %347 = vmatprep.subr.mxu0 0.0
    %348 = vmatpush1.msra.mxu0 0.0
    %349 = vmatprep.subr.mxu0 0.0
    %350 = vmatpush1.msra.mxu0 0.0
    %351 = vmatprep.subr.mxu0 0.0
    %352 = vmatpush1.msra.mxu0 0.0
    %353 = vmatprep.subr.mxu0 0.0
    %354 = vmatpush1.msra.mxu0 0.0
    %355 = vmatprep.subr.mxu0 0.0
    %356 = vmatpush1.msra.mxu0 0.0
    %357 = vmatprep.subr.mxu0 0.0
    %358 = vmatpush1.msra.mxu0 0.0
    %359 = vmatprep.subr.mxu0 0.0
    %360 = vmatpush1.msra.mxu0 0.0
    %361 = vmatprep.subr.mxu0 0.0
    %362 = vmatpush1.msra.mxu0 0.0
    %363 = vmatprep.subr.mxu0 0.0
    %364 = vmatpush1.msra.mxu0 0.0
    %365 = vmatprep.subr.mxu0 0.0
    %366 = vmatpush1.msra.mxu0 0.0
    %367 = vmatprep.subr.mxu0 0.0
    %368 = vmatpush1.msra.mxu0 0.0
    %369 = vmatprep.subr.mxu0 0.0
    %370 = vmatpush1.msra.mxu0 0.0
    %371 = vmatprep.subr.mxu0 0.0
    %372 = vmatpush1.msra.mxu0 0.0
    %373 = vmatprep.subr.mxu0 0.0
    %374 = vmatpush1.msra.mxu0 0.0
    %375 = vmatprep.subr.mxu0 0.0
    %376 = vmatpush1.msra.mxu0 0.0
    %377 = vmatprep.mubr.f32.mxu0 0.0
    %378 = vmatmul.mubr.f32.gmra.mrb[0].mxu0 %v301
    %v379 = vpop.f32.mrb[0].mxu0
    %v380 = vadd.f32 0.0, %v379
    %v381 = vpop.f32.mrb[0].mxu0
    %v382 = vadd.f32 0.0, %v381
    %383 = vmatprep.mubr.f32.mxu0 0.0
    %384 = vmatmul.mubr.f32.gmra.mrb[0].mxu0 %v303
    %v385 = vpop.f32.mrb[0].mxu0
    %v386 = vadd.f32 0.0, %v385
    %v387 = vpop.f32.mrb[0].mxu0
    %v388 = vadd.f32 0.0, %v387
    %389 = vmatprep.mubr.f32.mxu0 0.0
    %390 = vmatmul.mubr.f32.gmra.mrb[0].mxu0 %v305
    %v391 = vpop.f32.mrb[0].mxu0
    %v392 = vadd.f32 0.0, %v391
    %v393 = vpop.f32.mrb[0].mxu0
    %v394 = vadd.f32 0.0, %v393
    %395 = vdwg.mxu0
    %v396 = vadd.f32 %v268, %v380
    %v397 = vadd.f32 %v270, %v382
    %v398 = vadd.f32 %v274, %v386
    %v399 = vadd.f32 %v276, %v388
    %v400 = vadd.f32 %v280, %v392
    %v401 = vadd.f32 %v282, %v394
    %s402 = scalar_lea.vmem %s1, 192
    %v403 = vld [vmem:[%s402] sm:$0xff]
    %v404 = vld [vmem:[%s402 + $0x8] sm:$0xff]
    %v405 = vld [vmem:[%s402 + $0x10] sm:$0xff]
    %v406 = vld [vmem:[%s402 + $0x18] sm:$0xff]
    %v407 = vld [vmem:[%s402 + $0x20] sm:$0xff]
    %v408 = vld [vmem:[%s402 + $0x28] sm:$0xff]
    %v409 = vld [vmem:[%s402 + $0x30] sm:$0xf]
    %v410 = vld [vmem:[%s402 + $0x38] sm:$0xf]
    %vm411 = vcmask 1044480
    %v412 = vrot.slane %v59, 3
    %v413 = vrot.slane %v60, 3
    %v414 = vsel %vm411, %v412, %v413
    %v415 = vrot.slane %v61, 3
    %v416 = vsel %vm411, %v413, %v415
    %v417 = vrot.slane %v62, 3
    %v418 = vsel %vm411, %v415, %v417
    %v419 = vsel %vm92, %v414, 0
    %v421 = vsel %vm92, %v416, 0
    %v423 = vsel %vm92, %v418, 0
    %v426 = vsel %vm99, %v409, 0
    %v429 = vsel %vm99, %v410, 0
    %431 = vmatprep.subr.mxu0 %v404
    %432 = vmatpush1.msra.mxu0 %v403
    %433 = vmatprep.subr.mxu0 %v406
    %434 = vmatpush1.msra.mxu0 %v405
    %435 = vmatprep.subr.mxu0 %v408
    %436 = vmatpush1.msra.mxu0 %v407
    %437 = vmatprep.subr.mxu0 %v429
    %438 = vmatpush1.msra.mxu0 %v426
    %439 = vmatprep.subr.mxu0 0.0
    %440 = vmatpush1.msra.mxu0 0.0
    %441 = vmatprep.subr.mxu0 0.0
    %442 = vmatpush1.msra.mxu0 0.0
    %443 = vmatprep.subr.mxu0 0.0
    %444 = vmatpush1.msra.mxu0 0.0
    %445 = vmatprep.subr.mxu0 0.0
    %446 = vmatpush1.msra.mxu0 0.0
    %447 = vmatprep.subr.mxu0 0.0
    %448 = vmatpush1.msra.mxu0 0.0
    %449 = vmatprep.subr.mxu0 0.0
    %450 = vmatpush1.msra.mxu0 0.0
    %451 = vmatprep.subr.mxu0 0.0
    %452 = vmatpush1.msra.mxu0 0.0
    %453 = vmatprep.subr.mxu0 0.0
    %454 = vmatpush1.msra.mxu0 0.0
    %455 = vmatprep.subr.mxu0 0.0
    %456 = vmatpush1.msra.mxu0 0.0
    %457 = vmatprep.subr.mxu0 0.0
    %458 = vmatpush1.msra.mxu0 0.0
    %459 = vmatprep.subr.mxu0 0.0
    %460 = vmatpush1.msra.mxu0 0.0
    %461 = vmatprep.subr.mxu0 0.0
    %462 = vmatpush1.msra.mxu0 0.0
    %463 = vmatprep.subr.mxu0 0.0
    %464 = vmatpush1.msra.mxu0 0.0
    %465 = vmatprep.subr.mxu0 0.0
    %466 = vmatpush1.msra.mxu0 0.0
    %467 = vmatprep.subr.mxu0 0.0
    %468 = vmatpush1.msra.mxu0 0.0
    %469 = vmatprep.subr.mxu0 0.0
    %470 = vmatpush1.msra.mxu0 0.0
    %471 = vmatprep.subr.mxu0 0.0
    %472 = vmatpush1.msra.mxu0 0.0
    %473 = vmatprep.subr.mxu0 0.0
    %474 = vmatpush1.msra.mxu0 0.0
    %475 = vmatprep.subr.mxu0 0.0
    %476 = vmatpush1.msra.mxu0 0.0
    %477 = vmatprep.subr.mxu0 0.0
    %478 = vmatpush1.msra.mxu0 0.0
    %479 = vmatprep.subr.mxu0 0.0
    %480 = vmatpush1.msra.mxu0 0.0
    %481 = vmatprep.subr.mxu0 0.0
    %482 = vmatpush1.msra.mxu0 0.0
    %483 = vmatprep.subr.mxu0 0.0
    %484 = vmatpush1.msra.mxu0 0.0
    %485 = vmatprep.subr.mxu0 0.0
    %486 = vmatpush1.msra.mxu0 0.0
    %487 = vmatprep.subr.mxu0 0.0
    %488 = vmatpush1.msra.mxu0 0.0
    %489 = vmatprep.subr.mxu0 0.0
    %490 = vmatpush1.msra.mxu0 0.0
    %491 = vmatprep.subr.mxu0 0.0
    %492 = vmatpush1.msra.mxu0 0.0
    %493 = vmatprep.subr.mxu0 0.0
    %494 = vmatpush1.msra.mxu0 0.0
    %495 = vmatprep.mubr.f32.mxu0 0.0
    %496 = vmatmul.mubr.f32.gmra.mrb[0].mxu0 %v419
    %v497 = vpop.f32.mrb[0].mxu0
    %v498 = vadd.f32 0.0, %v497
    %v499 = vpop.f32.mrb[0].mxu0
    %v500 = vadd.f32 0.0, %v499
    %501 = vmatprep.mubr.f32.mxu0 0.0
    %502 = vmatmul.mubr.f32.gmra.mrb[0].mxu0 %v421
    %v503 = vpop.f32.mrb[0].mxu0
    %v504 = vadd.f32 0.0, %v503
    %v505 = vpop.f32.mrb[0].mxu0
    %v506 = vadd.f32 0.0, %v505
    %507 = vmatprep.mubr.f32.mxu0 0.0
    %508 = vmatmul.mubr.f32.gmra.mrb[0].mxu0 %v423
    %v509 = vpop.f32.mrb[0].mxu0
    %v510 = vadd.f32 0.0, %v509
    %v511 = vpop.f32.mrb[0].mxu0
    %v512 = vadd.f32 0.0, %v511
    %513 = vdwg.mxu0
    %v514 = vadd.f32 %v396, %v498
    %v515 = vadd.f32 %v397, %v500
    %v516 = vadd.f32 %v398, %v504
    %v517 = vadd.f32 %v399, %v506
    %v518 = vadd.f32 %v400, %v510
    %v519 = vadd.f32 %v401, %v512
    %s520 = scalar_lea.vmem %s1, 256
    %v521 = vld [vmem:[%s520] sm:$0xff]
    %v522 = vld [vmem:[%s520 + $0x8] sm:$0xff]
    %v523 = vld [vmem:[%s520 + $0x10] sm:$0xff]
    %v524 = vld [vmem:[%s520 + $0x18] sm:$0xff]
    %v525 = vld [vmem:[%s520 + $0x20] sm:$0xff]
    %v526 = vld [vmem:[%s520 + $0x28] sm:$0xff]
    %v527 = vld [vmem:[%s520 + $0x30] sm:$0xf]
    %v528 = vld [vmem:[%s520 + $0x38] sm:$0xf]
    %v529 = vrot.slane %v59, 4
    %v530 = vrot.slane %v60, 4
    %v531 = vsel %vm99, %v529, %v530
    %v532 = vrot.slane %v61, 4
    %v533 = vsel %vm99, %v530, %v532
    %v534 = vrot.slane %v62, 4
    %v535 = vsel %vm99, %v532, %v534
    %v536 = vsel %vm92, %v531, 0
    %v538 = vsel %vm92, %v533, 0
    %v540 = vsel %vm92, %v535, 0
    %v543 = vsel %vm99, %v527, 0
    %v546 = vsel %vm99, %v528, 0
    %548 = vmatprep.subr.mxu0 %v522
    %549 = vmatpush1.msra.mxu0 %v521
    %550 = vmatprep.subr.mxu0 %v524
    %551 = vmatpush1.msra.mxu0 %v523
    %552 = vmatprep.subr.mxu0 %v526
    %553 = vmatpush1.msra.mxu0 %v525
    %554 = vmatprep.subr.mxu0 %v546
    %555 = vmatpush1.msra.mxu0 %v543
    %556 = vmatprep.subr.mxu0 0.0
    %557 = vmatpush1.msra.mxu0 0.0
    %558 = vmatprep.subr.mxu0 0.0
    %559 = vmatpush1.msra.mxu0 0.0
    %560 = vmatprep.subr.mxu0 0.0
    %561 = vmatpush1.msra.mxu0 0.0
    %562 = vmatprep.subr.mxu0 0.0
    %563 = vmatpush1.msra.mxu0 0.0
    %564 = vmatprep.subr.mxu0 0.0
    %565 = vmatpush1.msra.mxu0 0.0
    %566 = vmatprep.subr.mxu0 0.0
    %567 = vmatpush1.msra.mxu0 0.0
    %568 = vmatprep.subr.mxu0 0.0
    %569 = vmatpush1.msra.mxu0 0.0
    %570 = vmatprep.subr.mxu0 0.0
    %571 = vmatpush1.msra.mxu0 0.0
    %572 = vmatprep.subr.mxu0 0.0
    %573 = vmatpush1.msra.mxu0 0.0
    %574 = vmatprep.subr.mxu0 0.0
    %575 = vmatpush1.msra.mxu0 0.0
    %576 = vmatprep.subr.mxu0 0.0
    %577 = vmatpush1.msra.mxu0 0.0
    %578 = vmatprep.subr.mxu0 0.0
    %579 = vmatpush1.msra.mxu0 0.0
    %580 = vmatprep.subr.mxu0 0.0
    %581 = vmatpush1.msra.mxu0 0.0
    %582 = vmatprep.subr.mxu0 0.0
    %583 = vmatpush1.msra.mxu0 0.0
    %584 = vmatprep.subr.mxu0 0.0
    %585 = vmatpush1.msra.mxu0 0.0
    %586 = vmatprep.subr.mxu0 0.0
    %587 = vmatpush1.msra.mxu0 0.0
    %588 = vmatprep.subr.mxu0 0.0
    %589 = vmatpush1.msra.mxu0 0.0
    %590 = vmatprep.subr.mxu0 0.0
    %591 = vmatpush1.msra.mxu0 0.0
    %592 = vmatprep.subr.mxu0 0.0
    %593 = vmatpush1.msra.mxu0 0.0
    %594 = vmatprep.subr.mxu0 0.0
    %595 = vmatpush1.msra.mxu0 0.0
    %596 = vmatprep.subr.mxu0 0.0
    %597 = vmatpush1.msra.mxu0 0.0
    %598 = vmatprep.subr.mxu0 0.0
    %599 = vmatpush1.msra.mxu0 0.0
    %600 = vmatprep.subr.mxu0 0.0
    %601 = vmatpush1.msra.mxu0 0.0
    %602 = vmatprep.subr.mxu0 0.0
    %603 = vmatpush1.msra.mxu0 0.0
    %604 = vmatprep.subr.mxu0 0.0
    %605 = vmatpush1.msra.mxu0 0.0
    %606 = vmatprep.subr.mxu0 0.0
    %607 = vmatpush1.msra.mxu0 0.0
    %608 = vmatprep.subr.mxu0 0.0
    %609 = vmatpush1.msra.mxu0 0.0
    %610 = vmatprep.subr.mxu0 0.0
    %611 = vmatpush1.msra.mxu0 0.0
    %612 = vmatprep.mubr.f32.mxu0 0.0
    %613 = vmatmul.mubr.f32.gmra.mrb[0].mxu0 %v536
    %v614 = vpop.f32.mrb[0].mxu0
    %v615 = vadd.f32 0.0, %v614
    %v616 = vpop.f32.mrb[0].mxu0
    %v617 = vadd.f32 0.0, %v616
    %618 = vmatprep.mubr.f32.mxu0 0.0
    %619 = vmatmul.mubr.f32.gmra.mrb[0].mxu0 %v538
    %v620 = vpop.f32.mrb[0].mxu0
    %v621 = vadd.f32 0.0, %v620
    %v622 = vpop.f32.mrb[0].mxu0
    %v623 = vadd.f32 0.0, %v622
    %624 = vmatprep.mubr.f32.mxu0 0.0
    %625 = vmatmul.mubr.f32.gmra.mrb[0].mxu0 %v540
    %v626 = vpop.f32.mrb[0].mxu0
    %v627 = vadd.f32 0.0, %v626
    %v628 = vpop.f32.mrb[0].mxu0
    %v629 = vadd.f32 0.0, %v628
    %630 = vdwg.mxu0
    %v631 = vadd.f32 %v514, %v615
    %v632 = vadd.f32 %v515, %v617
    %v633 = vadd.f32 %v516, %v621
    %v634 = vadd.f32 %v517, %v623
    %v635 = vadd.f32 %v518, %v627
    %v636 = vadd.f32 %v519, %v629
    %v637 = vld [vmem:[%s2] sm:$0x3]
    %v639 = vlaneseq
    %v640 = vshrl.u32 %v639, 7
    %v641 = vsub.s32 0, %v640
    %v642 = vrot.slane %v637, %v641
    %v643 = vlaneseq
    %v644 = vshrl.u32 %v643, 7
    %v645 = vsub.s32 1, %v644
    %v646 = vrot.slane %v637, %v645
    %v649 = vadd.f32 %v631, %v642
    %v650 = vadd.f32 %v632, %v646
    %v651 = vadd.f32 %v633, %v642
    %v652 = vadd.f32 %v634, %v646
    %v653 = vadd.f32 %v635, %v642
    %v654 = vadd.f32 %v636, %v646
    %v655 = vld [vmem:[%s3] sm:$0xff]
    %v656 = vld [vmem:[%s3 + $0x8] sm:$0xff]
    %v657 = vld [vmem:[%s3 + $0x10] sm:$0xff]
    %v658 = vld [vmem:[%s3 + $0x18] sm:$0xff]
    %v659 = vld [vmem:[%s3 + $0x20] sm:$0xff]
    %v660 = vld [vmem:[%s3 + $0x28] sm:$0xff]
    %v661 = vld [vmem:[%s3 + $0x30] sm:$0xff]
    %v662 = vld [vmem:[%s3 + $0x38] sm:$0xff]
    %v663 = vld [vmem:[%s3 + $0x40] sm:$0xff]
    %v664 = vld [vmem:[%s3 + $0x48] sm:$0xff]
    %v665 = vld [vmem:[%s3 + $0x50] sm:$0xff]
    %v666 = vld [vmem:[%s3 + $0x58] sm:$0xff]
    %v667 = vld [vmem:[%s3 + $0x60] sm:$0xff]
    %v668 = vld [vmem:[%s3 + $0x68] sm:$0xff]
    %v669 = vld [vmem:[%s3 + $0x70] sm:$0xff]
    %v670 = vld [vmem:[%s3 + $0x78] sm:$0xff]
    %v671 = vld [vmem:[%s3 + $0x80] sm:$0xff]
    %v672 = vld [vmem:[%s3 + $0x88] sm:$0xff]
    %v673 = vld [vmem:[%s3 + $0x90] sm:$0xff]
    %v674 = vld [vmem:[%s3 + $0x98] sm:$0xff]
    %v675 = vld [vmem:[%s3 + $0xa0] sm:$0xff]
    %v676 = vld [vmem:[%s3 + $0xa8] sm:$0xff]
    %v677 = vld [vmem:[%s3 + $0xb0] sm:$0xff]
    %v678 = vld [vmem:[%s3 + $0xb8] sm:$0xff]
    %vm679 = vcmask 523264
    %v681 = vsel %vm679, %v650, 0
    %v684 = vsel %vm679, %v652, 0
    %v687 = vsel %vm679, %v654, 0
    %689 = vmatprep.subr.mxu0 0.0
    %690 = vmatpush1.msra.mxu0 %v655
    %691 = vmatprep.subr.mxu0 0.0
    %692 = vmatpush1.msra.mxu0 %v656
    %693 = vmatprep.subr.mxu0 0.0
    %694 = vmatpush1.msra.mxu0 %v657
    %695 = vmatprep.subr.mxu0 0.0
    %696 = vmatpush1.msra.mxu0 %v658
    %697 = vmatprep.subr.mxu0 0.0
    %698 = vmatpush1.msra.mxu0 %v659
    %699 = vmatprep.subr.mxu0 0.0
    %700 = vmatpush1.msra.mxu0 %v660
    %701 = vmatprep.subr.mxu0 0.0
    %702 = vmatpush1.msra.mxu0 %v661
    %703 = vmatprep.subr.mxu0 0.0
    %704 = vmatpush1.msra.mxu0 %v662
    %705 = vmatprep.subr.mxu0 0.0
    %706 = vmatpush1.msra.mxu0 %v663
    %707 = vmatprep.subr.mxu0 0.0
    %708 = vmatpush1.msra.mxu0 %v664
    %709 = vmatprep.subr.mxu0 0.0
    %710 = vmatpush1.msra.mxu0 %v665
    %711 = vmatprep.subr.mxu0 0.0
    %712 = vmatpush1.msra.mxu0 %v666
    %713 = vmatprep.subr.mxu0 0.0
    %714 = vmatpush1.msra.mxu0 %v667
    %715 = vmatprep.subr.mxu0 0.0
    %716 = vmatpush1.msra.mxu0 %v668
    %717 = vmatprep.subr.mxu0 0.0
    %718 = vmatpush1.msra.mxu0 %v669
    %719 = vmatprep.subr.mxu0 0.0
    %720 = vmatpush1.msra.mxu0 %v670
    %721 = vmatprep.subr.mxu0 0.0
    %722 = vmatpush1.msra.mxu0 %v671
    %723 = vmatprep.subr.mxu0 0.0
    %724 = vmatpush1.msra.mxu0 %v672
    %725 = vmatprep.subr.mxu0 0.0
    %726 = vmatpush1.msra.mxu0 %v673
    %727 = vmatprep.subr.mxu0 0.0
    %728 = vmatpush1.msra.mxu0 %v674
    %729 = vmatprep.subr.mxu0 0.0
    %730 = vmatpush1.msra.mxu0 %v675
    %731 = vmatprep.subr.mxu0 0.0
    %732 = vmatpush1.msra.mxu0 %v676
    %733 = vmatprep.subr.mxu0 0.0
    %734 = vmatpush1.msra.mxu0 %v677
    %735 = vmatprep.subr.mxu0 0.0
    %736 = vmatpush1.msra.mxu0 %v678
    %737 = vmatprep.subr.mxu0 0.0
    %738 = vmatpush1.msra.mxu0 0.0
    %739 = vmatprep.subr.mxu0 0.0
    %740 = vmatpush1.msra.mxu0 0.0
    %741 = vmatprep.subr.mxu0 0.0
    %742 = vmatpush1.msra.mxu0 0.0
    %743 = vmatprep.subr.mxu0 0.0
    %744 = vmatpush1.msra.mxu0 0.0
    %745 = vmatprep.subr.mxu0 0.0
    %746 = vmatpush1.msra.mxu0 0.0
    %747 = vmatprep.subr.mxu0 0.0
    %748 = vmatpush1.msra.mxu0 0.0
    %749 = vmatprep.subr.mxu0 0.0
    %750 = vmatpush1.msra.mxu0 0.0
    %751 = vmatprep.subr.mxu0 0.0
    %752 = vmatpush1.msra.mxu0 0.0
    %753 = vmatprep.mubr.f32.mxu0 %v681
    %754 = vmatmul.mubr.f32.gmra.mrb[0].mxu0 %v649
    %v755 = vpop.f32.mrb[0].mxu0
    %v756 = vadd.f32 0.0, %v755
    %v757 = vpop.f32.mrb[0].mxu0
    %758 = vmatprep.mubr.f32.mxu0 %v684
    %759 = vmatmul.mubr.f32.gmra.mrb[0].mxu0 %v651
    %v760 = vpop.f32.mrb[0].mxu0
    %v761 = vadd.f32 0.0, %v760
    %v762 = vpop.f32.mrb[0].mxu0
    %763 = vmatprep.mubr.f32.mxu0 %v687
    %764 = vmatmul.mubr.f32.gmra.mrb[0].mxu0 %v653
    %v765 = vpop.f32.mrb[0].mxu0
    %v766 = vadd.f32 0.0, %v765
    %v767 = vpop.f32.mrb[0].mxu0
    %768 = vdwg.mxu0
    %v769 = vld [vmem:[#allocation4] sm:$0xff]
    %v770 = vld [vmem:[#allocation4 + $0x8] sm:$0xff]
    %v771 = vld [vmem:[#allocation4 + $0x10] sm:$0xff]
    %v772 = vld [vmem:[#allocation4 + $0x18] sm:$0xff]
    %v773 = vld [vmem:[#allocation4 + $0x20] sm:$0xff]
    %v774 = vld [vmem:[#allocation4 + $0x28] sm:$0xff]
    %v775 = vld [vmem:[#allocation4 + $0x30] sm:$0xff]
    %v776 = vld [vmem:[#allocation4 + $0x38] sm:$0xff]
    %v777 = vld [vmem:[#allocation4 + $0x40] sm:$0xff]
    %v778 = vld [vmem:[#allocation4 + $0x48] sm:$0xff]
    %v779 = vld [vmem:[#allocation4 + $0x50] sm:$0xff]
    %v780 = vld [vmem:[#allocation4 + $0x58] sm:$0xff]
    %v781 = vld [vmem:[#allocation4 + $0x60] sm:$0xff]
    %v782 = vld [vmem:[#allocation4 + $0x68] sm:$0xff]
    %v783 = vld [vmem:[#allocation4 + $0x70] sm:$0xff]
    %v784 = vld [vmem:[#allocation4 + $0x78] sm:$0xff]
    %v785 = vld [vmem:[#allocation4 + $0x80] sm:$0xff]
    %v786 = vld [vmem:[#allocation4 + $0x88] sm:$0xff]
    %v787 = vld [vmem:[#allocation4 + $0x90] sm:$0xff]
    %v788 = vld [vmem:[#allocation4 + $0x98] sm:$0xff]
    %v789 = vld [vmem:[#allocation4 + $0xa0] sm:$0xff]
    %v790 = vld [vmem:[#allocation4 + $0xa8] sm:$0xff]
    %v791 = vld [vmem:[#allocation4 + $0xb0] sm:$0xff]
    %v792 = vld [vmem:[#allocation4 + $0xb8] sm:$0xff]
    %793 = vmatprep.subr.mxu0 0.0
    %794 = vmatpush1.msra.mxu0 %v769
    %795 = vmatprep.subr.mxu0 0.0
    %796 = vmatpush1.msra.mxu0 %v770
    %797 = vmatprep.subr.mxu0 0.0
    %798 = vmatpush1.msra.mxu0 %v771
    %799 = vmatprep.subr.mxu0 0.0
    %800 = vmatpush1.msra.mxu0 %v772
    %801 = vmatprep.subr.mxu0 0.0
    %802 = vmatpush1.msra.mxu0 %v773
    %803 = vmatprep.subr.mxu0 0.0
    %804 = vmatpush1.msra.mxu0 %v774
    %805 = vmatprep.subr.mxu0 0.0
    %806 = vmatpush1.msra.mxu0 %v775
    %807 = vmatprep.subr.mxu0 0.0
    %808 = vmatpush1.msra.mxu0 %v776
    %809 = vmatprep.subr.mxu0 0.0
    %810 = vmatpush1.msra.mxu0 %v777
    %811 = vmatprep.subr.mxu0 0.0
    %812 = vmatpush1.msra.mxu0 %v778
    %813 = vmatprep.subr.mxu0 0.0
    %814 = vmatpush1.msra.mxu0 %v779
    %815 = vmatprep.subr.mxu0 0.0
    %816 = vmatpush1.msra.mxu0 %v780
    %817 = vmatprep.subr.mxu0 0.0
    %818 = vmatpush1.msra.mxu0 %v781
    %819 = vmatprep.subr.mxu0 0.0
    %820 = vmatpush1.msra.mxu0 %v782
    %821 = vmatprep.subr.mxu0 0.0
    %822 = vmatpush1.msra.mxu0 %v783
    %823 = vmatprep.subr.mxu0 0.0
    %824 = vmatpush1.msra.mxu0 %v784
    %825 = vmatprep.subr.mxu0 0.0
    %826 = vmatpush1.msra.mxu0 %v785
    %827 = vmatprep.subr.mxu0 0.0
    %828 = vmatpush1.msra.mxu0 %v786
    %829 = vmatprep.subr.mxu0 0.0
    %830 = vmatpush1.msra.mxu0 %v787
    %831 = vmatprep.subr.mxu0 0.0
    %832 = vmatpush1.msra.mxu0 %v788
    %833 = vmatprep.subr.mxu0 0.0
    %834 = vmatpush1.msra.mxu0 %v789
    %835 = vmatprep.subr.mxu0 0.0
    %836 = vmatpush1.msra.mxu0 %v790
    %837 = vmatprep.subr.mxu0 0.0
    %838 = vmatpush1.msra.mxu0 %v791
    %839 = vmatprep.subr.mxu0 0.0
    %840 = vmatpush1.msra.mxu0 %v792
    %841 = vmatprep.subr.mxu0 0.0
    %842 = vmatpush1.msra.mxu0 0.0
    %843 = vmatprep.subr.mxu0 0.0
    %844 = vmatpush1.msra.mxu0 0.0
    %845 = vmatprep.subr.mxu0 0.0
    %846 = vmatpush1.msra.mxu0 0.0
    %847 = vmatprep.subr.mxu0 0.0
    %848 = vmatpush1.msra.mxu0 0.0
    %849 = vmatprep.subr.mxu0 0.0
    %850 = vmatpush1.msra.mxu0 0.0
    %851 = vmatprep.subr.mxu0 0.0
    %852 = vmatpush1.msra.mxu0 0.0
    %853 = vmatprep.subr.mxu0 0.0
    %854 = vmatpush1.msra.mxu0 0.0
    %855 = vmatprep.subr.mxu0 0.0
    %856 = vmatpush1.msra.mxu0 0.0
    %857 = vmatprep.mubr.f32.mxu0 %v681
    %858 = vmatmul.mubr.f32.gmra.mrb[0].mxu0 %v649
    %v859 = vpop.f32.mrb[0].mxu0
    %v860 = vadd.f32 0.0, %v859
    %v861 = vpop.f32.mrb[0].mxu0
    %862 = vmatprep.mubr.f32.mxu0 %v684
    %863 = vmatmul.mubr.f32.gmra.mrb[0].mxu0 %v651
    %v864 = vpop.f32.mrb[0].mxu0
    %v865 = vadd.f32 0.0, %v864
    %v866 = vpop.f32.mrb[0].mxu0
    %867 = vmatprep.mubr.f32.mxu0 %v687
    %868 = vmatmul.mubr.f32.gmra.mrb[0].mxu0 %v653
    %v869 = vpop.f32.mrb[0].mxu0
    %v870 = vadd.f32 0.0, %v869
    %v871 = vpop.f32.mrb[0].mxu0
    %872 = vdwg.mxu0
    %v873 = vmax.f32 %v756, %v860
    %v874 = vmax.f32 %v761, %v865
    %v875 = vmax.f32 %v766, %v870
    %vm876 = vcmask 785408
    %877 = vst.msk [vmem:[#allocation2] sm:$0xff] %vm876, %v873
    %878 = vst.msk [vmem:[#allocation2 + $0x8] sm:$0xff] %vm876, %v874
    %879 = vst.msk [vmem:[#allocation2 + $0x10] sm:$0xff] %vm876, %v875
    %v880 = vld [vmem:[#allocation2] ss:$2 sm:$0xff]
    %s881 = scalar_lea.vmem [#allocation2], 16
    %v882 = vld [vmem:[%s881] ss:$2 sm:$0xf]
    %s883 = scalar_lea.vmem [#allocation2], 1
    %v884 = vld [vmem:[%s883] ss:$2 sm:$0xff]
    %s885 = scalar_lea.vmem [#allocation2], 17
    %v886 = vld [vmem:[%s885] ss:$2 sm:$0xf]
    %v887 = vmax.f32 %v880, %v884
    %v888 = vmax.f32 %v882, %v886
    %v889 = vmax.f32 %v887, 0.0
    %v890 = vmax.f32 %v888, 0.0
    %v891 = vld [vmem:[%s5] sm:$0xff]
    %v892 = vld [vmem:[%s5 + $0x8] sm:$0xff]
    %v893 = vld [vmem:[%s5 + $0x10] sm:$0xff]
    %v894 = vld [vmem:[%s5 + $0x18] sm:$0xff]
    %v895 = vld [vmem:[%s5 + $0x20] sm:$0xff]
    %v896 = vld [vmem:[%s5 + $0x28] sm:$0xff]
    %v897 = vld [vmem:[%s5 + $0x30] sm:$0xff]
    %v898 = vld [vmem:[%s5 + $0x38] sm:$0xff]
    %v899 = vld [vmem:[%s5 + $0x40] sm:$0xff]
    %v900 = vld [vmem:[%s5 + $0x48] sm:$0xff]
    %v901 = vld [vmem:[%s5 + $0x50] sm:$0xff]
    %v902 = vld [vmem:[%s5 + $0x58] sm:$0xff]
    %s903 = scalar_lea.vmem %s5, 96
    %v904 = vld [vmem:[%s903] sm:$0xff]
    %v905 = vld [vmem:[%s903 + $0x8] sm:$0xff]
    %v906 = vld [vmem:[%s903 + $0x10] sm:$0xff]
    %v907 = vld [vmem:[%s903 + $0x18] sm:$0xff]
    %v908 = vld [vmem:[%s903 + $0x20] sm:$0xff]
    %v909 = vld [vmem:[%s903 + $0x28] sm:$0xff]
    %v910 = vld [vmem:[%s903 + $0x30] sm:$0xff]
    %v911 = vld [vmem:[%s903 + $0x38] sm:$0xff]
    %v912 = vld [vmem:[%s903 + $0x40] sm:$0xff]
    %v913 = vld [vmem:[%s903 + $0x48] sm:$0xff]
    %v914 = vld [vmem:[%s903 + $0x50] sm:$0xff]
    %v915 = vld [vmem:[%s903 + $0x58] sm:$0xff]
    %v918 = vrot.slane %v889, 1
    %v919 = vrot.slane %v890, 1
    %v920 = vsel %vm84, %v918, %v919
    %v921 = vsel %vm876, %v920, 0
    %923 = vmatprep.subr.mxu0 0.0
    %924 = vmatpush1.msra.mxu0 %v904
    %925 = vmatprep.subr.mxu0 0.0
    %926 = vmatpush1.msra.mxu0 %v905
    %927 = vmatprep.subr.mxu0 0.0
    %928 = vmatpush1.msra.mxu0 %v906
    %929 = vmatprep.subr.mxu0 0.0
    %930 = vmatpush1.msra.mxu0 %v907
    %931 = vmatprep.subr.mxu0 0.0
    %932 = vmatpush1.msra.mxu0 %v908
    %933 = vmatprep.subr.mxu0 0.0
    %934 = vmatpush1.msra.mxu0 %v909
    %935 = vmatprep.subr.mxu0 0.0
    %936 = vmatpush1.msra.mxu0 %v910
    %937 = vmatprep.subr.mxu0 0.0
    %938 = vmatpush1.msra.mxu0 %v911
    %939 = vmatprep.subr.mxu0 0.0
    %940 = vmatpush1.msra.mxu0 %v912
    %941 = vmatprep.subr.mxu0 0.0
    %942 = vmatpush1.msra.mxu0 %v913
    %943 = vmatprep.subr.mxu0 0.0
    %944 = vmatpush1.msra.mxu0 %v914
    %945 = vmatprep.subr.mxu0 0.0
    %946 = vmatpush1.msra.mxu0 %v915
    %947 = vmatprep.subr.mxu0 0.0
    %948 = vmatpush1.msra.mxu0 0.0
    %949 = vmatprep.subr.mxu0 0.0
    %950 = vmatpush1.msra.mxu0 0.0
    %951 = vmatprep.subr.mxu0 0.0
    %952 = vmatpush1.msra.mxu0 0.0
    %953 = vmatprep.subr.mxu0 0.0
    %954 = vmatpush1.msra.mxu0 0.0
    %955 = vmatprep.subr.mxu0 0.0
    %956 = vmatpush1.msra.mxu0 0.0
    %957 = vmatprep.subr.mxu0 0.0
    %958 = vmatpush1.msra.mxu0 0.0
    %959 = vmatprep.subr.mxu0 0.0
    %960 = vmatpush1.msra.mxu0 0.0
    %961 = vmatprep.subr.mxu0 0.0
    %962 = vmatpush1.msra.mxu0 0.0
    %963 = vmatprep.subr.mxu0 0.0
    %964 = vmatpush1.msra.mxu0 0.0
    %965 = vmatprep.subr.mxu0 0.0
    %966 = vmatpush1.msra.mxu0 0.0
    %967 = vmatprep.subr.mxu0 0.0
    %968 = vmatpush1.msra.mxu0 0.0
    %969 = vmatprep.subr.mxu0 0.0
    %970 = vmatpush1.msra.mxu0 0.0
    %971 = vmatprep.subr.mxu0 0.0
    %972 = vmatpush1.msra.mxu0 0.0
    %973 = vmatprep.subr.mxu0 0.0
    %974 = vmatpush1.msra.mxu0 0.0
    %975 = vmatprep.subr.mxu0 0.0
    %976 = vmatpush1.msra.mxu0 0.0
    %977 = vmatprep.subr.mxu0 0.0
    %978 = vmatpush1.msra.mxu0 0.0
    %979 = vmatprep.subr.mxu0 0.0
    %980 = vmatpush1.msra.mxu0 0.0
    %981 = vmatprep.subr.mxu0 0.0
    %982 = vmatpush1.msra.mxu0 0.0
    %983 = vmatprep.subr.mxu0 0.0
    %984 = vmatpush1.msra.mxu0 0.0
    %985 = vmatprep.subr.mxu0 0.0
    %986 = vmatpush1.msra.mxu0 0.0
    %987 = vmatprep.mubr.f32.mxu0 0.0
    %988 = vmatmul.mubr.f32.gmra.mrb[0].mxu0 %v921
    %v989 = vpop.f32.mrb[0].mxu0
    %v990 = vadd.f32 0.0, %v989
    %v991 = vpop.f32.mrb[0].mxu0
    %992 = vdwg.mxu0
    %v993 = vsel %vm876, %v889, 0
    %995 = vmatprep.subr.mxu0 0.0
    %996 = vmatpush1.msra.mxu0 %v891
    %997 = vmatprep.subr.mxu0 0.0
    %998 = vmatpush1.msra.mxu0 %v892
    %999 = vmatprep.subr.mxu0 0.0
    %1000 = vmatpush1.msra.mxu0 %v893
    %1001 = vmatprep.subr.mxu0 0.0
    %1002 = vmatpush1.msra.mxu0 %v894
    %1003 = vmatprep.subr.mxu0 0.0
    %1004 = vmatpush1.msra.mxu0 %v895
    %1005 = vmatprep.subr.mxu0 0.0
    %1006 = vmatpush1.msra.mxu0 %v896
    %1007 = vmatprep.subr.mxu0 0.0
    %1008 = vmatpush1.msra.mxu0 %v897
    %1009 = vmatprep.subr.mxu0 0.0
    %1010 = vmatpush1.msra.mxu0 %v898
    %1011 = vmatprep.subr.mxu0 0.0
    %1012 = vmatpush1.msra.mxu0 %v899
    %1013 = vmatprep.subr.mxu0 0.0
    %1014 = vmatpush1.msra.mxu0 %v900
    %1015 = vmatprep.subr.mxu0 0.0
    %1016 = vmatpush1.msra.mxu0 %v901
    %1017 = vmatprep.subr.mxu0 0.0
    %1018 = vmatpush1.msra.mxu0 %v902
    %1019 = vmatprep.subr.mxu0 0.0
    %1020 = vmatpush1.msra.mxu0 0.0
    %1021 = vmatprep.subr.mxu0 0.0
    %1022 = vmatpush1.msra.mxu0 0.0
    %1023 = vmatprep.subr.mxu0 0.0
    %1024 = vmatpush1.msra.mxu0 0.0
    %1025 = vmatprep.subr.mxu0 0.0
    %1026 = vmatpush1.msra.mxu0 0.0
    %1027 = vmatprep.subr.mxu0 0.0
    %1028 = vmatpush1.msra.mxu0 0.0
    %1029 = vmatprep.subr.mxu0 0.0
    %1030 = vmatpush1.msra.mxu0 0.0
    %1031 = vmatprep.subr.mxu0 0.0
    %1032 = vmatpush1.msra.mxu0 0.0
    %1033 = vmatprep.subr.mxu0 0.0
    %1034 = vmatpush1.msra.mxu0 0.0
    %1035 = vmatprep.subr.mxu0 0.0
    %1036 = vmatpush1.msra.mxu0 0.0
    %1037 = vmatprep.subr.mxu0 0.0
    %1038 = vmatpush1.msra.mxu0 0.0
    %1039 = vmatprep.subr.mxu0 0.0
    %1040 = vmatpush1.msra.mxu0 0.0
    %1041 = vmatprep.subr.mxu0 0.0
    %1042 = vmatpush1.msra.mxu0 0.0
    %1043 = vmatprep.subr.mxu0 0.0
    %1044 = vmatpush1.msra.mxu0 0.0
    %1045 = vmatprep.subr.mxu0 0.0
    %1046 = vmatpush1.msra.mxu0 0.0
    %1047 = vmatprep.subr.mxu0 0.0
    %1048 = vmatpush1.msra.mxu0 0.0
    %1049 = vmatprep.subr.mxu0 0.0
    %1050 = vmatpush1.msra.mxu0 0.0
    %1051 = vmatprep.subr.mxu0 0.0
    %1052 = vmatpush1.msra.mxu0 0.0
    %1053 = vmatprep.subr.mxu0 0.0
    %1054 = vmatpush1.msra.mxu0 0.0
    %1055 = vmatprep.subr.mxu0 0.0
    %1056 = vmatpush1.msra.mxu0 0.0
    %1057 = vmatprep.subr.mxu0 0.0
    %1058 = vmatpush1.msra.mxu0 0.0
    %1059 = vmatprep.mubr.f32.mxu0 0.0
    %1060 = vmatmul.mubr.f32.gmra.mrb[0].mxu0 %v993
    %v1061 = vpop.f32.mrb[0].mxu0
    %v1062 = vadd.f32 %v990, %v1061
    %v1063 = vpop.f32.mrb[0].mxu0
    %1064 = vdwg.mxu0
    %s1065 = scalar_lea.vmem %s5, 192
    %v1066 = vld [vmem:[%s1065] sm:$0xff]
    %v1067 = vld [vmem:[%s1065 + $0x8] sm:$0xff]
    %v1068 = vld [vmem:[%s1065 + $0x10] sm:$0xff]
    %v1069 = vld [vmem:[%s1065 + $0x18] sm:$0xff]
    %v1070 = vld [vmem:[%s1065 + $0x20] sm:$0xff]
    %v1071 = vld [vmem:[%s1065 + $0x28] sm:$0xff]
    %v1072 = vld [vmem:[%s1065 + $0x30] sm:$0xff]
    %v1073 = vld [vmem:[%s1065 + $0x38] sm:$0xff]
    %v1074 = vld [vmem:[%s1065 + $0x40] sm:$0xff]
    %v1075 = vld [vmem:[%s1065 + $0x48] sm:$0xff]
    %v1076 = vld [vmem:[%s1065 + $0x50] sm:$0xff]
    %v1077 = vld [vmem:[%s1065 + $0x58] sm:$0xff]
    %v1078 = vrot.slane %v889, 2
    %v1079 = vrot.slane %v890, 2
    %v1080 = vsel %vm293, %v1078, %v1079
    %v1081 = vsel %vm876, %v1080, 0
    %1083 = vmatprep.subr.mxu0 0.0
    %1084 = vmatpush1.msra.mxu0 %v1066
    %1085 = vmatprep.subr.mxu0 0.0
    %1086 = vmatpush1.msra.mxu0 %v1067
    %1087 = vmatprep.subr.mxu0 0.0
    %1088 = vmatpush1.msra.mxu0 %v1068
    %1089 = vmatprep.subr.mxu0 0.0
    %1090 = vmatpush1.msra.mxu0 %v1069
    %1091 = vmatprep.subr.mxu0 0.0
    %1092 = vmatpush1.msra.mxu0 %v1070
    %1093 = vmatprep.subr.mxu0 0.0
    %1094 = vmatpush1.msra.mxu0 %v1071
    %1095 = vmatprep.subr.mxu0 0.0
    %1096 = vmatpush1.msra.mxu0 %v1072
    %1097 = vmatprep.subr.mxu0 0.0
    %1098 = vmatpush1.msra.mxu0 %v1073
    %1099 = vmatprep.subr.mxu0 0.0
    %1100 = vmatpush1.msra.mxu0 %v1074
    %1101 = vmatprep.subr.mxu0 0.0
    %1102 = vmatpush1.msra.mxu0 %v1075
    %1103 = vmatprep.subr.mxu0 0.0
    %1104 = vmatpush1.msra.mxu0 %v1076
    %1105 = vmatprep.subr.mxu0 0.0
    %1106 = vmatpush1.msra.mxu0 %v1077
    %1107 = vmatprep.subr.mxu0 0.0
    %1108 = vmatpush1.msra.mxu0 0.0
    %1109 = vmatprep.subr.mxu0 0.0
    %1110 = vmatpush1.msra.mxu0 0.0
    %1111 = vmatprep.subr.mxu0 0.0
    %1112 = vmatpush1.msra.mxu0 0.0
    %1113 = vmatprep.subr.mxu0 0.0
    %1114 = vmatpush1.msra.mxu0 0.0
    %1115 = vmatprep.subr.mxu0 0.0
    %1116 = vmatpush1.msra.mxu0 0.0
    %1117 = vmatprep.subr.mxu0 0.0
    %1118 = vmatpush1.msra.mxu0 0.0
    %1119 = vmatprep.subr.mxu0 0.0
    %1120 = vmatpush1.msra.mxu0 0.0
    %1121 = vmatprep.subr.mxu0 0.0
    %1122 = vmatpush1.msra.mxu0 0.0
    %1123 = vmatprep.subr.mxu0 0.0
    %1124 = vmatpush1.msra.mxu0 0.0
    %1125 = vmatprep.subr.mxu0 0.0
    %1126 = vmatpush1.msra.mxu0 0.0
    %1127 = vmatprep.subr.mxu0 0.0
    %1128 = vmatpush1.msra.mxu0 0.0
    %1129 = vmatprep.subr.mxu0 0.0
    %1130 = vmatpush1.msra.mxu0 0.0
    %1131 = vmatprep.subr.mxu0 0.0
    %1132 = vmatpush1.msra.mxu0 0.0
    %1133 = vmatprep.subr.mxu0 0.0
    %1134 = vmatpush1.msra.mxu0 0.0
    %1135 = vmatprep.subr.mxu0 0.0
    %1136 = vmatpush1.msra.mxu0 0.0
    %1137 = vmatprep.subr.mxu0 0.0
    %1138 = vmatpush1.msra.mxu0 0.0
    %1139 = vmatprep.subr.mxu0 0.0
    %1140 = vmatpush1.msra.mxu0 0.0
    %1141 = vmatprep.subr.mxu0 0.0
    %1142 = vmatpush1.msra.mxu0 0.0
    %1143 = vmatprep.subr.mxu0 0.0
    %1144 = vmatpush1.msra.mxu0 0.0
    %1145 = vmatprep.subr.mxu0 0.0
    %1146 = vmatpush1.msra.mxu0 0.0
    %1147 = vmatprep.mubr.f32.mxu0 0.0
    %1148 = vmatmul.mubr.f32.gmra.mrb[0].mxu0 %v1081
    %v1149 = vpop.f32.mrb[0].mxu0
    %v1150 = vadd.f32 0.0, %v1149
    %v1151 = vpop.f32.mrb[0].mxu0
    %1152 = vdwg.mxu0
    %v1153 = vadd.f32 %v1062, %v1150
    %s1154 = scalar_lea.vmem %s5, 288
    %v1155 = vld [vmem:[%s1154] sm:$0xff]
    %v1156 = vld [vmem:[%s1154 + $0x8] sm:$0xff]
    %v1157 = vld [vmem:[%s1154 + $0x10] sm:$0xff]
    %v1158 = vld [vmem:[%s1154 + $0x18] sm:$0xff]
    %v1159 = vld [vmem:[%s1154 + $0x20] sm:$0xff]
    %v1160 = vld [vmem:[%s1154 + $0x28] sm:$0xff]
    %v1161 = vld [vmem:[%s1154 + $0x30] sm:$0xff]
    %v1162 = vld [vmem:[%s1154 + $0x38] sm:$0xff]
    %v1163 = vld [vmem:[%s1154 + $0x40] sm:$0xff]
    %v1164 = vld [vmem:[%s1154 + $0x48] sm:$0xff]
    %v1165 = vld [vmem:[%s1154 + $0x50] sm:$0xff]
    %v1166 = vld [vmem:[%s1154 + $0x58] sm:$0xff]
    %v1167 = vrot.slane %v889, 3
    %v1168 = vrot.slane %v890, 3
    %v1169 = vsel %vm411, %v1167, %v1168
    %v1170 = vsel %vm876, %v1169, 0
    %1172 = vmatprep.subr.mxu0 0.0
    %1173 = vmatpush1.msra.mxu0 %v1155
    %1174 = vmatprep.subr.mxu0 0.0
    %1175 = vmatpush1.msra.mxu0 %v1156
    %1176 = vmatprep.subr.mxu0 0.0
    %1177 = vmatpush1.msra.mxu0 %v1157
    %1178 = vmatprep.subr.mxu0 0.0
    %1179 = vmatpush1.msra.mxu0 %v1158
    %1180 = vmatprep.subr.mxu0 0.0
    %1181 = vmatpush1.msra.mxu0 %v1159
    %1182 = vmatprep.subr.mxu0 0.0
    %1183 = vmatpush1.msra.mxu0 %v1160
    %1184 = vmatprep.subr.mxu0 0.0
    %1185 = vmatpush1.msra.mxu0 %v1161
    %1186 = vmatprep.subr.mxu0 0.0
    %1187 = vmatpush1.msra.mxu0 %v1162
    %1188 = vmatprep.subr.mxu0 0.0
    %1189 = vmatpush1.msra.mxu0 %v1163
    %1190 = vmatprep.subr.mxu0 0.0
    %1191 = vmatpush1.msra.mxu0 %v1164
    %1192 = vmatprep.subr.mxu0 0.0
    %1193 = vmatpush1.msra.mxu0 %v1165
    %1194 = vmatprep.subr.mxu0 0.0
    %1195 = vmatpush1.msra.mxu0 %v1166
    %1196 = vmatprep.subr.mxu0 0.0
    %1197 = vmatpush1.msra.mxu0 0.0
    %1198 = vmatprep.subr.mxu0 0.0
    %1199 = vmatpush1.msra.mxu0 0.0
    %1200 = vmatprep.subr.mxu0 0.0
    %1201 = vmatpush1.msra.mxu0 0.0
    %1202 = vmatprep.subr.mxu0 0.0
    %1203 = vmatpush1.msra.mxu0 0.0
    %1204 = vmatprep.subr.mxu0 0.0
    %1205 = vmatpush1.msra.mxu0 0.0
    %1206 = vmatprep.subr.mxu0 0.0
    %1207 = vmatpush1.msra.mxu0 0.0
    %1208 = vmatprep.subr.mxu0 0.0
    %1209 = vmatpush1.msra.mxu0 0.0
    %1210 = vmatprep.subr.mxu0 0.0
    %1211 = vmatpush1.msra.mxu0 0.0
    %1212 = vmatprep.subr.mxu0 0.0
    %1213 = vmatpush1.msra.mxu0 0.0
    %1214 = vmatprep.subr.mxu0 0.0
    %1215 = vmatpush1.msra.mxu0 0.0
    %1216 = vmatprep.subr.mxu0 0.0
    %1217 = vmatpush1.msra.mxu0 0.0
    %1218 = vmatprep.subr.mxu0 0.0
    %1219 = vmatpush1.msra.mxu0 0.0
    %1220 = vmatprep.subr.mxu0 0.0
    %1221 = vmatpush1.msra.mxu0 0.0
    %1222 = vmatprep.subr.mxu0 0.0
    %1223 = vmatpush1.msra.mxu0 0.0
    %1224 = vmatprep.subr.mxu0 0.0
    %1225 = vmatpush1.msra.mxu0 0.0
    %1226 = vmatprep.subr.mxu0 0.0
    %1227 = vmatpush1.msra.mxu0 0.0
    %1228 = vmatprep.subr.mxu0 0.0
    %1229 = vmatpush1.msra.mxu0 0.0
    %1230 = vmatprep.subr.mxu0 0.0
    %1231 = vmatpush1.msra.mxu0 0.0
    %1232 = vmatprep.subr.mxu0 0.0
    %1233 = vmatpush1.msra.mxu0 0.0
    %1234 = vmatprep.subr.mxu0 0.0
    %1235 = vmatpush1.msra.mxu0 0.0
    %1236 = vmatprep.mubr.f32.mxu0 0.0
    %1237 = vmatmul.mubr.f32.gmra.mrb[0].mxu0 %v1170
    %v1238 = vpop.f32.mrb[0].mxu0
    %v1239 = vadd.f32 0.0, %v1238
    %v1240 = vpop.f32.mrb[0].mxu0
    %1241 = vdwg.mxu0
    %v1242 = vadd.f32 %v1153, %v1239
    %s1243 = scalar_lea.vmem %s5, 384
    %v1244 = vld [vmem:[%s1243] sm:$0xff]
    %v1245 = vld [vmem:[%s1243 + $0x8] sm:$0xff]
    %v1246 = vld [vmem:[%s1243 + $0x10] sm:$0xff]
    %v1247 = vld [vmem:[%s1243 + $0x18] sm:$0xff]
    %v1248 = vld [vmem:[%s1243 + $0x20] sm:$0xff]
    %v1249 = vld [vmem:[%s1243 + $0x28] sm:$0xff]
    %v1250 = vld [vmem:[%s1243 + $0x30] sm:$0xff]
    %v1251 = vld [vmem:[%s1243 + $0x38] sm:$0xff]
    %v1252 = vld [vmem:[%s1243 + $0x40] sm:$0xff]
    %v1253 = vld [vmem:[%s1243 + $0x48] sm:$0xff]
    %v1254 = vld [vmem:[%s1243 + $0x50] sm:$0xff]
    %v1255 = vld [vmem:[%s1243 + $0x58] sm:$0xff]
    %v1256 = vrot.slane %v889, 4
    %v1257 = vrot.slane %v890, 4
    %v1258 = vsel %vm99, %v1256, %v1257
    %v1259 = vsel %vm876, %v1258, 0
    %1261 = vmatprep.subr.mxu0 0.0
    %1262 = vmatpush1.msra.mxu0 %v1244
    %1263 = vmatprep.subr.mxu0 0.0
    %1264 = vmatpush1.msra.mxu0 %v1245
    %1265 = vmatprep.subr.mxu0 0.0
    %1266 = vmatpush1.msra.mxu0 %v1246
    %1267 = vmatprep.subr.mxu0 0.0
    %1268 = vmatpush1.msra.mxu0 %v1247
    %1269 = vmatprep.subr.mxu0 0.0
    %1270 = vmatpush1.msra.mxu0 %v1248
    %1271 = vmatprep.subr.mxu0 0.0
    %1272 = vmatpush1.msra.mxu0 %v1249
    %1273 = vmatprep.subr.mxu0 0.0
    %1274 = vmatpush1.msra.mxu0 %v1250
    %1275 = vmatprep.subr.mxu0 0.0
    %1276 = vmatpush1.msra.mxu0 %v1251
    %1277 = vmatprep.subr.mxu0 0.0
    %1278 = vmatpush1.msra.mxu0 %v1252
    %1279 = vmatprep.subr.mxu0 0.0
    %1280 = vmatpush1.msra.mxu0 %v1253
    %1281 = vmatprep.subr.mxu0 0.0
    %1282 = vmatpush1.msra.mxu0 %v1254
    %1283 = vmatprep.subr.mxu0 0.0
    %1284 = vmatpush1.msra.mxu0 %v1255
    %1285 = vmatprep.subr.mxu0 0.0
    %1286 = vmatpush1.msra.mxu0 0.0
    %1287 = vmatprep.subr.mxu0 0.0
    %1288 = vmatpush1.msra.mxu0 0.0
    %1289 = vmatprep.subr.mxu0 0.0
    %1290 = vmatpush1.msra.mxu0 0.0
    %1291 = vmatprep.subr.mxu0 0.0
    %1292 = vmatpush1.msra.mxu0 0.0
    %1293 = vmatprep.subr.mxu0 0.0
    %1294 = vmatpush1.msra.mxu0 0.0
    %1295 = vmatprep.subr.mxu0 0.0
    %1296 = vmatpush1.msra.mxu0 0.0
    %1297 = vmatprep.subr.mxu0 0.0
    %1298 = vmatpush1.msra.mxu0 0.0
    %1299 = vmatprep.subr.mxu0 0.0
    %1300 = vmatpush1.msra.mxu0 0.0
    %1301 = vmatprep.subr.mxu0 0.0
    %1302 = vmatpush1.msra.mxu0 0.0
    %1303 = vmatprep.subr.mxu0 0.0
    %1304 = vmatpush1.msra.mxu0 0.0
    %1305 = vmatprep.subr.mxu0 0.0
    %1306 = vmatpush1.msra.mxu0 0.0
    %1307 = vmatprep.subr.mxu0 0.0
    %1308 = vmatpush1.msra.mxu0 0.0
    %1309 = vmatprep.subr.mxu0 0.0
    %1310 = vmatpush1.msra.mxu0 0.0
    %1311 = vmatprep.subr.mxu0 0.0
    %1312 = vmatpush1.msra.mxu0 0.0
    %1313 = vmatprep.subr.mxu0 0.0
    %1314 = vmatpush1.msra.mxu0 0.0
    %1315 = vmatprep.subr.mxu0 0.0
    %1316 = vmatpush1.msra.mxu0 0.0
    %1317 = vmatprep.subr.mxu0 0.0
    %1318 = vmatpush1.msra.mxu0 0.0
    %1319 = vmatprep.subr.mxu0 0.0
    %1320 = vmatpush1.msra.mxu0 0.0
    %1321 = vmatprep.subr.mxu0 0.0
    %1322 = vmatpush1.msra.mxu0 0.0
    %1323 = vmatprep.subr.mxu0 0.0
    %1324 = vmatpush1.msra.mxu0 0.0
    %1325 = vmatprep.mubr.f32.mxu0 0.0
    %1326 = vmatmul.mubr.f32.gmra.mrb[0].mxu0 %v1259
    %v1327 = vpop.f32.mrb[0].mxu0
    %v1328 = vadd.f32 0.0, %v1327
    %v1329 = vpop.f32.mrb[0].mxu0
    %1330 = vdwg.mxu0
    %v1331 = vadd.f32 %v1242, %v1328
    %v1332 = vld [vmem:[%s6] sm:$0x1]
    %v1334 = vlaneseq
    %v1335 = vshrl.u32 %v1334, 7
    %v1336 = vsub.s32 0, %v1335
    %v1337 = vrot.slane %v1332, %v1336
    %v1339 = vadd.f32 %v1331, %v1337
    %v1340 = vld [vmem:[%s7] sm:$0xff]
    %v1341 = vld [vmem:[%s7 + $0x8] sm:$0xff]
    %v1342 = vld [vmem:[%s7 + $0x10] sm:$0xff]
    %v1343 = vld [vmem:[%s7 + $0x18] sm:$0xff]
    %v1344 = vld [vmem:[%s7 + $0x20] sm:$0xff]
    %v1345 = vld [vmem:[%s7 + $0x28] sm:$0xff]
    %v1346 = vld [vmem:[%s7 + $0x30] sm:$0xff]
    %v1347 = vld [vmem:[%s7 + $0x38] sm:$0xff]
    %v1348 = vld [vmem:[%s7 + $0x40] sm:$0xff]
    %v1349 = vld [vmem:[%s7 + $0x48] sm:$0xff]
    %v1350 = vld [vmem:[%s7 + $0x50] sm:$0xff]
    %v1351 = vld [vmem:[%s7 + $0x58] sm:$0xff]
    %v1352 = vld [vmem:[%s7 + $0x60] sm:$0xff]
    %v1353 = vld [vmem:[%s7 + $0x68] sm:$0xff]
    %v1354 = vld [vmem:[%s7 + $0x70] sm:$0xff]
    %v1355 = vld [vmem:[%s7 + $0x78] sm:$0xff]
    %1356 = vmatprep.subr.mxu0 0.0
    %1357 = vmatpush1.msra.mxu0 %v1340
    %1358 = vmatprep.subr.mxu0 0.0
    %1359 = vmatpush1.msra.mxu0 %v1341
    %1360 = vmatprep.subr.mxu0 0.0
    %1361 = vmatpush1.msra.mxu0 %v1342
    %1362 = vmatprep.subr.mxu0 0.0
    %1363 = vmatpush1.msra.mxu0 %v1343
    %1364 = vmatprep.subr.mxu0 0.0
    %1365 = vmatpush1.msra.mxu0 %v1344
    %1366 = vmatprep.subr.mxu0 0.0
    %1367 = vmatpush1.msra.mxu0 %v1345
    %1368 = vmatprep.subr.mxu0 0.0
    %1369 = vmatpush1.msra.mxu0 %v1346
    %1370 = vmatprep.subr.mxu0 0.0
    %1371 = vmatpush1.msra.mxu0 %v1347
    %1372 = vmatprep.subr.mxu0 0.0
    %1373 = vmatpush1.msra.mxu0 %v1348
    %1374 = vmatprep.subr.mxu0 0.0
    %1375 = vmatpush1.msra.mxu0 %v1349
    %1376 = vmatprep.subr.mxu0 0.0
    %1377 = vmatpush1.msra.mxu0 %v1350
    %1378 = vmatprep.subr.mxu0 0.0
    %1379 = vmatpush1.msra.mxu0 %v1351
    %1380 = vmatprep.subr.mxu0 0.0
    %1381 = vmatpush1.msra.mxu0 %v1352
    %1382 = vmatprep.subr.mxu0 0.0
    %1383 = vmatpush1.msra.mxu0 %v1353
    %1384 = vmatprep.subr.mxu0 0.0
    %1385 = vmatpush1.msra.mxu0 %v1354
    %1386 = vmatprep.subr.mxu0 0.0
    %1387 = vmatpush1.msra.mxu0 %v1355
    %1388 = vmatprep.subr.mxu0 0.0
    %1389 = vmatpush1.msra.mxu0 0.0
    %1390 = vmatprep.subr.mxu0 0.0
    %1391 = vmatpush1.msra.mxu0 0.0
    %1392 = vmatprep.subr.mxu0 0.0
    %1393 = vmatpush1.msra.mxu0 0.0
    %1394 = vmatprep.subr.mxu0 0.0
    %1395 = vmatpush1.msra.mxu0 0.0
    %1396 = vmatprep.subr.mxu0 0.0
    %1397 = vmatpush1.msra.mxu0 0.0
    %1398 = vmatprep.subr.mxu0 0.0
    %1399 = vmatpush1.msra.mxu0 0.0
    %1400 = vmatprep.subr.mxu0 0.0
    %1401 = vmatpush1.msra.mxu0 0.0
    %1402 = vmatprep.subr.mxu0 0.0
    %1403 = vmatpush1.msra.mxu0 0.0
    %1404 = vmatprep.subr.mxu0 0.0
    %1405 = vmatpush1.msra.mxu0 0.0
    %1406 = vmatprep.subr.mxu0 0.0
    %1407 = vmatpush1.msra.mxu0 0.0
    %1408 = vmatprep.subr.mxu0 0.0
    %1409 = vmatpush1.msra.mxu0 0.0
    %1410 = vmatprep.subr.mxu0 0.0
    %1411 = vmatpush1.msra.mxu0 0.0
    %1412 = vmatprep.subr.mxu0 0.0
    %1413 = vmatpush1.msra.mxu0 0.0
    %1414 = vmatprep.subr.mxu0 0.0
    %1415 = vmatpush1.msra.mxu0 0.0
    %1416 = vmatprep.subr.mxu0 0.0
    %1417 = vmatpush1.msra.mxu0 0.0
    %1418 = vmatprep.subr.mxu0 0.0
    %1419 = vmatpush1.msra.mxu0 0.0
    %1420 = vmatprep.mubr.f32.mxu0 0.0
    %1421 = vmatmul.mubr.f32.gmra.mrb[0].mxu0 %v1339
    %v1422 = vpop.f32.mrb[0].mxu0
    %v1423 = vadd.f32 0.0, %v1422
    %v1424 = vpop.f32.mrb[0].mxu0
    %1425 = vdwg.mxu0
    %v1426 = vld [vmem:[%s8] sm:$0xff]
    %v1427 = vld [vmem:[%s8 + $0x8] sm:$0xff]
    %v1428 = vld [vmem:[%s8 + $0x10] sm:$0xff]
    %v1429 = vld [vmem:[%s8 + $0x18] sm:$0xff]
    %v1430 = vld [vmem:[%s8 + $0x20] sm:$0xff]
    %v1431 = vld [vmem:[%s8 + $0x28] sm:$0xff]
    %v1432 = vld [vmem:[%s8 + $0x30] sm:$0xff]
    %v1433 = vld [vmem:[%s8 + $0x38] sm:$0xff]
    %v1434 = vld [vmem:[%s8 + $0x40] sm:$0xff]
    %v1435 = vld [vmem:[%s8 + $0x48] sm:$0xff]
    %v1436 = vld [vmem:[%s8 + $0x50] sm:$0xff]
    %v1437 = vld [vmem:[%s8 + $0x58] sm:$0xff]
    %v1438 = vld [vmem:[%s8 + $0x60] sm:$0xff]
    %v1439 = vld [vmem:[%s8 + $0x68] sm:$0xff]
    %v1440 = vld [vmem:[%s8 + $0x70] sm:$0xff]
    %v1441 = vld [vmem:[%s8 + $0x78] sm:$0xff]
    %1442 = vmatprep.subr.mxu0 0.0
    %1443 = vmatpush1.msra.mxu0 %v1426
    %1444 = vmatprep.subr.mxu0 0.0
    %1445 = vmatpush1.msra.mxu0 %v1427
    %1446 = vmatprep.subr.mxu0 0.0
    %1447 = vmatpush1.msra.mxu0 %v1428
    %1448 = vmatprep.subr.mxu0 0.0
    %1449 = vmatpush1.msra.mxu0 %v1429
    %1450 = vmatprep.subr.mxu0 0.0
    %1451 = vmatpush1.msra.mxu0 %v1430
    %1452 = vmatprep.subr.mxu0 0.0
    %1453 = vmatpush1.msra.mxu0 %v1431
    %1454 = vmatprep.subr.mxu0 0.0
    %1455 = vmatpush1.msra.mxu0 %v1432
    %1456 = vmatprep.subr.mxu0 0.0
    %1457 = vmatpush1.msra.mxu0 %v1433
    %1458 = vmatprep.subr.mxu0 0.0
    %1459 = vmatpush1.msra.mxu0 %v1434
    %1460 = vmatprep.subr.mxu0 0.0
    %1461 = vmatpush1.msra.mxu0 %v1435
    %1462 = vmatprep.subr.mxu0 0.0
    %1463 = vmatpush1.msra.mxu0 %v1436
    %1464 = vmatprep.subr.mxu0 0.0
    %1465 = vmatpush1.msra.mxu0 %v1437
    %1466 = vmatprep.subr.mxu0 0.0
    %1467 = vmatpush1.msra.mxu0 %v1438
    %1468 = vmatprep.subr.mxu0 0.0
    %1469 = vmatpush1.msra.mxu0 %v1439
    %1470 = vmatprep.subr.mxu0 0.0
    %1471 = vmatpush1.msra.mxu0 %v1440
    %1472 = vmatprep.subr.mxu0 0.0
    %1473 = vmatpush1.msra.mxu0 %v1441
    %1474 = vmatprep.subr.mxu0 0.0
    %1475 = vmatpush1.msra.mxu0 0.0
    %1476 = vmatprep.subr.mxu0 0.0
    %1477 = vmatpush1.msra.mxu0 0.0
    %1478 = vmatprep.subr.mxu0 0.0
    %1479 = vmatpush1.msra.mxu0 0.0
    %1480 = vmatprep.subr.mxu0 0.0
    %1481 = vmatpush1.msra.mxu0 0.0
    %1482 = vmatprep.subr.mxu0 0.0
    %1483 = vmatpush1.msra.mxu0 0.0
    %1484 = vmatprep.subr.mxu0 0.0
    %1485 = vmatpush1.msra.mxu0 0.0
    %1486 = vmatprep.subr.mxu0 0.0
    %1487 = vmatpush1.msra.mxu0 0.0
    %1488 = vmatprep.subr.mxu0 0.0
    %1489 = vmatpush1.msra.mxu0 0.0
    %1490 = vmatprep.subr.mxu0 0.0
    %1491 = vmatpush1.msra.mxu0 0.0
    %1492 = vmatprep.subr.mxu0 0.0
    %1493 = vmatpush1.msra.mxu0 0.0
    %1494 = vmatprep.subr.mxu0 0.0
    %1495 = vmatpush1.msra.mxu0 0.0
    %1496 = vmatprep.subr.mxu0 0.0
    %1497 = vmatpush1.msra.mxu0 0.0
    %1498 = vmatprep.subr.mxu0 0.0
    %1499 = vmatpush1.msra.mxu0 0.0
    %1500 = vmatprep.subr.mxu0 0.0
    %1501 = vmatpush1.msra.mxu0 0.0
    %1502 = vmatprep.subr.mxu0 0.0
    %1503 = vmatpush1.msra.mxu0 0.0
    %1504 = vmatprep.subr.mxu0 0.0
    %1505 = vmatpush1.msra.mxu0 0.0
    %1506 = vmatprep.mubr.f32.mxu0 0.0
    %1507 = vmatmul.mubr.f32.gmra.mrb[0].mxu0 %v1339
    %v1508 = vpop.f32.mrb[0].mxu0
    %v1509 = vadd.f32 0.0, %v1508
    %v1510 = vpop.f32.mrb[0].mxu0
    %1511 = vdwg.mxu0
    %v1512 = vmax.f32 %v1423, %v1509
    %1513 = vst.msk [vmem:[#allocation3] sm:$0xff] %vm679, %v1512
    %v1514 = vld [vmem:[#allocation3] ss:$2 sm:$0xf]
    %s1515 = scalar_lea.vmem [#allocation3], 1
    %v1516 = vld [vmem:[%s1515] ss:$2 sm:$0xf]
    %v1517 = vmax.f32 %v1514, %v1516
    %v1518 = vmax.f32 %v1517, 0.0
    %v1519 = vld [vmem:[%s9] sm:$0xff]
    %v1520 = vld [vmem:[%s9 + $0x8] sm:$0xff]
    %v1521 = vld [vmem:[%s9 + $0x10] sm:$0xff]
    %v1522 = vld [vmem:[%s9 + $0x18] sm:$0xff]
    %v1523 = vld [vmem:[%s9 + $0x20] sm:$0xff]
    %v1524 = vld [vmem:[%s9 + $0x28] sm:$0xff]
    %v1525 = vld [vmem:[%s9 + $0x30] sm:$0xff]
    %v1526 = vld [vmem:[%s9 + $0x38] sm:$0xff]
    %v1527 = vld [vmem:[%s9 + $0x40] sm:$0xff]
    %v1528 = vld [vmem:[%s9 + $0x48] sm:$0xff]
    %v1529 = vld [vmem:[%s9 + $0x50] sm:$0xff]
    %v1530 = vld [vmem:[%s9 + $0x58] sm:$0xff]
    %v1531 = vld [vmem:[%s9 + $0x60] sm:$0xff]
    %v1532 = vld [vmem:[%s9 + $0x68] sm:$0xff]
    %v1533 = vld [vmem:[%s9 + $0x70] sm:$0xff]
    %v1534 = vld [vmem:[%s9 + $0x78] sm:$0xff]
    %v1536 = vrot.slane %v1518, 1
    %v1537 = vsel %vm679, %v1536, 0
    %1539 = vmatprep.subr.mxu0 0.0
    %1540 = vmatpush1.msra.mxu0 %v1527
    %1541 = vmatprep.subr.mxu0 0.0
    %1542 = vmatpush1.msra.mxu0 %v1528
    %1543 = vmatprep.subr.mxu0 0.0
    %1544 = vmatpush1.msra.mxu0 %v1529
    %1545 = vmatprep.subr.mxu0 0.0
    %1546 = vmatpush1.msra.mxu0 %v1530
    %1547 = vmatprep.subr.mxu0 0.0
    %1548 = vmatpush1.msra.mxu0 %v1531
    %1549 = vmatprep.subr.mxu0 0.0
    %1550 = vmatpush1.msra.mxu0 %v1532
    %1551 = vmatprep.subr.mxu0 0.0
    %1552 = vmatpush1.msra.mxu0 %v1533
    %1553 = vmatprep.subr.mxu0 0.0
    %1554 = vmatpush1.msra.mxu0 %v1534
    %1555 = vmatprep.subr.mxu0 0.0
    %1556 = vmatpush1.msra.mxu0 0.0
    %1557 = vmatprep.subr.mxu0 0.0
    %1558 = vmatpush1.msra.mxu0 0.0
    %1559 = vmatprep.subr.mxu0 0.0
    %1560 = vmatpush1.msra.mxu0 0.0
    %1561 = vmatprep.subr.mxu0 0.0
    %1562 = vmatpush1.msra.mxu0 0.0
    %1563 = vmatprep.subr.mxu0 0.0
    %1564 = vmatpush1.msra.mxu0 0.0
    %1565 = vmatprep.subr.mxu0 0.0
    %1566 = vmatpush1.msra.mxu0 0.0
    %1567 = vmatprep.subr.mxu0 0.0
    %1568 = vmatpush1.msra.mxu0 0.0
    %1569 = vmatprep.subr.mxu0 0.0
    %1570 = vmatpush1.msra.mxu0 0.0
    %1571 = vmatprep.subr.mxu0 0.0
    %1572 = vmatpush1.msra.mxu0 0.0
    %1573 = vmatprep.subr.mxu0 0.0
    %1574 = vmatpush1.msra.mxu0 0.0
    %1575 = vmatprep.subr.mxu0 0.0
    %1576 = vmatpush1.msra.mxu0 0.0
    %1577 = vmatprep.subr.mxu0 0.0
    %1578 = vmatpush1.msra.mxu0 0.0
    %1579 = vmatprep.subr.mxu0 0.0
    %1580 = vmatpush1.msra.mxu0 0.0
    %1581 = vmatprep.subr.mxu0 0.0
    %1582 = vmatpush1.msra.mxu0 0.0
    %1583 = vmatprep.subr.mxu0 0.0
    %1584 = vmatpush1.msra.mxu0 0.0
    %1585 = vmatprep.subr.mxu0 0.0
    %1586 = vmatpush1.msra.mxu0 0.0
    %1587 = vmatprep.subr.mxu0 0.0
    %1588 = vmatpush1.msra.mxu0 0.0
    %1589 = vmatprep.subr.mxu0 0.0
    %1590 = vmatpush1.msra.mxu0 0.0
    %1591 = vmatprep.subr.mxu0 0.0
    %1592 = vmatpush1.msra.mxu0 0.0
    %1593 = vmatprep.subr.mxu0 0.0
    %1594 = vmatpush1.msra.mxu0 0.0
    %1595 = vmatprep.subr.mxu0 0.0
    %1596 = vmatpush1.msra.mxu0 0.0
    %1597 = vmatprep.subr.mxu0 0.0
    %1598 = vmatpush1.msra.mxu0 0.0
    %1599 = vmatprep.subr.mxu0 0.0
    %1600 = vmatpush1.msra.mxu0 0.0
    %1601 = vmatprep.subr.mxu0 0.0
    %1602 = vmatpush1.msra.mxu0 0.0
    %1603 = vmatprep.mubr.f32.mxu0 0.0
    %1604 = vmatmul.mubr.f32.gmra.mrb[0].mxu0 %v1537
    %v1605 = vpop.f32.mrb[0].mxu0
    %v1606 = vadd.f32 0.0, %v1605
    %v1607 = vpop.f32.mrb[0].mxu0
    %1608 = vdwg.mxu0
    %v1609 = vsel %vm679, %v1518, 0
    %1611 = vmatprep.subr.mxu0 0.0
    %1612 = vmatpush1.msra.mxu0 %v1519
    %1613 = vmatprep.subr.mxu0 0.0
    %1614 = vmatpush1.msra.mxu0 %v1520
    %1615 = vmatprep.subr.mxu0 0.0
    %1616 = vmatpush1.msra.mxu0 %v1521
    %1617 = vmatprep.subr.mxu0 0.0
    %1618 = vmatpush1.msra.mxu0 %v1522
    %1619 = vmatprep.subr.mxu0 0.0
    %1620 = vmatpush1.msra.mxu0 %v1523
    %1621 = vmatprep.subr.mxu0 0.0
    %1622 = vmatpush1.msra.mxu0 %v1524
    %1623 = vmatprep.subr.mxu0 0.0
    %1624 = vmatpush1.msra.mxu0 %v1525
    %1625 = vmatprep.subr.mxu0 0.0
    %1626 = vmatpush1.msra.mxu0 %v1526
    %1627 = vmatprep.subr.mxu0 0.0
    %1628 = vmatpush1.msra.mxu0 0.0
    %1629 = vmatprep.subr.mxu0 0.0
    %1630 = vmatpush1.msra.mxu0 0.0
    %1631 = vmatprep.subr.mxu0 0.0
    %1632 = vmatpush1.msra.mxu0 0.0
    %1633 = vmatprep.subr.mxu0 0.0
    %1634 = vmatpush1.msra.mxu0 0.0
    %1635 = vmatprep.subr.mxu0 0.0
    %1636 = vmatpush1.msra.mxu0 0.0
    %1637 = vmatprep.subr.mxu0 0.0
    %1638 = vmatpush1.msra.mxu0 0.0
    %1639 = vmatprep.subr.mxu0 0.0
    %1640 = vmatpush1.msra.mxu0 0.0
    %1641 = vmatprep.subr.mxu0 0.0
    %1642 = vmatpush1.msra.mxu0 0.0
    %1643 = vmatprep.subr.mxu0 0.0
    %1644 = vmatpush1.msra.mxu0 0.0
    %1645 = vmatprep.subr.mxu0 0.0
    %1646 = vmatpush1.msra.mxu0 0.0
    %1647 = vmatprep.subr.mxu0 0.0
    %1648 = vmatpush1.msra.mxu0 0.0
    %1649 = vmatprep.subr.mxu0 0.0
    %1650 = vmatpush1.msra.mxu0 0.0
    %1651 = vmatprep.subr.mxu0 0.0
    %1652 = vmatpush1.msra.mxu0 0.0
    %1653 = vmatprep.subr.mxu0 0.0
    %1654 = vmatpush1.msra.mxu0 0.0
    %1655 = vmatprep.subr.mxu0 0.0
    %1656 = vmatpush1.msra.mxu0 0.0
    %1657 = vmatprep.subr.mxu0 0.0
    %1658 = vmatpush1.msra.mxu0 0.0
    %1659 = vmatprep.subr.mxu0 0.0
    %1660 = vmatpush1.msra.mxu0 0.0
    %1661 = vmatprep.subr.mxu0 0.0
    %1662 = vmatpush1.msra.mxu0 0.0
    %1663 = vmatprep.subr.mxu0 0.0
    %1664 = vmatpush1.msra.mxu0 0.0
    %1665 = vmatprep.subr.mxu0 0.0
    %1666 = vmatpush1.msra.mxu0 0.0
    %1667 = vmatprep.subr.mxu0 0.0
    %1668 = vmatpush1.msra.mxu0 0.0
    %1669 = vmatprep.subr.mxu0 0.0
    %1670 = vmatpush1.msra.mxu0 0.0
    %1671 = vmatprep.subr.mxu0 0.0
    %1672 = vmatpush1.msra.mxu0 0.0
    %1673 = vmatprep.subr.mxu0 0.0
    %1674 = vmatpush1.msra.mxu0 0.0
    %1675 = vmatprep.mubr.f32.mxu0 0.0
    %1676 = vmatmul.mubr.f32.gmra.mrb[0].mxu0 %v1609
    %v1677 = vpop.f32.mrb[0].mxu0
    %v1678 = vadd.f32 %v1606, %v1677
    %v1679 = vpop.f32.mrb[0].mxu0
    %1680 = vdwg.mxu0
    %v1681 = vld [vmem:[%s9 + $0x80] sm:$0xff]
    %v1682 = vld [vmem:[%s9 + $0x88] sm:$0xff]
    %v1683 = vld [vmem:[%s9 + $0x90] sm:$0xff]
    %v1684 = vld [vmem:[%s9 + $0x98] sm:$0xff]
    %v1685 = vld [vmem:[%s9 + $0xa0] sm:$0xff]
    %v1686 = vld [vmem:[%s9 + $0xa8] sm:$0xff]
    %v1687 = vld [vmem:[%s9 + $0xb0] sm:$0xff]
    %v1688 = vld [vmem:[%s9 + $0xb8] sm:$0xff]
    %v1689 = vrot.slane %v1518, 2
    %v1690 = vsel %vm679, %v1689, 0
    %1692 = vmatprep.subr.mxu0 0.0
    %1693 = vmatpush1.msra.mxu0 %v1681
    %1694 = vmatprep.subr.mxu0 0.0
    %1695 = vmatpush1.msra.mxu0 %v1682
    %1696 = vmatprep.subr.mxu0 0.0
    %1697 = vmatpush1.msra.mxu0 %v1683
    %1698 = vmatprep.subr.mxu0 0.0
    %1699 = vmatpush1.msra.mxu0 %v1684
    %1700 = vmatprep.subr.mxu0 0.0
    %1701 = vmatpush1.msra.mxu0 %v1685
    %1702 = vmatprep.subr.mxu0 0.0
    %1703 = vmatpush1.msra.mxu0 %v1686
    %1704 = vmatprep.subr.mxu0 0.0
    %1705 = vmatpush1.msra.mxu0 %v1687
    %1706 = vmatprep.subr.mxu0 0.0
    %1707 = vmatpush1.msra.mxu0 %v1688
    %1708 = vmatprep.subr.mxu0 0.0
    %1709 = vmatpush1.msra.mxu0 0.0
    %1710 = vmatprep.subr.mxu0 0.0
    %1711 = vmatpush1.msra.mxu0 0.0
    %1712 = vmatprep.subr.mxu0 0.0
    %1713 = vmatpush1.msra.mxu0 0.0
    %1714 = vmatprep.subr.mxu0 0.0
    %1715 = vmatpush1.msra.mxu0 0.0
    %1716 = vmatprep.subr.mxu0 0.0
    %1717 = vmatpush1.msra.mxu0 0.0
    %1718 = vmatprep.subr.mxu0 0.0
    %1719 = vmatpush1.msra.mxu0 0.0
    %1720 = vmatprep.subr.mxu0 0.0
    %1721 = vmatpush1.msra.mxu0 0.0
    %1722 = vmatprep.subr.mxu0 0.0
    %1723 = vmatpush1.msra.mxu0 0.0
    %1724 = vmatprep.subr.mxu0 0.0
    %1725 = vmatpush1.msra.mxu0 0.0
    %1726 = vmatprep.subr.mxu0 0.0
    %1727 = vmatpush1.msra.mxu0 0.0
    %1728 = vmatprep.subr.mxu0 0.0
    %1729 = vmatpush1.msra.mxu0 0.0
    %1730 = vmatprep.subr.mxu0 0.0
    %1731 = vmatpush1.msra.mxu0 0.0
    %1732 = vmatprep.subr.mxu0 0.0
    %1733 = vmatpush1.msra.mxu0 0.0
    %1734 = vmatprep.subr.mxu0 0.0
    %1735 = vmatpush1.msra.mxu0 0.0
    %1736 = vmatprep.subr.mxu0 0.0
    %1737 = vmatpush1.msra.mxu0 0.0
    %1738 = vmatprep.subr.mxu0 0.0
    %1739 = vmatpush1.msra.mxu0 0.0
    %1740 = vmatprep.subr.mxu0 0.0
    %1741 = vmatpush1.msra.mxu0 0.0
    %1742 = vmatprep.subr.mxu0 0.0
    %1743 = vmatpush1.msra.mxu0 0.0
    %1744 = vmatprep.subr.mxu0 0.0
    %1745 = vmatpush1.msra.mxu0 0.0
    %1746 = vmatprep.subr.mxu0 0.0
    %1747 = vmatpush1.msra.mxu0 0.0
    %1748 = vmatprep.subr.mxu0 0.0
    %1749 = vmatpush1.msra.mxu0 0.0
    %1750 = vmatprep.subr.mxu0 0.0
    %1751 = vmatpush1.msra.mxu0 0.0
    %1752 = vmatprep.subr.mxu0 0.0
    %1753 = vmatpush1.msra.mxu0 0.0
    %1754 = vmatprep.subr.mxu0 0.0
    %1755 = vmatpush1.msra.mxu0 0.0
    %1756 = vmatprep.mubr.f32.mxu0 0.0
    %1757 = vmatmul.mubr.f32.gmra.mrb[0].mxu0 %v1690
    %v1758 = vpop.f32.mrb[0].mxu0
    %v1759 = vadd.f32 0.0, %v1758
    %v1760 = vpop.f32.mrb[0].mxu0
    %1761 = vdwg.mxu0
    %v1762 = vadd.f32 %v1678, %v1759
    %v1763 = vld [vmem:[%s9 + $0xc0] sm:$0xff]
    %v1764 = vld [vmem:[%s9 + $0xc8] sm:$0xff]
    %v1765 = vld [vmem:[%s9 + $0xd0] sm:$0xff]
    %v1766 = vld [vmem:[%s9 + $0xd8] sm:$0xff]
    %v1767 = vld [vmem:[%s9 + $0xe0] sm:$0xff]
    %v1768 = vld [vmem:[%s9 + $0xe8] sm:$0xff]
    %v1769 = vld [vmem:[%s9 + $0xf0] sm:$0xff]
    %v1770 = vld [vmem:[%s9 + $0xf8] sm:$0xff]
    %v1771 = vrot.slane %v1518, 3
    %v1772 = vsel %vm679, %v1771, 0
    %1774 = vmatprep.subr.mxu0 0.0
    %1775 = vmatpush1.msra.mxu0 %v1763
    %1776 = vmatprep.subr.mxu0 0.0
    %1777 = vmatpush1.msra.mxu0 %v1764
    %1778 = vmatprep.subr.mxu0 0.0
    %1779 = vmatpush1.msra.mxu0 %v1765
    %1780 = vmatprep.subr.mxu0 0.0
    %1781 = vmatpush1.msra.mxu0 %v1766
    %1782 = vmatprep.subr.mxu0 0.0
    %1783 = vmatpush1.msra.mxu0 %v1767
    %1784 = vmatprep.subr.mxu0 0.0
    %1785 = vmatpush1.msra.mxu0 %v1768
    %1786 = vmatprep.subr.mxu0 0.0
    %1787 = vmatpush1.msra.mxu0 %v1769
    %1788 = vmatprep.subr.mxu0 0.0
    %1789 = vmatpush1.msra.mxu0 %v1770
    %1790 = vmatprep.subr.mxu0 0.0
    %1791 = vmatpush1.msra.mxu0 0.0
    %1792 = vmatprep.subr.mxu0 0.0
    %1793 = vmatpush1.msra.mxu0 0.0
    %1794 = vmatprep.subr.mxu0 0.0
    %1795 = vmatpush1.msra.mxu0 0.0
    %1796 = vmatprep.subr.mxu0 0.0
    %1797 = vmatpush1.msra.mxu0 0.0
    %1798 = vmatprep.subr.mxu0 0.0
    %1799 = vmatpush1.msra.mxu0 0.0
    %1800 = vmatprep.subr.mxu0 0.0
    %1801 = vmatpush1.msra.mxu0 0.0
    %1802 = vmatprep.subr.mxu0 0.0
    %1803 = vmatpush1.msra.mxu0 0.0
    %1804 = vmatprep.subr.mxu0 0.0
    %1805 = vmatpush1.msra.mxu0 0.0
    %1806 = vmatprep.subr.mxu0 0.0
    %1807 = vmatpush1.msra.mxu0 0.0
    %1808 = vmatprep.subr.mxu0 0.0
    %1809 = vmatpush1.msra.mxu0 0.0
    %1810 = vmatprep.subr.mxu0 0.0
    %1811 = vmatpush1.msra.mxu0 0.0
    %1812 = vmatprep.subr.mxu0 0.0
    %1813 = vmatpush1.msra.mxu0 0.0
    %1814 = vmatprep.subr.mxu0 0.0
    %1815 = vmatpush1.msra.mxu0 0.0
    %1816 = vmatprep.subr.mxu0 0.0
    %1817 = vmatpush1.msra.mxu0 0.0
    %1818 = vmatprep.subr.mxu0 0.0
    %1819 = vmatpush1.msra.mxu0 0.0
    %1820 = vmatprep.subr.mxu0 0.0
    %1821 = vmatpush1.msra.mxu0 0.0
    %1822 = vmatprep.subr.mxu0 0.0
    %1823 = vmatpush1.msra.mxu0 0.0
    %1824 = vmatprep.subr.mxu0 0.0
    %1825 = vmatpush1.msra.mxu0 0.0
    %1826 = vmatprep.subr.mxu0 0.0
    %1827 = vmatpush1.msra.mxu0 0.0
    %1828 = vmatprep.subr.mxu0 0.0
    %1829 = vmatpush1.msra.mxu0 0.0
    %1830 = vmatprep.subr.mxu0 0.0
    %1831 = vmatpush1.msra.mxu0 0.0
    %1832 = vmatprep.subr.mxu0 0.0
    %1833 = vmatpush1.msra.mxu0 0.0
    %1834 = vmatprep.subr.mxu0 0.0
    %1835 = vmatpush1.msra.mxu0 0.0
    %1836 = vmatprep.subr.mxu0 0.0
    %1837 = vmatpush1.msra.mxu0 0.0
    %1838 = vmatprep.mubr.f32.mxu0 0.0
    %1839 = vmatmul.mubr.f32.gmra.mrb[0].mxu0 %v1772
    %v1840 = vpop.f32.mrb[0].mxu0
    %v1841 = vadd.f32 0.0, %v1840
    %v1842 = vpop.f32.mrb[0].mxu0
    %1843 = vdwg.mxu0
    %v1844 = vadd.f32 %v1762, %v1841
    %v1845 = vld [vmem:[%s10] sm:$0x1]
    %v1846 = vadd.f32 %v1844, %v1845
    %v1847 = vmax.f32 %v1846, 0.0
    %v1848 = vld [vmem:[%s11] sm:$0xff]
    %v1849 = vld [vmem:[%s11 + $0x8] sm:$0xff]
    %v1850 = vld [vmem:[%s11 + $0x10] sm:$0xff]
    %v1851 = vld [vmem:[%s11 + $0x18] sm:$0xff]
    %v1852 = vld [vmem:[%s12] sm:$0x1]
    %vm1853 = vcmask 261120
    %v1855 = vsel %vm1853, %v1847, 0
    %1857 = vmatprep.subr.mxu0 0.0
    %1858 = vmatpush1.msra.mxu0 %v1848
    %1859 = vmatprep.subr.mxu0 0.0
    %1860 = vmatpush1.msra.mxu0 %v1849
    %1861 = vmatprep.subr.mxu0 0.0
    %1862 = vmatpush1.msra.mxu0 %v1850
    %1863 = vmatprep.subr.mxu0 0.0
    %1864 = vmatpush1.msra.mxu0 %v1851
    %1865 = vmatprep.subr.mxu0 0.0
    %1866 = vmatpush1.msra.mxu0 0.0
    %1867 = vmatprep.subr.mxu0 0.0
    %1868 = vmatpush1.msra.mxu0 0.0
    %1869 = vmatprep.subr.mxu0 0.0
    %1870 = vmatpush1.msra.mxu0 0.0
    %1871 = vmatprep.subr.mxu0 0.0
    %1872 = vmatpush1.msra.mxu0 0.0
    %1873 = vmatprep.subr.mxu0 0.0
    %1874 = vmatpush1.msra.mxu0 0.0
    %1875 = vmatprep.subr.mxu0 0.0
    %1876 = vmatpush1.msra.mxu0 0.0
    %1877 = vmatprep.subr.mxu0 0.0
    %1878 = vmatpush1.msra.mxu0 0.0
    %1879 = vmatprep.subr.mxu0 0.0
    %1880 = vmatpush1.msra.mxu0 0.0
    %1881 = vmatprep.subr.mxu0 0.0
    %1882 = vmatpush1.msra.mxu0 0.0
    %1883 = vmatprep.subr.mxu0 0.0
    %1884 = vmatpush1.msra.mxu0 0.0
    %1885 = vmatprep.subr.mxu0 0.0
    %1886 = vmatpush1.msra.mxu0 0.0
    %1887 = vmatprep.subr.mxu0 0.0
    %1888 = vmatpush1.msra.mxu0 0.0
    %1889 = vmatprep.subr.mxu0 0.0
    %1890 = vmatpush1.msra.mxu0 0.0
    %1891 = vmatprep.subr.mxu0 0.0
    %1892 = vmatpush1.msra.mxu0 0.0
    %1893 = vmatprep.subr.mxu0 0.0
    %1894 = vmatpush1.msra.mxu0 0.0
    %1895 = vmatprep.subr.mxu0 0.0
    %1896 = vmatpush1.msra.mxu0 0.0
    %1897 = vmatprep.subr.mxu0 0.0
    %1898 = vmatpush1.msra.mxu0 0.0
    %1899 = vmatprep.subr.mxu0 0.0
    %1900 = vmatpush1.msra.mxu0 0.0
    %1901 = vmatprep.subr.mxu0 0.0
    %1902 = vmatpush1.msra.mxu0 0.0
    %1903 = vmatprep.subr.mxu0 0.0
    %1904 = vmatpush1.msra.mxu0 0.0
    %1905 = vmatprep.subr.mxu0 0.0
    %1906 = vmatpush1.msra.mxu0 0.0
    %1907 = vmatprep.subr.mxu0 0.0
    %1908 = vmatpush1.msra.mxu0 0.0
    %1909 = vmatprep.subr.mxu0 0.0
    %1910 = vmatpush1.msra.mxu0 0.0
    %1911 = vmatprep.subr.mxu0 0.0
    %1912 = vmatpush1.msra.mxu0 0.0
    %1913 = vmatprep.subr.mxu0 0.0
    %1914 = vmatpush1.msra.mxu0 0.0
    %1915 = vmatprep.subr.mxu0 0.0
    %1916 = vmatpush1.msra.mxu0 0.0
    %1917 = vmatprep.subr.mxu0 0.0
    %1918 = vmatpush1.msra.mxu0 0.0
    %1919 = vmatprep.subr.mxu0 0.0
    %1920 = vmatpush1.msra.mxu0 0.0
    %1921 = vmatprep.mubr.f32.mxu0 0.0
    %1922 = vmatmul.mubr.f32.gmra.mrb[0].mxu0 %v1855
    %v1923 = vpop.f32.mrb[0].mxu0
    %v1924 = vadd.f32 %v1852, %v1923
    %v1925 = vpop.f32.mrb[0].mxu0
    %1926 = vdwg.mxu0
    %vm1927 = vcmask 73728
    %v1928 = vsel %vm1927, %v1924, -inf
    %1929 = vmax.xlane.f32.xlu0 %v1928
    %v1930 = vpop.xlane.xlu0 %1929
    %v1931 = vsub.f32 %v1924, %v1930
    %v1932 = vmul.f32 %v1931, 1.442695
    %v1933 = vpow.pop %v1932
    %v1934 = vsel %vm1927, %v1933, 0.0
    %1935 = vadd.xlane.f32.xlu0 %v1934
    %v1936 = vpop.xlane.xlu0 %1935
    %v1937 = vlog2.pop %v1936
    %v1938 = vmul.f32 %v1937, 0.6931472
    %v1939 = vsub.f32 %v1931, %v1938
    %1940 = vst.msk [vmem:[#allocation7] sm:$0x1] %vm1927, %v1939
    %s1941 = scalar_lea.vmem %s0, 32
    %v1942 = vld [vmem:[%s1941] sm:$0xff]
    %v1943 = vld [vmem:[%s1941 + $0x8] sm:$0xff]
    %v1944 = vld [vmem:[%s1941 + $0x10] sm:$0xff]
    %v1945 = vld [vmem:[%s1941 + $0x18] sm:$0xf]
    %v1946 = vld [vmem:[%s1] sm:$0xff]
    %v1947 = vld [vmem:[%s1 + $0x8] sm:$0xff]
    %v1948 = vld [vmem:[%s1 + $0x10] sm:$0xff]
    %v1949 = vld [vmem:[%s1 + $0x18] sm:$0xff]
    %v1950 = vld [vmem:[%s1 + $0x20] sm:$0xff]
    %v1951 = vld [vmem:[%s1 + $0x28] sm:$0xff]
    %v1952 = vld [vmem:[%s1 + $0x30] sm:$0xf]
    %v1953 = vld [vmem:[%s1 + $0x38] sm:$0xf]
    %v1954 = vld [vmem:[%s71] sm:$0xff]
    %v1955 = vld [vmem:[%s71 + $0x8] sm:$0xff]
    %v1956 = vld [vmem:[%s71 + $0x10] sm:$0xff]
    %v1957 = vld [vmem:[%s71 + $0x18] sm:$0xff]
    %v1958 = vld [vmem:[%s71 + $0x20] sm:$0xff]
    %v1959 = vld [vmem:[%s71 + $0x28] sm:$0xff]
    %v1960 = vld [vmem:[%s71 + $0x30] sm:$0xf]
    %v1961 = vld [vmem:[%s71 + $0x38] sm:$0xf]
    %v1966 = vrot.slane %v1942, 1
    %v1967 = vrot.slane %v1943, 1
    %v1968 = vsel %vm84, %v1966, %v1967
    %v1969 = vrot.slane %v1944, 1
    %v1970 = vsel %vm84, %v1967, %v1969
    %v1971 = vrot.slane %v1945, 1
    %v1972 = vsel %vm84, %v1969, %v1971
    %v1973 = vsel %vm92, %v1968, 0
    %v1975 = vsel %vm92, %v1970, 0
    %v1977 = vsel %vm92, %v1972, 0
    %v1980 = vsel %vm99, %v1960, 0
    %v1983 = vsel %vm99, %v1961, 0
    %1985 = vmatprep.subr.mxu0 %v1955
    %1986 = vmatpush1.msra.mxu0 %v1954
    %1987 = vmatprep.subr.mxu0 %v1957
    %1988 = vmatpush1.msra.mxu0 %v1956
    %1989 = vmatprep.subr.mxu0 %v1959
    %1990 = vmatpush1.msra.mxu0 %v1958
    %1991 = vmatprep.subr.mxu0 %v1983
    %1992 = vmatpush1.msra.mxu0 %v1980
    %1993 = vmatprep.subr.mxu0 0.0
    %1994 = vmatpush1.msra.mxu0 0.0
    %1995 = vmatprep.subr.mxu0 0.0
    %1996 = vmatpush1.msra.mxu0 0.0
    %1997 = vmatprep.subr.mxu0 0.0
    %1998 = vmatpush1.msra.mxu0 0.0
    %1999 = vmatprep.subr.mxu0 0.0
    %2000 = vmatpush1.msra.mxu0 0.0
    %2001 = vmatprep.subr.mxu0 0.0
    %2002 = vmatpush1.msra.mxu0 0.0
    %2003 = vmatprep.subr.mxu0 0.0
    %2004 = vmatpush1.msra.mxu0 0.0
    %2005 = vmatprep.subr.mxu0 0.0
    %2006 = vmatpush1.msra.mxu0 0.0
    %2007 = vmatprep.subr.mxu0 0.0
    %2008 = vmatpush1.msra.mxu0 0.0
    %2009 = vmatprep.subr.mxu0 0.0
    %2010 = vmatpush1.msra.mxu0 0.0
    %2011 = vmatprep.subr.mxu0 0.0
    %2012 = vmatpush1.msra.mxu0 0.0
    %2013 = vmatprep.subr.mxu0 0.0
    %2014 = vmatpush1.msra.mxu0 0.0
    %2015 = vmatprep.subr.mxu0 0.0
    %2016 = vmatpush1.msra.mxu0 0.0
    %2017 = vmatprep.subr.mxu0 0.0
    %2018 = vmatpush1.msra.mxu0 0.0
    %2019 = vmatprep.subr.mxu0 0.0
    %2020 = vmatpush1.msra.mxu0 0.0
    %2021 = vmatprep.subr.mxu0 0.0
    %2022 = vmatpush1.msra.mxu0 0.0
    %2023 = vmatprep.subr.mxu0 0.0
    %2024 = vmatpush1.msra.mxu0 0.0
    %2025 = vmatprep.subr.mxu0 0.0
    %2026 = vmatpush1.msra.mxu0 0.0
    %2027 = vmatprep.subr.mxu0 0.0
    %2028 = vmatpush1.msra.mxu0 0.0
    %2029 = vmatprep.subr.mxu0 0.0
    %2030 = vmatpush1.msra.mxu0 0.0
    %2031 = vmatprep.subr.mxu0 0.0
    %2032 = vmatpush1.msra.mxu0 0.0
    %2033 = vmatprep.subr.mxu0 0.0
    %2034 = vmatpush1.msra.mxu0 0.0
    %2035 = vmatprep.subr.mxu0 0.0
    %2036 = vmatpush1.msra.mxu0 0.0
    %2037 = vmatprep.subr.mxu0 0.0
    %2038 = vmatpush1.msra.mxu0 0.0
    %2039 = vmatprep.subr.mxu0 0.0
    %2040 = vmatpush1.msra.mxu0 0.0
    %2041 = vmatprep.subr.mxu0 0.0
    %2042 = vmatpush1.msra.mxu0 0.0
    %2043 = vmatprep.subr.mxu0 0.0
    %2044 = vmatpush1.msra.mxu0 0.0
    %2045 = vmatprep.subr.mxu0 0.0
    %2046 = vmatpush1.msra.mxu0 0.0
    %2047 = vmatprep.subr.mxu0 0.0
    %2048 = vmatpush1.msra.mxu0 0.0
    %2049 = vmatprep.mubr.f32.mxu0 0.0
    %2050 = vmatmul.mubr.f32.gmra.mrb[0].mxu0 %v1973
    %v2051 = vpop.f32.mrb[0].mxu0
    %v2052 = vadd.f32 0.0, %v2051
    %v2053 = vpop.f32.mrb[0].mxu0
    %v2054 = vadd.f32 0.0, %v2053
    %2055 = vmatprep.mubr.f32.mxu0 0.0
    %2056 = vmatmul.mubr.f32.gmra.mrb[0].mxu0 %v1975
    %v2057 = vpop.f32.mrb[0].mxu0
    %v2058 = vadd.f32 0.0, %v2057
    %v2059 = vpop.f32.mrb[0].mxu0
    %v2060 = vadd.f32 0.0, %v2059
    %2061 = vmatprep.mubr.f32.mxu0 0.0
    %2062 = vmatmul.mubr.f32.gmra.mrb[0].mxu0 %v1977
    %v2063 = vpop.f32.mrb[0].mxu0
    %v2064 = vadd.f32 0.0, %v2063
    %v2065 = vpop.f32.mrb[0].mxu0
    %v2066 = vadd.f32 0.0, %v2065
    %2067 = vdwg.mxu0
    %v2068 = vsel %vm92, %v1942, 0
    %v2070 = vsel %vm92, %v1943, 0
    %v2072 = vsel %vm92, %v1944, 0
    %v2075 = vsel %vm99, %v1952, 0
    %v2078 = vsel %vm99, %v1953, 0
    %2080 = vmatprep.subr.mxu0 %v1947
    %2081 = vmatpush1.msra.mxu0 %v1946
    %2082 = vmatprep.subr.mxu0 %v1949
    %2083 = vmatpush1.msra.mxu0 %v1948
    %2084 = vmatprep.subr.mxu0 %v1951
    %2085 = vmatpush1.msra.mxu0 %v1950
    %2086 = vmatprep.subr.mxu0 %v2078
    %2087 = vmatpush1.msra.mxu0 %v2075
    %2088 = vmatprep.subr.mxu0 0.0
    %2089 = vmatpush1.msra.mxu0 0.0
    %2090 = vmatprep.subr.mxu0 0.0
    %2091 = vmatpush1.msra.mxu0 0.0
    %2092 = vmatprep.subr.mxu0 0.0
    %2093 = vmatpush1.msra.mxu0 0.0
    %2094 = vmatprep.subr.mxu0 0.0
    %2095 = vmatpush1.msra.mxu0 0.0
    %2096 = vmatprep.subr.mxu0 0.0
    %2097 = vmatpush1.msra.mxu0 0.0
    %2098 = vmatprep.subr.mxu0 0.0
    %2099 = vmatpush1.msra.mxu0 0.0
    %2100 = vmatprep.subr.mxu0 0.0
    %2101 = vmatpush1.msra.mxu0 0.0
    %2102 = vmatprep.subr.mxu0 0.0
    %2103 = vmatpush1.msra.mxu0 0.0
    %2104 = vmatprep.subr.mxu0 0.0
    %2105 = vmatpush1.msra.mxu0 0.0
    %2106 = vmatprep.subr.mxu0 0.0
    %2107 = vmatpush1.msra.mxu0 0.0
    %2108 = vmatprep.subr.mxu0 0.0
    %2109 = vmatpush1.msra.mxu0 0.0
    %2110 = vmatprep.subr.mxu0 0.0
    %2111 = vmatpush1.msra.mxu0 0.0
    %2112 = vmatprep.subr.mxu0 0.0
    %2113 = vmatpush1.msra.mxu0 0.0
    %2114 = vmatprep.subr.mxu0 0.0
    %2115 = vmatpush1.msra.mxu0 0.0
    %2116 = vmatprep.subr.mxu0 0.0
    %2117 = vmatpush1.msra.mxu0 0.0
    %2118 = vmatprep.subr.mxu0 0.0
    %2119 = vmatpush1.msra.mxu0 0.0
    %2120 = vmatprep.subr.mxu0 0.0
    %2121 = vmatpush1.msra.mxu0 0.0
    %2122 = vmatprep.subr.mxu0 0.0
    %2123 = vmatpush1.msra.mxu0 0.0
    %2124 = vmatprep.subr.mxu0 0.0
    %2125 = vmatpush1.msra.mxu0 0.0
    %2126 = vmatprep.subr.mxu0 0.0
    %2127 = vmatpush1.msra.mxu0 0.0
    %2128 = vmatprep.subr.mxu0 0.0
    %2129 = vmatpush1.msra.mxu0 0.0
    %2130 = vmatprep.subr.mxu0 0.0
    %2131 = vmatpush1.msra.mxu0 0.0
    %2132 = vmatprep.subr.mxu0 0.0
    %2133 = vmatpush1.msra.mxu0 0.0
    %2134 = vmatprep.subr.mxu0 0.0
    %2135 = vmatpush1.msra.mxu0 0.0
    %2136 = vmatprep.subr.mxu0 0.0
    %2137 = vmatpush1.msra.mxu0 0.0
    %2138 = vmatprep.subr.mxu0 0.0
    %2139 = vmatpush1.msra.mxu0 0.0
    %2140 = vmatprep.subr.mxu0 0.0
    %2141 = vmatpush1.msra.mxu0 0.0
    %2142 = vmatprep.subr.mxu0 0.0
    %2143 = vmatpush1.msra.mxu0 0.0
    %2144 = vmatprep.mubr.f32.mxu0 0.0
    %2145 = vmatmul.mubr.f32.gmra.mrb[0].mxu0 %v2068
    %v2146 = vpop.f32.mrb[0].mxu0
    %v2147 = vadd.f32 %v2052, %v2146
    %v2148 = vpop.f32.mrb[0].mxu0
    %v2149 = vadd.f32 %v2054, %v2148
    %2150 = vmatprep.mubr.f32.mxu0 0.0
    %2151 = vmatmul.mubr.f32.gmra.mrb[0].mxu0 %v2070
    %v2152 = vpop.f32.mrb[0].mxu0
    %v2153 = vadd.f32 %v2058, %v2152
    %v2154 = vpop.f32.mrb[0].mxu0
    %v2155 = vadd.f32 %v2060, %v2154
    %2156 = vmatprep.mubr.f32.mxu0 0.0
    %2157 = vmatmul.mubr.f32.gmra.mrb[0].mxu0 %v2072
    %v2158 = vpop.f32.mrb[0].mxu0
    %v2159 = vadd.f32 %v2064, %v2158
    %v2160 = vpop.f32.mrb[0].mxu0
    %v2161 = vadd.f32 %v2066, %v2160
    %2162 = vdwg.mxu0
    %v2163 = vld [vmem:[%s284] sm:$0xff]
    %v2164 = vld [vmem:[%s284 + $0x8] sm:$0xff]
    %v2165 = vld [vmem:[%s284 + $0x10] sm:$0xff]
    %v2166 = vld [vmem:[%s284 + $0x18] sm:$0xff]
    %v2167 = vld [vmem:[%s284 + $0x20] sm:$0xff]
    %v2168 = vld [vmem:[%s284 + $0x28] sm:$0xff]
    %v2169 = vld [vmem:[%s284 + $0x30] sm:$0xf]
    %v2170 = vld [vmem:[%s284 + $0x38] sm:$0xf]
    %v2171 = vrot.slane %v1942, 2
    %v2172 = vrot.slane %v1943, 2
    %v2173 = vsel %vm293, %v2171, %v2172
    %v2174 = vrot.slane %v1944, 2
    %v2175 = vsel %vm293, %v2172, %v2174
    %v2176 = vrot.slane %v1945, 2
    %v2177 = vsel %vm293, %v2174, %v2176
    %v2178 = vsel %vm92, %v2173, 0
    %v2180 = vsel %vm92, %v2175, 0
    %v2182 = vsel %vm92, %v2177, 0
    %v2185 = vsel %vm99, %v2169, 0
    %v2188 = vsel %vm99, %v2170, 0
    %2190 = vmatprep.subr.mxu0 %v2164
    %2191 = vmatpush1.msra.mxu0 %v2163
    %2192 = vmatprep.subr.mxu0 %v2166
    %2193 = vmatpush1.msra.mxu0 %v2165
    %2194 = vmatprep.subr.mxu0 %v2168
    %2195 = vmatpush1.msra.mxu0 %v2167
    %2196 = vmatprep.subr.mxu0 %v2188
    %2197 = vmatpush1.msra.mxu0 %v2185
    %2198 = vmatprep.subr.mxu0 0.0
    %2199 = vmatpush1.msra.mxu0 0.0
    %2200 = vmatprep.subr.mxu0 0.0
    %2201 = vmatpush1.msra.mxu0 0.0
    %2202 = vmatprep.subr.mxu0 0.0
    %2203 = vmatpush1.msra.mxu0 0.0
    %2204 = vmatprep.subr.mxu0 0.0
    %2205 = vmatpush1.msra.mxu0 0.0
    %2206 = vmatprep.subr.mxu0 0.0
    %2207 = vmatpush1.msra.mxu0 0.0
    %2208 = vmatprep.subr.mxu0 0.0
    %2209 = vmatpush1.msra.mxu0 0.0
    %2210 = vmatprep.subr.mxu0 0.0
    %2211 = vmatpush1.msra.mxu0 0.0
    %2212 = vmatprep.subr.mxu0 0.0
    %2213 = vmatpush1.msra.mxu0 0.0
    %2214 = vmatprep.subr.mxu0 0.0
    %2215 = vmatpush1.msra.mxu0 0.0
    %2216 = vmatprep.subr.mxu0 0.0
    %2217 = vmatpush1.msra.mxu0 0.0
    %2218 = vmatprep.subr.mxu0 0.0
    %2219 = vmatpush1.msra.mxu0 0.0
    %2220 = vmatprep.subr.mxu0 0.0
    %2221 = vmatpush1.msra.mxu0 0.0
    %2222 = vmatprep.subr.mxu0 0.0
    %2223 = vmatpush1.msra.mxu0 0.0
    %2224 = vmatprep.subr.mxu0 0.0
    %2225 = vmatpush1.msra.mxu0 0.0
    %2226 = vmatprep.subr.mxu0 0.0
    %2227 = vmatpush1.msra.mxu0 0.0
    %2228 = vmatprep.subr.mxu0 0.0
    %2229 = vmatpush1.msra.mxu0 0.0
    %2230 = vmatprep.subr.mxu0 0.0
    %2231 = vmatpush1.msra.mxu0 0.0
    %2232 = vmatprep.subr.mxu0 0.0
    %2233 = vmatpush1.msra.mxu0 0.0
    %2234 = vmatprep.subr.mxu0 0.0
    %2235 = vmatpush1.msra.mxu0 0.0
    %2236 = vmatprep.subr.mxu0 0.0
    %2237 = vmatpush1.msra.mxu0 0.0
    %2238 = vmatprep.subr.mxu0 0.0
    %2239 = vmatpush1.msra.mxu0 0.0
    %2240 = vmatprep.subr.mxu0 0.0
    %2241 = vmatpush1.msra.mxu0 0.0
    %2242 = vmatprep.subr.mxu0 0.0
    %2243 = vmatpush1.msra.mxu0 0.0
    %2244 = vmatprep.subr.mxu0 0.0
    %2245 = vmatpush1.msra.mxu0 0.0
    %2246 = vmatprep.subr.mxu0 0.0
    %2247 = vmatpush1.msra.mxu0 0.0
    %2248 = vmatprep.subr.mxu0 0.0
    %2249 = vmatpush1.msra.mxu0 0.0
    %2250 = vmatprep.subr.mxu0 0.0
    %2251 = vmatpush1.msra.mxu0 0.0
    %2252 = vmatprep.subr.mxu0 0.0
    %2253 = vmatpush1.msra.mxu0 0.0
    %2254 = vmatprep.mubr.f32.mxu0 0.0
    %2255 = vmatmul.mubr.f32.gmra.mrb[0].mxu0 %v2178
    %v2256 = vpop.f32.mrb[0].mxu0
    %v2257 = vadd.f32 0.0, %v2256
    %v2258 = vpop.f32.mrb[0].mxu0
    %v2259 = vadd.f32 0.0, %v2258
    %2260 = vmatprep.mubr.f32.mxu0 0.0
    %2261 = vmatmul.mubr.f32.gmra.mrb[0].mxu0 %v2180
    %v2262 = vpop.f32.mrb[0].mxu0
    %v2263 = vadd.f32 0.0, %v2262
    %v2264 = vpop.f32.mrb[0].mxu0
    %v2265 = vadd.f32 0.0, %v2264
    %2266 = vmatprep.mubr.f32.mxu0 0.0
    %2267 = vmatmul.mubr.f32.gmra.mrb[0].mxu0 %v2182
    %v2268 = vpop.f32.mrb[0].mxu0
    %v2269 = vadd.f32 0.0, %v2268
    %v2270 = vpop.f32.mrb[0].mxu0
    %v2271 = vadd.f32 0.0, %v2270
    %2272 = vdwg.mxu0
    %v2273 = vadd.f32 %v2147, %v2257
    %v2274 = vadd.f32 %v2149, %v2259
    %v2275 = vadd.f32 %v2153, %v2263
    %v2276 = vadd.f32 %v2155, %v2265
    %v2277 = vadd.f32 %v2159, %v2269
    %v2278 = vadd.f32 %v2161, %v2271
    %v2279 = vld [vmem:[%s402] sm:$0xff]
    %v2280 = vld [vmem:[%s402 + $0x8] sm:$0xff]
    %v2281 = vld [vmem:[%s402 + $0x10] sm:$0xff]
    %v2282 = vld [vmem:[%s402 + $0x18] sm:$0xff]
    %v2283 = vld [vmem:[%s402 + $0x20] sm:$0xff]
    %v2284 = vld [vmem:[%s402 + $0x28] sm:$0xff]
    %v2285 = vld [vmem:[%s402 + $0x30] sm:$0xf]
    %v2286 = vld [vmem:[%s402 + $0x38] sm:$0xf]
    %v2287 = vrot.slane %v1942, 3
    %v2288 = vrot.slane %v1943, 3
    %v2289 = vsel %vm411, %v2287, %v2288
    %v2290 = vrot.slane %v1944, 3
    %v2291 = vsel %vm411, %v2288, %v2290
    %v2292 = vrot.slane %v1945, 3
    %v2293 = vsel %vm411, %v2290, %v2292
    %v2294 = vsel %vm92, %v2289, 0
    %v2296 = vsel %vm92, %v2291, 0
    %v2298 = vsel %vm92, %v2293, 0
    %v2301 = vsel %vm99, %v2285, 0
    %v2304 = vsel %vm99, %v2286, 0
    %2306 = vmatprep.subr.mxu0 %v2280
    %2307 = vmatpush1.msra.mxu0 %v2279
    %2308 = vmatprep.subr.mxu0 %v2282
    %2309 = vmatpush1.msra.mxu0 %v2281
    %2310 = vmatprep.subr.mxu0 %v2284
    %2311 = vmatpush1.msra.mxu0 %v2283
    %2312 = vmatprep.subr.mxu0 %v2304
    %2313 = vmatpush1.msra.mxu0 %v2301
    %2314 = vmatprep.subr.mxu0 0.0
    %2315 = vmatpush1.msra.mxu0 0.0
    %2316 = vmatprep.subr.mxu0 0.0
    %2317 = vmatpush1.msra.mxu0 0.0
    %2318 = vmatprep.subr.mxu0 0.0
    %2319 = vmatpush1.msra.mxu0 0.0
    %2320 = vmatprep.subr.mxu0 0.0
    %2321 = vmatpush1.msra.mxu0 0.0
    %2322 = vmatprep.subr.mxu0 0.0
    %2323 = vmatpush1.msra.mxu0 0.0
    %2324 = vmatprep.subr.mxu0 0.0
    %2325 = vmatpush1.msra.mxu0 0.0
    %2326 = vmatprep.subr.mxu0 0.0
    %2327 = vmatpush1.msra.mxu0 0.0
    %2328 = vmatprep.subr.mxu0 0.0
    %2329 = vmatpush1.msra.mxu0 0.0
    %2330 = vmatprep.subr.mxu0 0.0
    %2331 = vmatpush1.msra.mxu0 0.0
    %2332 = vmatprep.subr.mxu0 0.0
    %2333 = vmatpush1.msra.mxu0 0.0
    %2334 = vmatprep.subr.mxu0 0.0
    %2335 = vmatpush1.msra.mxu0 0.0
    %2336 = vmatprep.subr.mxu0 0.0
    %2337 = vmatpush1.msra.mxu0 0.0
    %2338 = vmatprep.subr.mxu0 0.0
    %2339 = vmatpush1.msra.mxu0 0.0
    %2340 = vmatprep.subr.mxu0 0.0
    %2341 = vmatpush1.msra.mxu0 0.0
    %2342 = vmatprep.subr.mxu0 0.0
    %2343 = vmatpush1.msra.mxu0 0.0
    %2344 = vmatprep.subr.mxu0 0.0
    %2345 = vmatpush1.msra.mxu0 0.0
    %2346 = vmatprep.subr.mxu0 0.0
    %2347 = vmatpush1.msra.mxu0 0.0
    %2348 = vmatprep.subr.mxu0 0.0
    %2349 = vmatpush1.msra.mxu0 0.0
    %2350 = vmatprep.subr.mxu0 0.0
    %2351 = vmatpush1.msra.mxu0 0.0
    %2352 = vmatprep.subr.mxu0 0.0
    %2353 = vmatpush1.msra.mxu0 0.0
    %2354 = vmatprep.subr.mxu0 0.0
    %2355 = vmatpush1.msra.mxu0 0.0
    %2356 = vmatprep.subr.mxu0 0.0
    %2357 = vmatpush1.msra.mxu0 0.0
    %2358 = vmatprep.subr.mxu0 0.0
    %2359 = vmatpush1.msra.mxu0 0.0
    %2360 = vmatprep.subr.mxu0 0.0
    %2361 = vmatpush1.msra.mxu0 0.0
    %2362 = vmatprep.subr.mxu0 0.0
    %2363 = vmatpush1.msra.mxu0 0.0
    %2364 = vmatprep.subr.mxu0 0.0
    %2365 = vmatpush1.msra.mxu0 0.0
    %2366 = vmatprep.subr.mxu0 0.0
    %2367 = vmatpush1.msra.mxu0 0.0
    %2368 = vmatprep.subr.mxu0 0.0
    %2369 = vmatpush1.msra.mxu0 0.0
    %2370 = vmatprep.mubr.f32.mxu0 0.0
    %2371 = vmatmul.mubr.f32.gmra.mrb[0].mxu0 %v2294
    %v2372 = vpop.f32.mrb[0].mxu0
    %v2373 = vadd.f32 0.0, %v2372
    %v2374 = vpop.f32.mrb[0].mxu0
    %v2375 = vadd.f32 0.0, %v2374
    %2376 = vmatprep.mubr.f32.mxu0 0.0
    %2377 = vmatmul.mubr.f32.gmra.mrb[0].mxu0 %v2296
    %v2378 = vpop.f32.mrb[0].mxu0
    %v2379 = vadd.f32 0.0, %v2378
    %v2380 = vpop.f32.mrb[0].mxu0
    %v2381 = vadd.f32 0.0, %v2380
    %2382 = vmatprep.mubr.f32.mxu0 0.0
    %2383 = vmatmul.mubr.f32.gmra.mrb[0].mxu0 %v2298
    %v2384 = vpop.f32.mrb[0].mxu0
    %v2385 = vadd.f32 0.0, %v2384
    %v2386 = vpop.f32.mrb[0].mxu0
    %v2387 = vadd.f32 0.0, %v2386
    %2388 = vdwg.mxu0
    %v2389 = vadd.f32 %v2273, %v2373
    %v2390 = vadd.f32 %v2274, %v2375
    %v2391 = vadd.f32 %v2275, %v2379
    %v2392 = vadd.f32 %v2276, %v2381
    %v2393 = vadd.f32 %v2277, %v2385
    %v2394 = vadd.f32 %v2278, %v2387
    %v2395 = vld [vmem:[%s520] sm:$0xff]
    %v2396 = vld [vmem:[%s520 + $0x8] sm:$0xff]
    %v2397 = vld [vmem:[%s520 + $0x10] sm:$0xff]
    %v2398 = vld [vmem:[%s520 + $0x18] sm:$0xff]
    %v2399 = vld [vmem:[%s520 + $0x20] sm:$0xff]
    %v2400 = vld [vmem:[%s520 + $0x28] sm:$0xff]
    %v2401 = vld [vmem:[%s520 + $0x30] sm:$0xf]
    %v2402 = vld [vmem:[%s520 + $0x38] sm:$0xf]
    %v2403 = vrot.slane %v1942, 4
    %v2404 = vrot.slane %v1943, 4
    %v2405 = vsel %vm99, %v2403, %v2404
    %v2406 = vrot.slane %v1944, 4
    %v2407 = vsel %vm99, %v2404, %v2406
    %v2408 = vrot.slane %v1945, 4
    %v2409 = vsel %vm99, %v2406, %v2408
    %v2410 = vsel %vm92, %v2405, 0
    %v2412 = vsel %vm92, %v2407, 0
    %v2414 = vsel %vm92, %v2409, 0
    %v2417 = vsel %vm99, %v2401, 0
    %v2420 = vsel %vm99, %v2402, 0
    %2422 = vmatprep.subr.mxu0 %v2396
    %2423 = vmatpush1.msra.mxu0 %v2395
    %2424 = vmatprep.subr.mxu0 %v2398
    %2425 = vmatpush1.msra.mxu0 %v2397
    %2426 = vmatprep.subr.mxu0 %v2400
    %2427 = vmatpush1.msra.mxu0 %v2399
    %2428 = vmatprep.subr.mxu0 %v2420
    %2429 = vmatpush1.msra.mxu0 %v2417
    %2430 = vmatprep.subr.mxu0 0.0
    %2431 = vmatpush1.msra.mxu0 0.0
    %2432 = vmatprep.subr.mxu0 0.0
    %2433 = vmatpush1.msra.mxu0 0.0
    %2434 = vmatprep.subr.mxu0 0.0
    %2435 = vmatpush1.msra.mxu0 0.0
    %2436 = vmatprep.subr.mxu0 0.0
    %2437 = vmatpush1.msra.mxu0 0.0
    %2438 = vmatprep.subr.mxu0 0.0
    %2439 = vmatpush1.msra.mxu0 0.0
    %2440 = vmatprep.subr.mxu0 0.0
    %2441 = vmatpush1.msra.mxu0 0.0
    %2442 = vmatprep.subr.mxu0 0.0
    %2443 = vmatpush1.msra.mxu0 0.0
    %2444 = vmatprep.subr.mxu0 0.0
    %2445 = vmatpush1.msra.mxu0 0.0
    %2446 = vmatprep.subr.mxu0 0.0
    %2447 = vmatpush1.msra.mxu0 0.0
    %2448 = vmatprep.subr.mxu0 0.0
    %2449 = vmatpush1.msra.mxu0 0.0
    %2450 = vmatprep.subr.mxu0 0.0
    %2451 = vmatpush1.msra.mxu0 0.0
    %2452 = vmatprep.subr.mxu0 0.0
    %2453 = vmatpush1.msra.mxu0 0.0
    %2454 = vmatprep.subr.mxu0 0.0
    %2455 = vmatpush1.msra.mxu0 0.0
    %2456 = vmatprep.subr.mxu0 0.0
    %2457 = vmatpush1.msra.mxu0 0.0
    %2458 = vmatprep.subr.mxu0 0.0
    %2459 = vmatpush1.msra.mxu0 0.0
    %2460 = vmatprep.subr.mxu0 0.0
    %2461 = vmatpush1.msra.mxu0 0.0
    %2462 = vmatprep.subr.mxu0 0.0
    %2463 = vmatpush1.msra.mxu0 0.0
    %2464 = vmatprep.subr.mxu0 0.0
    %2465 = vmatpush1.msra.mxu0 0.0
    %2466 = vmatprep.subr.mxu0 0.0
    %2467 = vmatpush1.msra.mxu0 0.0
    %2468 = vmatprep.subr.mxu0 0.0
    %2469 = vmatpush1.msra.mxu0 0.0
    %2470 = vmatprep.subr.mxu0 0.0
    %2471 = vmatpush1.msra.mxu0 0.0
    %2472 = vmatprep.subr.mxu0 0.0
    %2473 = vmatpush1.msra.mxu0 0.0
    %2474 = vmatprep.subr.mxu0 0.0
    %2475 = vmatpush1.msra.mxu0 0.0
    %2476 = vmatprep.subr.mxu0 0.0
    %2477 = vmatpush1.msra.mxu0 0.0
    %2478 = vmatprep.subr.mxu0 0.0
    %2479 = vmatpush1.msra.mxu0 0.0
    %2480 = vmatprep.subr.mxu0 0.0
    %2481 = vmatpush1.msra.mxu0 0.0
    %2482 = vmatprep.subr.mxu0 0.0
    %2483 = vmatpush1.msra.mxu0 0.0
    %2484 = vmatprep.subr.mxu0 0.0
    %2485 = vmatpush1.msra.mxu0 0.0
    %2486 = vmatprep.mubr.f32.mxu0 0.0
    %2487 = vmatmul.mubr.f32.gmra.mrb[0].mxu0 %v2410
    %v2488 = vpop.f32.mrb[0].mxu0
    %v2489 = vadd.f32 0.0, %v2488
    %v2490 = vpop.f32.mrb[0].mxu0
    %v2491 = vadd.f32 0.0, %v2490
    %2492 = vmatprep.mubr.f32.mxu0 0.0
    %2493 = vmatmul.mubr.f32.gmra.mrb[0].mxu0 %v2412
    %v2494 = vpop.f32.mrb[0].mxu0
    %v2495 = vadd.f32 0.0, %v2494
    %v2496 = vpop.f32.mrb[0].mxu0
    %v2497 = vadd.f32 0.0, %v2496
    %2498 = vmatprep.mubr.f32.mxu0 0.0
    %2499 = vmatmul.mubr.f32.gmra.mrb[0].mxu0 %v2414
    %v2500 = vpop.f32.mrb[0].mxu0
    %v2501 = vadd.f32 0.0, %v2500
    %v2502 = vpop.f32.mrb[0].mxu0
    %v2503 = vadd.f32 0.0, %v2502
    %2504 = vdwg.mxu0
    %v2505 = vadd.f32 %v2389, %v2489
    %v2506 = vadd.f32 %v2390, %v2491
    %v2507 = vadd.f32 %v2391, %v2495
    %v2508 = vadd.f32 %v2392, %v2497
    %v2509 = vadd.f32 %v2393, %v2501
    %v2510 = vadd.f32 %v2394, %v2503
    %v2511 = vld [vmem:[%s2] sm:$0x3]
    %v2513 = vlaneseq
    %v2514 = vshrl.u32 %v2513, 7
    %v2515 = vsub.s32 0, %v2514
    %v2516 = vrot.slane %v2511, %v2515
    %v2517 = vlaneseq
    %v2518 = vshrl.u32 %v2517, 7
    %v2519 = vsub.s32 1, %v2518
    %v2520 = vrot.slane %v2511, %v2519
    %v2523 = vadd.f32 %v2505, %v2516
    %v2524 = vadd.f32 %v2506, %v2520
    %v2525 = vadd.f32 %v2507, %v2516
    %v2526 = vadd.f32 %v2508, %v2520
    %v2527 = vadd.f32 %v2509, %v2516
    %v2528 = vadd.f32 %v2510, %v2520
    %v2529 = vld [vmem:[%s3] sm:$0xff]
    %v2530 = vld [vmem:[%s3 + $0x8] sm:$0xff]
    %v2531 = vld [vmem:[%s3 + $0x10] sm:$0xff]
    %v2532 = vld [vmem:[%s3 + $0x18] sm:$0xff]
    %v2533 = vld [vmem:[%s3 + $0x20] sm:$0xff]
    %v2534 = vld [vmem:[%s3 + $0x28] sm:$0xff]
    %v2535 = vld [vmem:[%s3 + $0x30] sm:$0xff]
    %v2536 = vld [vmem:[%s3 + $0x38] sm:$0xff]
    %v2537 = vld [vmem:[%s3 + $0x40] sm:$0xff]
    %v2538 = vld [vmem:[%s3 + $0x48] sm:$0xff]
    %v2539 = vld [vmem:[%s3 + $0x50] sm:$0xff]
    %v2540 = vld [vmem:[%s3 + $0x58] sm:$0xff]
    %v2541 = vld [vmem:[%s3 + $0x60] sm:$0xff]
    %v2542 = vld [vmem:[%s3 + $0x68] sm:$0xff]
    %v2543 = vld [vmem:[%s3 + $0x70] sm:$0xff]
    %v2544 = vld [vmem:[%s3 + $0x78] sm:$0xff]
    %v2545 = vld [vmem:[%s3 + $0x80] sm:$0xff]
    %v2546 = vld [vmem:[%s3 + $0x88] sm:$0xff]
    %v2547 = vld [vmem:[%s3 + $0x90] sm:$0xff]
    %v2548 = vld [vmem:[%s3 + $0x98] sm:$0xff]
    %v2549 = vld [vmem:[%s3 + $0xa0] sm:$0xff]
    %v2550 = vld [vmem:[%s3 + $0xa8] sm:$0xff]
    %v2551 = vld [vmem:[%s3 + $0xb0] sm:$0xff]
    %v2552 = vld [vmem:[%s3 + $0xb8] sm:$0xff]
    %v2554 = vsel %vm679, %v2524, 0
    %v2557 = vsel %vm679, %v2526, 0
    %v2560 = vsel %vm679, %v2528, 0
    %2562 = vmatprep.subr.mxu0 0.0
    %2563 = vmatpush1.msra.mxu0 %v2529
    %2564 = vmatprep.subr.mxu0 0.0
    %2565 = vmatpush1.msra.mxu0 %v2530
    %2566 = vmatprep.subr.mxu0 0.0
    %2567 = vmatpush1.msra.mxu0 %v2531
    %2568 = vmatprep.subr.mxu0 0.0
    %2569 = vmatpush1.msra.mxu0 %v2532
    %2570 = vmatprep.subr.mxu0 0.0
    %2571 = vmatpush1.msra.mxu0 %v2533
    %2572 = vmatprep.subr.mxu0 0.0
    %2573 = vmatpush1.msra.mxu0 %v2534
    %2574 = vmatprep.subr.mxu0 0.0
    %2575 = vmatpush1.msra.mxu0 %v2535
    %2576 = vmatprep.subr.mxu0 0.0
    %2577 = vmatpush1.msra.mxu0 %v2536
    %2578 = vmatprep.subr.mxu0 0.0
    %2579 = vmatpush1.msra.mxu0 %v2537
    %2580 = vmatprep.subr.mxu0 0.0
    %2581 = vmatpush1.msra.mxu0 %v2538
    %2582 = vmatprep.subr.mxu0 0.0
    %2583 = vmatpush1.msra.mxu0 %v2539
    %2584 = vmatprep.subr.mxu0 0.0
    %2585 = vmatpush1.msra.mxu0 %v2540
    %2586 = vmatprep.subr.mxu0 0.0
    %2587 = vmatpush1.msra.mxu0 %v2541
    %2588 = vmatprep.subr.mxu0 0.0
    %2589 = vmatpush1.msra.mxu0 %v2542
    %2590 = vmatprep.subr.mxu0 0.0
    %2591 = vmatpush1.msra.mxu0 %v2543
    %2592 = vmatprep.subr.mxu0 0.0
    %2593 = vmatpush1.msra.mxu0 %v2544
    %2594 = vmatprep.subr.mxu0 0.0
    %2595 = vmatpush1.msra.mxu0 %v2545
    %2596 = vmatprep.subr.mxu0 0.0
    %2597 = vmatpush1.msra.mxu0 %v2546
    %2598 = vmatprep.subr.mxu0 0.0
    %2599 = vmatpush1.msra.mxu0 %v2547
    %2600 = vmatprep.subr.mxu0 0.0
    %2601 = vmatpush1.msra.mxu0 %v2548
    %2602 = vmatprep.subr.mxu0 0.0
    %2603 = vmatpush1.msra.mxu0 %v2549
    %2604 = vmatprep.subr.mxu0 0.0
    %2605 = vmatpush1.msra.mxu0 %v2550
    %2606 = vmatprep.subr.mxu0 0.0
    %2607 = vmatpush1.msra.mxu0 %v2551
    %2608 = vmatprep.subr.mxu0 0.0
    %2609 = vmatpush1.msra.mxu0 %v2552
    %2610 = vmatprep.subr.mxu0 0.0
    %2611 = vmatpush1.msra.mxu0 0.0
    %2612 = vmatprep.subr.mxu0 0.0
    %2613 = vmatpush1.msra.mxu0 0.0
    %2614 = vmatprep.subr.mxu0 0.0
    %2615 = vmatpush1.msra.mxu0 0.0
    %2616 = vmatprep.subr.mxu0 0.0
    %2617 = vmatpush1.msra.mxu0 0.0
    %2618 = vmatprep.subr.mxu0 0.0
    %2619 = vmatpush1.msra.mxu0 0.0
    %2620 = vmatprep.subr.mxu0 0.0
    %2621 = vmatpush1.msra.mxu0 0.0
    %2622 = vmatprep.subr.mxu0 0.0
    %2623 = vmatpush1.msra.mxu0 0.0
    %2624 = vmatprep.subr.mxu0 0.0
    %2625 = vmatpush1.msra.mxu0 0.0
    %2626 = vmatprep.mubr.f32.mxu0 %v2554
    %2627 = vmatmul.mubr.f32.gmra.mrb[0].mxu0 %v2523
    %v2628 = vpop.f32.mrb[0].mxu0
    %v2629 = vadd.f32 0.0, %v2628
    %v2630 = vpop.f32.mrb[0].mxu0
    %2631 = vmatprep.mubr.f32.mxu0 %v2557
    %2632 = vmatmul.mubr.f32.gmra.mrb[0].mxu0 %v2525
    %v2633 = vpop.f32.mrb[0].mxu0
    %v2634 = vadd.f32 0.0, %v2633
    %v2635 = vpop.f32.mrb[0].mxu0
    %2636 = vmatprep.mubr.f32.mxu0 %v2560
    %2637 = vmatmul.mubr.f32.gmra.mrb[0].mxu0 %v2527
    %v2638 = vpop.f32.mrb[0].mxu0
    %v2639 = vadd.f32 0.0, %v2638
    %v2640 = vpop.f32.mrb[0].mxu0
    %2641 = vdwg.mxu0
    %v2642 = vld [vmem:[#allocation4] sm:$0xff]
    %v2643 = vld [vmem:[#allocation4 + $0x8] sm:$0xff]
    %v2644 = vld [vmem:[#allocation4 + $0x10] sm:$0xff]
    %v2645 = vld [vmem:[#allocation4 + $0x18] sm:$0xff]
    %v2646 = vld [vmem:[#allocation4 + $0x20] sm:$0xff]
    %v2647 = vld [vmem:[#allocation4 + $0x28] sm:$0xff]
    %v2648 = vld [vmem:[#allocation4 + $0x30] sm:$0xff]
    %v2649 = vld [vmem:[#allocation4 + $0x38] sm:$0xff]
    %v2650 = vld [vmem:[#allocation4 + $0x40] sm:$0xff]
    %v2651 = vld [vmem:[#allocation4 + $0x48] sm:$0xff]
    %v2652 = vld [vmem:[#allocation4 + $0x50] sm:$0xff]
    %v2653 = vld [vmem:[#allocation4 + $0x58] sm:$0xff]
    %v2654 = vld [vmem:[#allocation4 + $0x60] sm:$0xff]
    %v2655 = vld [vmem:[#allocation4 + $0x68] sm:$0xff]
    %v2656 = vld [vmem:[#allocation4 + $0x70] sm:$0xff]
    %v2657 = vld [vmem:[#allocation4 + $0x78] sm:$0xff]
    %v2658 = vld [vmem:[#allocation4 + $0x80] sm:$0xff]
    %v2659 = vld [vmem:[#allocation4 + $0x88] sm:$0xff]
    %v2660 = vld [vmem:[#allocation4 + $0x90] sm:$0xff]
    %v2661 = vld [vmem:[#allocation4 + $0x98] sm:$0xff]
    %v2662 = vld [vmem:[#allocation4 + $0xa0] sm:$0xff]
    %v2663 = vld [vmem:[#allocation4 + $0xa8] sm:$0xff]
    %v2664 = vld [vmem:[#allocation4 + $0xb0] sm:$0xff]
    %v2665 = vld [vmem:[#allocation4 + $0xb8] sm:$0xff]
    %2666 = vmatprep.subr.mxu0 0.0
    %2667 = vmatpush1.msra.mxu0 %v2642
    %2668 = vmatprep.subr.mxu0 0.0
    %2669 = vmatpush1.msra.mxu0 %v2643
    %2670 = vmatprep.subr.mxu0 0.0
    %2671 = vmatpush1.msra.mxu0 %v2644
    %2672 = vmatprep.subr.mxu0 0.0
    %2673 = vmatpush1.msra.mxu0 %v2645
    %2674 = vmatprep.subr.mxu0 0.0
    %2675 = vmatpush1.msra.mxu0 %v2646
    %2676 = vmatprep.subr.mxu0 0.0
    %2677 = vmatpush1.msra.mxu0 %v2647
    %2678 = vmatprep.subr.mxu0 0.0
    %2679 = vmatpush1.msra.mxu0 %v2648
    %2680 = vmatprep.subr.mxu0 0.0
    %2681 = vmatpush1.msra.mxu0 %v2649
    %2682 = vmatprep.subr.mxu0 0.0
    %2683 = vmatpush1.msra.mxu0 %v2650
    %2684 = vmatprep.subr.mxu0 0.0
    %2685 = vmatpush1.msra.mxu0 %v2651
    %2686 = vmatprep.subr.mxu0 0.0
    %2687 = vmatpush1.msra.mxu0 %v2652
    %2688 = vmatprep.subr.mxu0 0.0
    %2689 = vmatpush1.msra.mxu0 %v2653
    %2690 = vmatprep.subr.mxu0 0.0
    %2691 = vmatpush1.msra.mxu0 %v2654
    %2692 = vmatprep.subr.mxu0 0.0
    %2693 = vmatpush1.msra.mxu0 %v2655
    %2694 = vmatprep.subr.mxu0 0.0
    %2695 = vmatpush1.msra.mxu0 %v2656
    %2696 = vmatprep.subr.mxu0 0.0
    %2697 = vmatpush1.msra.mxu0 %v2657
    %2698 = vmatprep.subr.mxu0 0.0
    %2699 = vmatpush1.msra.mxu0 %v2658
    %2700 = vmatprep.subr.mxu0 0.0
    %2701 = vmatpush1.msra.mxu0 %v2659
    %2702 = vmatprep.subr.mxu0 0.0
    %2703 = vmatpush1.msra.mxu0 %v2660
    %2704 = vmatprep.subr.mxu0 0.0
    %2705 = vmatpush1.msra.mxu0 %v2661
    %2706 = vmatprep.subr.mxu0 0.0
    %2707 = vmatpush1.msra.mxu0 %v2662
    %2708 = vmatprep.subr.mxu0 0.0
    %2709 = vmatpush1.msra.mxu0 %v2663
    %2710 = vmatprep.subr.mxu0 0.0
    %2711 = vmatpush1.msra.mxu0 %v2664
    %2712 = vmatprep.subr.mxu0 0.0
    %2713 = vmatpush1.msra.mxu0 %v2665
    %2714 = vmatprep.subr.mxu0 0.0
    %2715 = vmatpush1.msra.mxu0 0.0
    %2716 = vmatprep.subr.mxu0 0.0
    %2717 = vmatpush1.msra.mxu0 0.0
    %2718 = vmatprep.subr.mxu0 0.0
    %2719 = vmatpush1.msra.mxu0 0.0
    %2720 = vmatprep.subr.mxu0 0.0
    %2721 = vmatpush1.msra.mxu0 0.0
    %2722 = vmatprep.subr.mxu0 0.0
    %2723 = vmatpush1.msra.mxu0 0.0
    %2724 = vmatprep.subr.mxu0 0.0
    %2725 = vmatpush1.msra.mxu0 0.0
    %2726 = vmatprep.subr.mxu0 0.0
    %2727 = vmatpush1.msra.mxu0 0.0
    %2728 = vmatprep.subr.mxu0 0.0
    %2729 = vmatpush1.msra.mxu0 0.0
    %2730 = vmatprep.mubr.f32.mxu0 %v2554
    %2731 = vmatmul.mubr.f32.gmra.mrb[0].mxu0 %v2523
    %v2732 = vpop.f32.mrb[0].mxu0
    %v2733 = vadd.f32 0.0, %v2732
    %v2734 = vpop.f32.mrb[0].mxu0
    %2735 = vmatprep.mubr.f32.mxu0 %v2557
    %2736 = vmatmul.mubr.f32.gmra.mrb[0].mxu0 %v2525
    %v2737 = vpop.f32.mrb[0].mxu0
    %v2738 = vadd.f32 0.0, %v2737
    %v2739 = vpop.f32.mrb[0].mxu0
    %2740 = vmatprep.mubr.f32.mxu0 %v2560
    %2741 = vmatmul.mubr.f32.gmra.mrb[0].mxu0 %v2527
    %v2742 = vpop.f32.mrb[0].mxu0
    %v2743 = vadd.f32 0.0, %v2742
    %v2744 = vpop.f32.mrb[0].mxu0
    %2745 = vdwg.mxu0
    %v2746 = vmax.f32 %v2629, %v2733
    %v2747 = vmax.f32 %v2634, %v2738
    %v2748 = vmax.f32 %v2639, %v2743
    %2749 = vst.msk [vmem:[#allocation2] sm:$0xff] %vm876, %v2746
    %2750 = vst.msk [vmem:[#allocation2 + $0x8] sm:$0xff] %vm876, %v2747
    %2751 = vst.msk [vmem:[#allocation2 + $0x10] sm:$0xff] %vm876, %v2748
    %v2752 = vld [vmem:[#allocation2] ss:$2 sm:$0xff]
    %v2753 = vld [vmem:[%s881] ss:$2 sm:$0xf]
    %v2754 = vld [vmem:[%s883] ss:$2 sm:$0xff]
    %v2755 = vld [vmem:[%s885] ss:$2 sm:$0xf]
    %v2756 = vmax.f32 %v2752, %v2754
    %v2757 = vmax.f32 %v2753, %v2755
    %v2758 = vmax.f32 %v2756, 0.0
    %v2759 = vmax.f32 %v2757, 0.0
    %v2760 = vld [vmem:[%s5] sm:$0xff]
    %v2761 = vld [vmem:[%s5 + $0x8] sm:$0xff]
    %v2762 = vld [vmem:[%s5 + $0x10] sm:$0xff]
    %v2763 = vld [vmem:[%s5 + $0x18] sm:$0xff]
    %v2764 = vld [vmem:[%s5 + $0x20] sm:$0xff]
    %v2765 = vld [vmem:[%s5 + $0x28] sm:$0xff]
    %v2766 = vld [vmem:[%s5 + $0x30] sm:$0xff]
    %v2767 = vld [vmem:[%s5 + $0x38] sm:$0xff]
    %v2768 = vld [vmem:[%s5 + $0x40] sm:$0xff]
    %v2769 = vld [vmem:[%s5 + $0x48] sm:$0xff]
    %v2770 = vld [vmem:[%s5 + $0x50] sm:$0xff]
    %v2771 = vld [vmem:[%s5 + $0x58] sm:$0xff]
    %v2772 = vld [vmem:[%s903] sm:$0xff]
    %v2773 = vld [vmem:[%s903 + $0x8] sm:$0xff]
    %v2774 = vld [vmem:[%s903 + $0x10] sm:$0xff]
    %v2775 = vld [vmem:[%s903 + $0x18] sm:$0xff]
    %v2776 = vld [vmem:[%s903 + $0x20] sm:$0xff]
    %v2777 = vld [vmem:[%s903 + $0x28] sm:$0xff]
    %v2778 = vld [vmem:[%s903 + $0x30] sm:$0xff]
    %v2779 = vld [vmem:[%s903 + $0x38] sm:$0xff]
    %v2780 = vld [vmem:[%s903 + $0x40] sm:$0xff]
    %v2781 = vld [vmem:[%s903 + $0x48] sm:$0xff]
    %v2782 = vld [vmem:[%s903 + $0x50] sm:$0xff]
    %v2783 = vld [vmem:[%s903 + $0x58] sm:$0xff]
    %v2786 = vrot.slane %v2758, 1
    %v2787 = vrot.slane %v2759, 1
    %v2788 = vsel %vm84, %v2786, %v2787
    %v2789 = vsel %vm876, %v2788, 0
    %2791 = vmatprep.subr.mxu0 0.0
    %2792 = vmatpush1.msra.mxu0 %v2772
    %2793 = vmatprep.subr.mxu0 0.0
    %2794 = vmatpush1.msra.mxu0 %v2773
    %2795 = vmatprep.subr.mxu0 0.0
    %2796 = vmatpush1.msra.mxu0 %v2774
    %2797 = vmatprep.subr.mxu0 0.0
    %2798 = vmatpush1.msra.mxu0 %v2775
    %2799 = vmatprep.subr.mxu0 0.0
    %2800 = vmatpush1.msra.mxu0 %v2776
    %2801 = vmatprep.subr.mxu0 0.0
    %2802 = vmatpush1.msra.mxu0 %v2777
    %2803 = vmatprep.subr.mxu0 0.0
    %2804 = vmatpush1.msra.mxu0 %v2778
    %2805 = vmatprep.subr.mxu0 0.0
    %2806 = vmatpush1.msra.mxu0 %v2779
    %2807 = vmatprep.subr.mxu0 0.0
    %2808 = vmatpush1.msra.mxu0 %v2780
    %2809 = vmatprep.subr.mxu0 0.0
    %2810 = vmatpush1.msra.mxu0 %v2781
    %2811 = vmatprep.subr.mxu0 0.0
    %2812 = vmatpush1.msra.mxu0 %v2782
    %2813 = vmatprep.subr.mxu0 0.0
    %2814 = vmatpush1.msra.mxu0 %v2783
    %2815 = vmatprep.subr.mxu0 0.0
    %2816 = vmatpush1.msra.mxu0 0.0
    %2817 = vmatprep.subr.mxu0 0.0
    %2818 = vmatpush1.msra.mxu0 0.0
    %2819 = vmatprep.subr.mxu0 0.0
    %2820 = vmatpush1.msra.mxu0 0.0
    %2821 = vmatprep.subr.mxu0 0.0
    %2822 = vmatpush1.msra.mxu0 0.0
    %2823 = vmatprep.subr.mxu0 0.0
    %2824 = vmatpush1.msra.mxu0 0.0
    %2825 = vmatprep.subr.mxu0 0.0
    %2826 = vmatpush1.msra.mxu0 0.0
    %2827 = vmatprep.subr.mxu0 0.0
    %2828 = vmatpush1.msra.mxu0 0.0
    %2829 = vmatprep.subr.mxu0 0.0
    %2830 = vmatpush1.msra.mxu0 0.0
    %2831 = vmatprep.subr.mxu0 0.0
    %2832 = vmatpush1.msra.mxu0 0.0
    %2833 = vmatprep.subr.mxu0 0.0
    %2834 = vmatpush1.msra.mxu0 0.0
    %2835 = vmatprep.subr.mxu0 0.0
    %2836 = vmatpush1.msra.mxu0 0.0
    %2837 = vmatprep.subr.mxu0 0.0
    %2838 = vmatpush1.msra.mxu0 0.0
    %2839 = vmatprep.subr.mxu0 0.0
    %2840 = vmatpush1.msra.mxu0 0.0
    %2841 = vmatprep.subr.mxu0 0.0
    %2842 = vmatpush1.msra.mxu0 0.0
    %2843 = vmatprep.subr.mxu0 0.0
    %2844 = vmatpush1.msra.mxu0 0.0
    %2845 = vmatprep.subr.mxu0 0.0
    %2846 = vmatpush1.msra.mxu0 0.0
    %2847 = vmatprep.subr.mxu0 0.0
    %2848 = vmatpush1.msra.mxu0 0.0
    %2849 = vmatprep.subr.mxu0 0.0
    %2850 = vmatpush1.msra.mxu0 0.0
    %2851 = vmatprep.subr.mxu0 0.0
    %2852 = vmatpush1.msra.mxu0 0.0
    %2853 = vmatprep.subr.mxu0 0.0
    %2854 = vmatpush1.msra.mxu0 0.0
    %2855 = vmatprep.mubr.f32.mxu0 0.0
    %2856 = vmatmul.mubr.f32.gmra.mrb[0].mxu0 %v2789
    %v2857 = vpop.f32.mrb[0].mxu0
    %v2858 = vadd.f32 0.0, %v2857
    %v2859 = vpop.f32.mrb[0].mxu0
    %2860 = vdwg.mxu0
    %v2861 = vsel %vm876, %v2758, 0
    %2863 = vmatprep.subr.mxu0 0.0
    %2864 = vmatpush1.msra.mxu0 %v2760
    %2865 = vmatprep.subr.mxu0 0.0
    %2866 = vmatpush1.msra.mxu0 %v2761
    %2867 = vmatprep.subr.mxu0 0.0
    %2868 = vmatpush1.msra.mxu0 %v2762
    %2869 = vmatprep.subr.mxu0 0.0
    %2870 = vmatpush1.msra.mxu0 %v2763
    %2871 = vmatprep.subr.mxu0 0.0
    %2872 = vmatpush1.msra.mxu0 %v2764
    %2873 = vmatprep.subr.mxu0 0.0
    %2874 = vmatpush1.msra.mxu0 %v2765
    %2875 = vmatprep.subr.mxu0 0.0
    %2876 = vmatpush1.msra.mxu0 %v2766
    %2877 = vmatprep.subr.mxu0 0.0
    %2878 = vmatpush1.msra.mxu0 %v2767
    %2879 = vmatprep.subr.mxu0 0.0
    %2880 = vmatpush1.msra.mxu0 %v2768
    %2881 = vmatprep.subr.mxu0 0.0
    %2882 = vmatpush1.msra.mxu0 %v2769
    %2883 = vmatprep.subr.mxu0 0.0
    %2884 = vmatpush1.msra.mxu0 %v2770
    %2885 = vmatprep.subr.mxu0 0.0
    %2886 = vmatpush1.msra.mxu0 %v2771
    %2887 = vmatprep.subr.mxu0 0.0
    %2888 = vmatpush1.msra.mxu0 0.0
    %2889 = vmatprep.subr.mxu0 0.0
    %2890 = vmatpush1.msra.mxu0 0.0
    %2891 = vmatprep.subr.mxu0 0.0
    %2892 = vmatpush1.msra.mxu0 0.0
    %2893 = vmatprep.subr.mxu0 0.0
    %2894 = vmatpush1.msra.mxu0 0.0
    %2895 = vmatprep.subr.mxu0 0.0
    %2896 = vmatpush1.msra.mxu0 0.0
    %2897 = vmatprep.subr.mxu0 0.0
    %2898 = vmatpush1.msra.mxu0 0.0
    %2899 = vmatprep.subr.mxu0 0.0
    %2900 = vmatpush1.msra.mxu0 0.0
    %2901 = vmatprep.subr.mxu0 0.0
    %2902 = vmatpush1.msra.mxu0 0.0
    %2903 = vmatprep.subr.mxu0 0.0
    %2904 = vmatpush1.msra.mxu0 0.0
    %2905 = vmatprep.subr.mxu0 0.0
    %2906 = vmatpush1.msra.mxu0 0.0
    %2907 = vmatprep.subr.mxu0 0.0
    %2908 = vmatpush1.msra.mxu0 0.0
    %2909 = vmatprep.subr.mxu0 0.0
    %2910 = vmatpush1.msra.mxu0 0.0
    %2911 = vmatprep.subr.mxu0 0.0
    %2912 = vmatpush1.msra.mxu0 0.0
    %2913 = vmatprep.subr.mxu0 0.0
    %2914 = vmatpush1.msra.mxu0 0.0
    %2915 = vmatprep.subr.mxu0 0.0
    %2916 = vmatpush1.msra.mxu0 0.0
    %2917 = vmatprep.subr.mxu0 0.0
    %2918 = vmatpush1.msra.mxu0 0.0
    %2919 = vmatprep.subr.mxu0 0.0
    %2920 = vmatpush1.msra.mxu0 0.0
    %2921 = vmatprep.subr.mxu0 0.0
    %2922 = vmatpush1.msra.mxu0 0.0
    %2923 = vmatprep.subr.mxu0 0.0
    %2924 = vmatpush1.msra.mxu0 0.0
    %2925 = vmatprep.subr.mxu0 0.0
    %2926 = vmatpush1.msra.mxu0 0.0
    %2927 = vmatprep.mubr.f32.mxu0 0.0
    %2928 = vmatmul.mubr.f32.gmra.mrb[0].mxu0 %v2861
    %v2929 = vpop.f32.mrb[0].mxu0
    %v2930 = vadd.f32 %v2858, %v2929
    %v2931 = vpop.f32.mrb[0].mxu0
    %2932 = vdwg.mxu0
    %v2933 = vld [vmem:[%s1065] sm:$0xff]
    %v2934 = vld [vmem:[%s1065 + $0x8] sm:$0xff]
    %v2935 = vld [vmem:[%s1065 + $0x10] sm:$0xff]
    %v2936 = vld [vmem:[%s1065 + $0x18] sm:$0xff]
    %v2937 = vld [vmem:[%s1065 + $0x20] sm:$0xff]
    %v2938 = vld [vmem:[%s1065 + $0x28] sm:$0xff]
    %v2939 = vld [vmem:[%s1065 + $0x30] sm:$0xff]
    %v2940 = vld [vmem:[%s1065 + $0x38] sm:$0xff]
    %v2941 = vld [vmem:[%s1065 + $0x40] sm:$0xff]
    %v2942 = vld [vmem:[%s1065 + $0x48] sm:$0xff]
    %v2943 = vld [vmem:[%s1065 + $0x50] sm:$0xff]
    %v2944 = vld [vmem:[%s1065 + $0x58] sm:$0xff]
    %v2945 = vrot.slane %v2758, 2
    %v2946 = vrot.slane %v2759, 2
    %v2947 = vsel %vm293, %v2945, %v2946
    %v2948 = vsel %vm876, %v2947, 0
    %2950 = vmatprep.subr.mxu0 0.0
    %2951 = vmatpush1.msra.mxu0 %v2933
    %2952 = vmatprep.subr.mxu0 0.0
    %2953 = vmatpush1.msra.mxu0 %v2934
    %2954 = vmatprep.subr.mxu0 0.0
    %2955 = vmatpush1.msra.mxu0 %v2935
    %2956 = vmatprep.subr.mxu0 0.0
    %2957 = vmatpush1.msra.mxu0 %v2936
    %2958 = vmatprep.subr.mxu0 0.0
    %2959 = vmatpush1.msra.mxu0 %v2937
    %2960 = vmatprep.subr.mxu0 0.0
    %2961 = vmatpush1.msra.mxu0 %v2938
    %2962 = vmatprep.subr.mxu0 0.0
    %2963 = vmatpush1.msra.mxu0 %v2939
    %2964 = vmatprep.subr.mxu0 0.0
    %2965 = vmatpush1.msra.mxu0 %v2940
    %2966 = vmatprep.subr.mxu0 0.0
    %2967 = vmatpush1.msra.mxu0 %v2941
    %2968 = vmatprep.subr.mxu0 0.0
    %2969 = vmatpush1.msra.mxu0 %v2942
    %2970 = vmatprep.subr.mxu0 0.0
    %2971 = vmatpush1.msra.mxu0 %v2943
    %2972 = vmatprep.subr.mxu0 0.0
    %2973 = vmatpush1.msra.mxu0 %v2944
    %2974 = vmatprep.subr.mxu0 0.0
    %2975 = vmatpush1.msra.mxu0 0.0
    %2976 = vmatprep.subr.mxu0 0.0
    %2977 = vmatpush1.msra.mxu0 0.0
    %2978 = vmatprep.subr.mxu0 0.0
    %2979 = vmatpush1.msra.mxu0 0.0
    %2980 = vmatprep.subr.mxu0 0.0
    %2981 = vmatpush1.msra.mxu0 0.0
    %2982 = vmatprep.subr.mxu0 0.0
    %2983 = vmatpush1.msra.mxu0 0.0
    %2984 = vmatprep.subr.mxu0 0.0
    %2985 = vmatpush1.msra.mxu0 0.0
    %2986 = vmatprep.subr.mxu0 0.0
    %2987 = vmatpush1.msra.mxu0 0.0
    %2988 = vmatprep.subr.mxu0 0.0
    %2989 = vmatpush1.msra.mxu0 0.0
    %2990 = vmatprep.subr.mxu0 0.0
    %2991 = vmatpush1.msra.mxu0 0.0
    %2992 = vmatprep.subr.mxu0 0.0
    %2993 = vmatpush1.msra.mxu0 0.0
    %2994 = vmatprep.subr.mxu0 0.0
    %2995 = vmatpush1.msra.mxu0 0.0
    %2996 = vmatprep.subr.mxu0 0.0
    %2997 = vmatpush1.msra.mxu0 0.0
    %2998 = vmatprep.subr.mxu0 0.0
    %2999 = vmatpush1.msra.mxu0 0.0
    %3000 = vmatprep.subr.mxu0 0.0
    %3001 = vmatpush1.msra.mxu0 0.0
    %3002 = vmatprep.subr.mxu0 0.0
    %3003 = vmatpush1.msra.mxu0 0.0
    %3004 = vmatprep.subr.mxu0 0.0
    %3005 = vmatpush1.msra.mxu0 0.0
    %3006 = vmatprep.subr.mxu0 0.0
    %3007 = vmatpush1.msra.mxu0 0.0
    %3008 = vmatprep.subr.mxu0 0.0
    %3009 = vmatpush1.msra.mxu0 0.0
    %3010 = vmatprep.subr.mxu0 0.0
    %3011 = vmatpush1.msra.mxu0 0.0
    %3012 = vmatprep.subr.mxu0 0.0
    %3013 = vmatpush1.msra.mxu0 0.0
    %3014 = vmatprep.mubr.f32.mxu0 0.0
    %3015 = vmatmul.mubr.f32.gmra.mrb[0].mxu0 %v2948
    %v3016 = vpop.f32.mrb[0].mxu0
    %v3017 = vadd.f32 0.0, %v3016
    %v3018 = vpop.f32.mrb[0].mxu0
    %3019 = vdwg.mxu0
    %v3020 = vadd.f32 %v2930, %v3017
    %v3021 = vld [vmem:[%s1154] sm:$0xff]
    %v3022 = vld [vmem:[%s1154 + $0x8] sm:$0xff]
    %v3023 = vld [vmem:[%s1154 + $0x10] sm:$0xff]
    %v3024 = vld [vmem:[%s1154 + $0x18] sm:$0xff]
    %v3025 = vld [vmem:[%s1154 + $0x20] sm:$0xff]
    %v3026 = vld [vmem:[%s1154 + $0x28] sm:$0xff]
    %v3027 = vld [vmem:[%s1154 + $0x30] sm:$0xff]
    %v3028 = vld [vmem:[%s1154 + $0x38] sm:$0xff]
    %v3029 = vld [vmem:[%s1154 + $0x40] sm:$0xff]
    %v3030 = vld [vmem:[%s1154 + $0x48] sm:$0xff]
    %v3031 = vld [vmem:[%s1154 + $0x50] sm:$0xff]
    %v3032 = vld [vmem:[%s1154 + $0x58] sm:$0xff]
    %v3033 = vrot.slane %v2758, 3
    %v3034 = vrot.slane %v2759, 3
    %v3035 = vsel %vm411, %v3033, %v3034
    %v3036 = vsel %vm876, %v3035, 0
    %3038 = vmatprep.subr.mxu0 0.0
    %3039 = vmatpush1.msra.mxu0 %v3021
    %3040 = vmatprep.subr.mxu0 0.0
    %3041 = vmatpush1.msra.mxu0 %v3022
    %3042 = vmatprep.subr.mxu0 0.0
    %3043 = vmatpush1.msra.mxu0 %v3023
    %3044 = vmatprep.subr.mxu0 0.0
    %3045 = vmatpush1.msra.mxu0 %v3024
    %3046 = vmatprep.subr.mxu0 0.0
    %3047 = vmatpush1.msra.mxu0 %v3025
    %3048 = vmatprep.subr.mxu0 0.0
    %3049 = vmatpush1.msra.mxu0 %v3026
    %3050 = vmatprep.subr.mxu0 0.0
    %3051 = vmatpush1.msra.mxu0 %v3027
    %3052 = vmatprep.subr.mxu0 0.0
    %3053 = vmatpush1.msra.mxu0 %v3028
    %3054 = vmatprep.subr.mxu0 0.0
    %3055 = vmatpush1.msra.mxu0 %v3029
    %3056 = vmatprep.subr.mxu0 0.0
    %3057 = vmatpush1.msra.mxu0 %v3030
    %3058 = vmatprep.subr.mxu0 0.0
    %3059 = vmatpush1.msra.mxu0 %v3031
    %3060 = vmatprep.subr.mxu0 0.0
    %3061 = vmatpush1.msra.mxu0 %v3032
    %3062 = vmatprep.subr.mxu0 0.0
    %3063 = vmatpush1.msra.mxu0 0.0
    %3064 = vmatprep.subr.mxu0 0.0
    %3065 = vmatpush1.msra.mxu0 0.0
    %3066 = vmatprep.subr.mxu0 0.0
    %3067 = vmatpush1.msra.mxu0 0.0
    %3068 = vmatprep.subr.mxu0 0.0
    %3069 = vmatpush1.msra.mxu0 0.0
    %3070 = vmatprep.subr.mxu0 0.0
    %3071 = vmatpush1.msra.mxu0 0.0
    %3072 = vmatprep.subr.mxu0 0.0
    %3073 = vmatpush1.msra.mxu0 0.0
    %3074 = vmatprep.subr.mxu0 0.0
    %3075 = vmatpush1.msra.mxu0 0.0
    %3076 = vmatprep.subr.mxu0 0.0
    %3077 = vmatpush1.msra.mxu0 0.0
    %3078 = vmatprep.subr.mxu0 0.0
    %3079 = vmatpush1.msra.mxu0 0.0
    %3080 = vmatprep.subr.mxu0 0.0
    %3081 = vmatpush1.msra.mxu0 0.0
    %3082 = vmatprep.subr.mxu0 0.0
    %3083 = vmatpush1.msra.mxu0 0.0
    %3084 = vmatprep.subr.mxu0 0.0
    %3085 = vmatpush1.msra.mxu0 0.0
    %3086 = vmatprep.subr.mxu0 0.0
    %3087 = vmatpush1.msra.mxu0 0.0
    %3088 = vmatprep.subr.mxu0 0.0
    %3089 = vmatpush1.msra.mxu0 0.0
    %3090 = vmatprep.subr.mxu0 0.0
    %3091 = vmatpush1.msra.mxu0 0.0
    %3092 = vmatprep.subr.mxu0 0.0
    %3093 = vmatpush1.msra.mxu0 0.0
    %3094 = vmatprep.subr.mxu0 0.0
    %3095 = vmatpush1.msra.mxu0 0.0
    %3096 = vmatprep.subr.mxu0 0.0
    %3097 = vmatpush1.msra.mxu0 0.0
    %3098 = vmatprep.subr.mxu0 0.0
    %3099 = vmatpush1.msra.mxu0 0.0
    %3100 = vmatprep.subr.mxu0 0.0
    %3101 = vmatpush1.msra.mxu0 0.0
    %3102 = vmatprep.mubr.f32.mxu0 0.0
    %3103 = vmatmul.mubr.f32.gmra.mrb[0].mxu0 %v3036
    %v3104 = vpop.f32.mrb[0].mxu0
    %v3105 = vadd.f32 0.0, %v3104
    %v3106 = vpop.f32.mrb[0].mxu0
    %3107 = vdwg.mxu0
    %v3108 = vadd.f32 %v3020, %v3105
    %v3109 = vld [vmem:[%s1243] sm:$0xff]
    %v3110 = vld [vmem:[%s1243 + $0x8] sm:$0xff]
    %v3111 = vld [vmem:[%s1243 + $0x10] sm:$0xff]
    %v3112 = vld [vmem:[%s1243 + $0x18] sm:$0xff]
    %v3113 = vld [vmem:[%s1243 + $0x20] sm:$0xff]
    %v3114 = vld [vmem:[%s1243 + $0x28] sm:$0xff]
    %v3115 = vld [vmem:[%s1243 + $0x30] sm:$0xff]
    %v3116 = vld [vmem:[%s1243 + $0x38] sm:$0xff]
    %v3117 = vld [vmem:[%s1243 + $0x40] sm:$0xff]
    %v3118 = vld [vmem:[%s1243 + $0x48] sm:$0xff]
    %v3119 = vld [vmem:[%s1243 + $0x50] sm:$0xff]
    %v3120 = vld [vmem:[%s1243 + $0x58] sm:$0xff]
    %v3121 = vrot.slane %v2758, 4
    %v3122 = vrot.slane %v2759, 4
    %v3123 = vsel %vm99, %v3121, %v3122
    %v3124 = vsel %vm876, %v3123, 0
    %3126 = vmatprep.subr.mxu0 0.0
    %3127 = vmatpush1.msra.mxu0 %v3109
    %3128 = vmatprep.subr.mxu0 0.0
    %3129 = vmatpush1.msra.mxu0 %v3110
    %3130 = vmatprep.subr.mxu0 0.0
    %3131 = vmatpush1.msra.mxu0 %v3111
    %3132 = vmatprep.subr.mxu0 0.0
    %3133 = vmatpush1.msra.mxu0 %v3112
    %3134 = vmatprep.subr.mxu0 0.0
    %3135 = vmatpush1.msra.mxu0 %v3113
    %3136 = vmatprep.subr.mxu0 0.0
    %3137 = vmatpush1.msra.mxu0 %v3114
    %3138 = vmatprep.subr.mxu0 0.0
    %3139 = vmatpush1.msra.mxu0 %v3115
    %3140 = vmatprep.subr.mxu0 0.0
    %3141 = vmatpush1.msra.mxu0 %v3116
    %3142 = vmatprep.subr.mxu0 0.0
    %3143 = vmatpush1.msra.mxu0 %v3117
    %3144 = vmatprep.subr.mxu0 0.0
    %3145 = vmatpush1.msra.mxu0 %v3118
    %3146 = vmatprep.subr.mxu0 0.0
    %3147 = vmatpush1.msra.mxu0 %v3119
    %3148 = vmatprep.subr.mxu0 0.0
    %3149 = vmatpush1.msra.mxu0 %v3120
    %3150 = vmatprep.subr.mxu0 0.0
    %3151 = vmatpush1.msra.mxu0 0.0
    %3152 = vmatprep.subr.mxu0 0.0
    %3153 = vmatpush1.msra.mxu0 0.0
    %3154 = vmatprep.subr.mxu0 0.0
    %3155 = vmatpush1.msra.mxu0 0.0
    %3156 = vmatprep.subr.mxu0 0.0
    %3157 = vmatpush1.msra.mxu0 0.0
    %3158 = vmatprep.subr.mxu0 0.0
    %3159 = vmatpush1.msra.mxu0 0.0
    %3160 = vmatprep.subr.mxu0 0.0
    %3161 = vmatpush1.msra.mxu0 0.0
    %3162 = vmatprep.subr.mxu0 0.0
    %3163 = vmatpush1.msra.mxu0 0.0
    %3164 = vmatprep.subr.mxu0 0.0
    %3165 = vmatpush1.msra.mxu0 0.0
    %3166 = vmatprep.subr.mxu0 0.0
    %3167 = vmatpush1.msra.mxu0 0.0
    %3168 = vmatprep.subr.mxu0 0.0
    %3169 = vmatpush1.msra.mxu0 0.0
    %3170 = vmatprep.subr.mxu0 0.0
    %3171 = vmatpush1.msra.mxu0 0.0
    %3172 = vmatprep.subr.mxu0 0.0
    %3173 = vmatpush1.msra.mxu0 0.0
    %3174 = vmatprep.subr.mxu0 0.0
    %3175 = vmatpush1.msra.mxu0 0.0
    %3176 = vmatprep.subr.mxu0 0.0
    %3177 = vmatpush1.msra.mxu0 0.0
    %3178 = vmatprep.subr.mxu0 0.0
    %3179 = vmatpush1.msra.mxu0 0.0
    %3180 = vmatprep.subr.mxu0 0.0
    %3181 = vmatpush1.msra.mxu0 0.0
    %3182 = vmatprep.subr.mxu0 0.0
    %3183 = vmatpush1.msra.mxu0 0.0
    %3184 = vmatprep.subr.mxu0 0.0
    %3185 = vmatpush1.msra.mxu0 0.0
    %3186 = vmatprep.subr.mxu0 0.0
    %3187 = vmatpush1.msra.mxu0 0.0
    %3188 = vmatprep.subr.mxu0 0.0
    %3189 = vmatpush1.msra.mxu0 0.0
    %3190 = vmatprep.mubr.f32.mxu0 0.0
    %3191 = vmatmul.mubr.f32.gmra.mrb[0].mxu0 %v3124
    %v3192 = vpop.f32.mrb[0].mxu0
    %v3193 = vadd.f32 0.0, %v3192
    %v3194 = vpop.f32.mrb[0].mxu0
    %3195 = vdwg.mxu0
    %v3196 = vadd.f32 %v3108, %v3193
    %v3197 = vld [vmem:[%s6] sm:$0x1]
    %v3199 = vlaneseq
    %v3200 = vshrl.u32 %v3199, 7
    %v3201 = vsub.s32 0, %v3200
    %v3202 = vrot.slane %v3197, %v3201
    %v3204 = vadd.f32 %v3196, %v3202
    %v3205 = vld [vmem:[%s7] sm:$0xff]
    %v3206 = vld [vmem:[%s7 + $0x8] sm:$0xff]
    %v3207 = vld [vmem:[%s7 + $0x10] sm:$0xff]
    %v3208 = vld [vmem:[%s7 + $0x18] sm:$0xff]
    %v3209 = vld [vmem:[%s7 + $0x20] sm:$0xff]
    %v3210 = vld [vmem:[%s7 + $0x28] sm:$0xff]
    %v3211 = vld [vmem:[%s7 + $0x30] sm:$0xff]
    %v3212 = vld [vmem:[%s7 + $0x38] sm:$0xff]
    %v3213 = vld [vmem:[%s7 + $0x40] sm:$0xff]
    %v3214 = vld [vmem:[%s7 + $0x48] sm:$0xff]
    %v3215 = vld [vmem:[%s7 + $0x50] sm:$0xff]
    %v3216 = vld [vmem:[%s7 + $0x58] sm:$0xff]
    %v3217 = vld [vmem:[%s7 + $0x60] sm:$0xff]
    %v3218 = vld [vmem:[%s7 + $0x68] sm:$0xff]
    %v3219 = vld [vmem:[%s7 + $0x70] sm:$0xff]
    %v3220 = vld [vmem:[%s7 + $0x78] sm:$0xff]
    %3221 = vmatprep.subr.mxu0 0.0
    %3222 = vmatpush1.msra.mxu0 %v3205
    %3223 = vmatprep.subr.mxu0 0.0
    %3224 = vmatpush1.msra.mxu0 %v3206
    %3225 = vmatprep.subr.mxu0 0.0
    %3226 = vmatpush1.msra.mxu0 %v3207
    %3227 = vmatprep.subr.mxu0 0.0
    %3228 = vmatpush1.msra.mxu0 %v3208
    %3229 = vmatprep.subr.mxu0 0.0
    %3230 = vmatpush1.msra.mxu0 %v3209
    %3231 = vmatprep.subr.mxu0 0.0
    %3232 = vmatpush1.msra.mxu0 %v3210
    %3233 = vmatprep.subr.mxu0 0.0
    %3234 = vmatpush1.msra.mxu0 %v3211
    %3235 = vmatprep.subr.mxu0 0.0
    %3236 = vmatpush1.msra.mxu0 %v3212
    %3237 = vmatprep.subr.mxu0 0.0
    %3238 = vmatpush1.msra.mxu0 %v3213
    %3239 = vmatprep.subr.mxu0 0.0
    %3240 = vmatpush1.msra.mxu0 %v3214
    %3241 = vmatprep.subr.mxu0 0.0
    %3242 = vmatpush1.msra.mxu0 %v3215
    %3243 = vmatprep.subr.mxu0 0.0
    %3244 = vmatpush1.msra.mxu0 %v3216
    %3245 = vmatprep.subr.mxu0 0.0
    %3246 = vmatpush1.msra.mxu0 %v3217
    %3247 = vmatprep.subr.mxu0 0.0
    %3248 = vmatpush1.msra.mxu0 %v3218
    %3249 = vmatprep.subr.mxu0 0.0
    %3250 = vmatpush1.msra.mxu0 %v3219
    %3251 = vmatprep.subr.mxu0 0.0
    %3252 = vmatpush1.msra.mxu0 %v3220
    %3253 = vmatprep.subr.mxu0 0.0
    %3254 = vmatpush1.msra.mxu0 0.0
    %3255 = vmatprep.subr.mxu0 0.0
    %3256 = vmatpush1.msra.mxu0 0.0
    %3257 = vmatprep.subr.mxu0 0.0
    %3258 = vmatpush1.msra.mxu0 0.0
    %3259 = vmatprep.subr.mxu0 0.0
    %3260 = vmatpush1.msra.mxu0 0.0
    %3261 = vmatprep.subr.mxu0 0.0
    %3262 = vmatpush1.msra.mxu0 0.0
    %3263 = vmatprep.subr.mxu0 0.0
    %3264 = vmatpush1.msra.mxu0 0.0
    %3265 = vmatprep.subr.mxu0 0.0
    %3266 = vmatpush1.msra.mxu0 0.0
    %3267 = vmatprep.subr.mxu0 0.0
    %3268 = vmatpush1.msra.mxu0 0.0
    %3269 = vmatprep.subr.mxu0 0.0
    %3270 = vmatpush1.msra.mxu0 0.0
    %3271 = vmatprep.subr.mxu0 0.0
    %3272 = vmatpush1.msra.mxu0 0.0
    %3273 = vmatprep.subr.mxu0 0.0
    %3274 = vmatpush1.msra.mxu0 0.0
    %3275 = vmatprep.subr.mxu0 0.0
    %3276 = vmatpush1.msra.mxu0 0.0
    %3277 = vmatprep.subr.mxu0 0.0
    %3278 = vmatpush1.msra.mxu0 0.0
    %3279 = vmatprep.subr.mxu0 0.0
    %3280 = vmatpush1.msra.mxu0 0.0
    %3281 = vmatprep.subr.mxu0 0.0
    %3282 = vmatpush1.msra.mxu0 0.0
    %3283 = vmatprep.subr.mxu0 0.0
    %3284 = vmatpush1.msra.mxu0 0.0
    %3285 = vmatprep.mubr.f32.mxu0 0.0
    %3286 = vmatmul.mubr.f32.gmra.mrb[0].mxu0 %v3204
    %v3287 = vpop.f32.mrb[0].mxu0
    %v3288 = vadd.f32 0.0, %v3287
    %v3289 = vpop.f32.mrb[0].mxu0
    %3290 = vdwg.mxu0
    %v3291 = vld [vmem:[%s8] sm:$0xff]
    %v3292 = vld [vmem:[%s8 + $0x8] sm:$0xff]
    %v3293 = vld [vmem:[%s8 + $0x10] sm:$0xff]
    %v3294 = vld [vmem:[%s8 + $0x18] sm:$0xff]
    %v3295 = vld [vmem:[%s8 + $0x20] sm:$0xff]
    %v3296 = vld [vmem:[%s8 + $0x28] sm:$0xff]
    %v3297 = vld [vmem:[%s8 + $0x30] sm:$0xff]
    %v3298 = vld [vmem:[%s8 + $0x38] sm:$0xff]
    %v3299 = vld [vmem:[%s8 + $0x40] sm:$0xff]
    %v3300 = vld [vmem:[%s8 + $0x48] sm:$0xff]
    %v3301 = vld [vmem:[%s8 + $0x50] sm:$0xff]
    %v3302 = vld [vmem:[%s8 + $0x58] sm:$0xff]
    %v3303 = vld [vmem:[%s8 + $0x60] sm:$0xff]
    %v3304 = vld [vmem:[%s8 + $0x68] sm:$0xff]
    %v3305 = vld [vmem:[%s8 + $0x70] sm:$0xff]
    %v3306 = vld [vmem:[%s8 + $0x78] sm:$0xff]
    %3307 = vmatprep.subr.mxu0 0.0
    %3308 = vmatpush1.msra.mxu0 %v3291
    %3309 = vmatprep.subr.mxu0 0.0
    %3310 = vmatpush1.msra.mxu0 %v3292
    %3311 = vmatprep.subr.mxu0 0.0
    %3312 = vmatpush1.msra.mxu0 %v3293
    %3313 = vmatprep.subr.mxu0 0.0
    %3314 = vmatpush1.msra.mxu0 %v3294
    %3315 = vmatprep.subr.mxu0 0.0
    %3316 = vmatpush1.msra.mxu0 %v3295
    %3317 = vmatprep.subr.mxu0 0.0
    %3318 = vmatpush1.msra.mxu0 %v3296
    %3319 = vmatprep.subr.mxu0 0.0
    %3320 = vmatpush1.msra.mxu0 %v3297
    %3321 = vmatprep.subr.mxu0 0.0
    %3322 = vmatpush1.msra.mxu0 %v3298
    %3323 = vmatprep.subr.mxu0 0.0
    %3324 = vmatpush1.msra.mxu0 %v3299
    %3325 = vmatprep.subr.mxu0 0.0
    %3326 = vmatpush1.msra.mxu0 %v3300
    %3327 = vmatprep.subr.mxu0 0.0
    %3328 = vmatpush1.msra.mxu0 %v3301
    %3329 = vmatprep.subr.mxu0 0.0
    %3330 = vmatpush1.msra.mxu0 %v3302
    %3331 = vmatprep.subr.mxu0 0.0
    %3332 = vmatpush1.msra.mxu0 %v3303
    %3333 = vmatprep.subr.mxu0 0.0
    %3334 = vmatpush1.msra.mxu0 %v3304
    %3335 = vmatprep.subr.mxu0 0.0
    %3336 = vmatpush1.msra.mxu0 %v3305
    %3337 = vmatprep.subr.mxu0 0.0
    %3338 = vmatpush1.msra.mxu0 %v3306
    %3339 = vmatprep.subr.mxu0 0.0
    %3340 = vmatpush1.msra.mxu0 0.0
    %3341 = vmatprep.subr.mxu0 0.0
    %3342 = vmatpush1.msra.mxu0 0.0
    %3343 = vmatprep.subr.mxu0 0.0
    %3344 = vmatpush1.msra.mxu0 0.0
    %3345 = vmatprep.subr.mxu0 0.0
    %3346 = vmatpush1.msra.mxu0 0.0
    %3347 = vmatprep.subr.mxu0 0.0
    %3348 = vmatpush1.msra.mxu0 0.0
    %3349 = vmatprep.subr.mxu0 0.0
    %3350 = vmatpush1.msra.mxu0 0.0
    %3351 = vmatprep.subr.mxu0 0.0
    %3352 = vmatpush1.msra.mxu0 0.0
    %3353 = vmatprep.subr.mxu0 0.0
    %3354 = vmatpush1.msra.mxu0 0.0
    %3355 = vmatprep.subr.mxu0 0.0
    %3356 = vmatpush1.msra.mxu0 0.0
    %3357 = vmatprep.subr.mxu0 0.0
    %3358 = vmatpush1.msra.mxu0 0.0
    %3359 = vmatprep.subr.mxu0 0.0
    %3360 = vmatpush1.msra.mxu0 0.0
    %3361 = vmatprep.subr.mxu0 0.0
    %3362 = vmatpush1.msra.mxu0 0.0
    %3363 = vmatprep.subr.mxu0 0.0
    %3364 = vmatpush1.msra.mxu0 0.0
    %3365 = vmatprep.subr.mxu0 0.0
    %3366 = vmatpush1.msra.mxu0 0.0
    %3367 = vmatprep.subr.mxu0 0.0
    %3368 = vmatpush1.msra.mxu0 0.0
    %3369 = vmatprep.subr.mxu0 0.0
    %3370 = vmatpush1.msra.mxu0 0.0
    %3371 = vmatprep.mubr.f32.mxu0 0.0
    %3372 = vmatmul.mubr.f32.gmra.mrb[0].mxu0 %v3204
    %v3373 = vpop.f32.mrb[0].mxu0
    %v3374 = vadd.f32 0.0, %v3373
    %v3375 = vpop.f32.mrb[0].mxu0
    %3376 = vdwg.mxu0
    %v3377 = vmax.f32 %v3288, %v3374
    %3378 = vst.msk [vmem:[#allocation3] sm:$0xff] %vm679, %v3377
    %v3379 = vld [vmem:[#allocation3] ss:$2 sm:$0xf]
    %v3380 = vld [vmem:[%s1515] ss:$2 sm:$0xf]
    %v3381 = vmax.f32 %v3379, %v3380
    %v3382 = vmax.f32 %v3381, 0.0
    %v3383 = vld [vmem:[%s9] sm:$0xff]
    %v3384 = vld [vmem:[%s9 + $0x8] sm:$0xff]
    %v3385 = vld [vmem:[%s9 + $0x10] sm:$0xff]
    %v3386 = vld [vmem:[%s9 + $0x18] sm:$0xff]
    %v3387 = vld [vmem:[%s9 + $0x20] sm:$0xff]
    %v3388 = vld [vmem:[%s9 + $0x28] sm:$0xff]
    %v3389 = vld [vmem:[%s9 + $0x30] sm:$0xff]
    %v3390 = vld [vmem:[%s9 + $0x38] sm:$0xff]
    %v3391 = vld [vmem:[%s9 + $0x40] sm:$0xff]
    %v3392 = vld [vmem:[%s9 + $0x48] sm:$0xff]
    %v3393 = vld [vmem:[%s9 + $0x50] sm:$0xff]
    %v3394 = vld [vmem:[%s9 + $0x58] sm:$0xff]
    %v3395 = vld [vmem:[%s9 + $0x60] sm:$0xff]
    %v3396 = vld [vmem:[%s9 + $0x68] sm:$0xff]
    %v3397 = vld [vmem:[%s9 + $0x70] sm:$0xff]
    %v3398 = vld [vmem:[%s9 + $0x78] sm:$0xff]
    %v3400 = vrot.slane %v3382, 1
    %v3401 = vsel %vm679, %v3400, 0
    %3403 = vmatprep.subr.mxu0 0.0
    %3404 = vmatpush1.msra.mxu0 %v3391
    %3405 = vmatprep.subr.mxu0 0.0
    %3406 = vmatpush1.msra.mxu0 %v3392
    %3407 = vmatprep.subr.mxu0 0.0
    %3408 = vmatpush1.msra.mxu0 %v3393
    %3409 = vmatprep.subr.mxu0 0.0
    %3410 = vmatpush1.msra.mxu0 %v3394
    %3411 = vmatprep.subr.mxu0 0.0
    %3412 = vmatpush1.msra.mxu0 %v3395
    %3413 = vmatprep.subr.mxu0 0.0
    %3414 = vmatpush1.msra.mxu0 %v3396
    %3415 = vmatprep.subr.mxu0 0.0
    %3416 = vmatpush1.msra.mxu0 %v3397
    %3417 = vmatprep.subr.mxu0 0.0
    %3418 = vmatpush1.msra.mxu0 %v3398
    %3419 = vmatprep.subr.mxu0 0.0
    %3420 = vmatpush1.msra.mxu0 0.0
    %3421 = vmatprep.subr.mxu0 0.0
    %3422 = vmatpush1.msra.mxu0 0.0
    %3423 = vmatprep.subr.mxu0 0.0
    %3424 = vmatpush1.msra.mxu0 0.0
    %3425 = vmatprep.subr.mxu0 0.0
    %3426 = vmatpush1.msra.mxu0 0.0
    %3427 = vmatprep.subr.mxu0 0.0
    %3428 = vmatpush1.msra.mxu0 0.0
    %3429 = vmatprep.subr.mxu0 0.0
    %3430 = vmatpush1.msra.mxu0 0.0
    %3431 = vmatprep.subr.mxu0 0.0
    %3432 = vmatpush1.msra.mxu0 0.0
    %3433 = vmatprep.subr.mxu0 0.0
    %3434 = vmatpush1.msra.mxu0 0.0
    %3435 = vmatprep.subr.mxu0 0.0
    %3436 = vmatpush1.msra.mxu0 0.0
    %3437 = vmatprep.subr.mxu0 0.0
    %3438 = vmatpush1.msra.mxu0 0.0
    %3439 = vmatprep.subr.mxu0 0.0
    %3440 = vmatpush1.msra.mxu0 0.0
    %3441 = vmatprep.subr.mxu0 0.0
    %3442 = vmatpush1.msra.mxu0 0.0
    %3443 = vmatprep.subr.mxu0 0.0
    %3444 = vmatpush1.msra.mxu0 0.0
    %3445 = vmatprep.subr.mxu0 0.0
    %3446 = vmatpush1.msra.mxu0 0.0
    %3447 = vmatprep.subr.mxu0 0.0
    %3448 = vmatpush1.msra.mxu0 0.0
    %3449 = vmatprep.subr.mxu0 0.0
    %3450 = vmatpush1.msra.mxu0 0.0
    %3451 = vmatprep.subr.mxu0 0.0
    %3452 = vmatpush1.msra.mxu0 0.0
    %3453 = vmatprep.subr.mxu0 0.0
    %3454 = vmatpush1.msra.mxu0 0.0
    %3455 = vmatprep.subr.mxu0 0.0
    %3456 = vmatpush1.msra.mxu0 0.0
    %3457 = vmatprep.subr.mxu0 0.0
    %3458 = vmatpush1.msra.mxu0 0.0
    %3459 = vmatprep.subr.mxu0 0.0
    %3460 = vmatpush1.msra.mxu0 0.0
    %3461 = vmatprep.subr.mxu0 0.0
    %3462 = vmatpush1.msra.mxu0 0.0
    %3463 = vmatprep.subr.mxu0 0.0
    %3464 = vmatpush1.msra.mxu0 0.0
    %3465 = vmatprep.subr.mxu0 0.0
    %3466 = vmatpush1.msra.mxu0 0.0
    %3467 = vmatprep.mubr.f32.mxu0 0.0
    %3468 = vmatmul.mubr.f32.gmra.mrb[0].mxu0 %v3401
    %v3469 = vpop.f32.mrb[0].mxu0
    %v3470 = vadd.f32 0.0, %v3469
    %v3471 = vpop.f32.mrb[0].mxu0
    %3472 = vdwg.mxu0
    %v3473 = vsel %vm679, %v3382, 0
    %3475 = vmatprep.subr.mxu0 0.0
    %3476 = vmatpush1.msra.mxu0 %v3383
    %3477 = vmatprep.subr.mxu0 0.0
    %3478 = vmatpush1.msra.mxu0 %v3384
    %3479 = vmatprep.subr.mxu0 0.0
    %3480 = vmatpush1.msra.mxu0 %v3385
    %3481 = vmatprep.subr.mxu0 0.0
    %3482 = vmatpush1.msra.mxu0 %v3386
    %3483 = vmatprep.subr.mxu0 0.0
    %3484 = vmatpush1.msra.mxu0 %v3387
    %3485 = vmatprep.subr.mxu0 0.0
    %3486 = vmatpush1.msra.mxu0 %v3388
    %3487 = vmatprep.subr.mxu0 0.0
    %3488 = vmatpush1.msra.mxu0 %v3389
    %3489 = vmatprep.subr.mxu0 0.0
    %3490 = vmatpush1.msra.mxu0 %v3390
    %3491 = vmatprep.subr.mxu0 0.0
    %3492 = vmatpush1.msra.mxu0 0.0
    %3493 = vmatprep.subr.mxu0 0.0
    %3494 = vmatpush1.msra.mxu0 0.0
    %3495 = vmatprep.subr.mxu0 0.0
    %3496 = vmatpush1.msra.mxu0 0.0
    %3497 = vmatprep.subr.mxu0 0.0
    %3498 = vmatpush1.msra.mxu0 0.0
    %3499 = vmatprep.subr.mxu0 0.0
    %3500 = vmatpush1.msra.mxu0 0.0
    %3501 = vmatprep.subr.mxu0 0.0
    %3502 = vmatpush1.msra.mxu0 0.0
    %3503 = vmatprep.subr.mxu0 0.0
    %3504 = vmatpush1.msra.mxu0 0.0
    %3505 = vmatprep.subr.mxu0 0.0
    %3506 = vmatpush1.msra.mxu0 0.0
    %3507 = vmatprep.subr.mxu0 0.0
    %3508 = vmatpush1.msra.mxu0 0.0
    %3509 = vmatprep.subr.mxu0 0.0
    %3510 = vmatpush1.msra.mxu0 0.0
    %3511 = vmatprep.subr.mxu0 0.0
    %3512 = vmatpush1.msra.mxu0 0.0
    %3513 = vmatprep.subr.mxu0 0.0
    %3514 = vmatpush1.msra.mxu0 0.0
    %3515 = vmatprep.subr.mxu0 0.0
    %3516 = vmatpush1.msra.mxu0 0.0
    %3517 = vmatprep.subr.mxu0 0.0
    %3518 = vmatpush1.msra.mxu0 0.0
    %3519 = vmatprep.subr.mxu0 0.0
    %3520 = vmatpush1.msra.mxu0 0.0
    %3521 = vmatprep.subr.mxu0 0.0
    %3522 = vmatpush1.msra.mxu0 0.0
    %3523 = vmatprep.subr.mxu0 0.0
    %3524 = vmatpush1.msra.mxu0 0.0
    %3525 = vmatprep.subr.mxu0 0.0
    %3526 = vmatpush1.msra.mxu0 0.0
    %3527 = vmatprep.subr.mxu0 0.0
    %3528 = vmatpush1.msra.mxu0 0.0
    %3529 = vmatprep.subr.mxu0 0.0
    %3530 = vmatpush1.msra.mxu0 0.0
    %3531 = vmatprep.subr.mxu0 0.0
    %3532 = vmatpush1.msra.mxu0 0.0
    %3533 = vmatprep.subr.mxu0 0.0
    %3534 = vmatpush1.msra.mxu0 0.0
    %3535 = vmatprep.subr.mxu0 0.0
    %3536 = vmatpush1.msra.mxu0 0.0
    %3537 = vmatprep.subr.mxu0 0.0
    %3538 = vmatpush1.msra.mxu0 0.0
    %3539 = vmatprep.mubr.f32.mxu0 0.0
    %3540 = vmatmul.mubr.f32.gmra.mrb[0].mxu0 %v3473
    %v3541 = vpop.f32.mrb[0].mxu0
    %v3542 = vadd.f32 %v3470, %v3541
    %v3543 = vpop.f32.mrb[0].mxu0
    %3544 = vdwg.mxu0
    %v3545 = vld [vmem:[%s9 + $0x80] sm:$0xff]
    %v3546 = vld [vmem:[%s9 + $0x88] sm:$0xff]
    %v3547 = vld [vmem:[%s9 + $0x90] sm:$0xff]
    %v3548 = vld [vmem:[%s9 + $0x98] sm:$0xff]
    %v3549 = vld [vmem:[%s9 + $0xa0] sm:$0xff]
    %v3550 = vld [vmem:[%s9 + $0xa8] sm:$0xff]
    %v3551 = vld [vmem:[%s9 + $0xb0] sm:$0xff]
    %v3552 = vld [vmem:[%s9 + $0xb8] sm:$0xff]
    %v3553 = vrot.slane %v3382, 2
    %v3554 = vsel %vm679, %v3553, 0
    %3556 = vmatprep.subr.mxu0 0.0
    %3557 = vmatpush1.msra.mxu0 %v3545
    %3558 = vmatprep.subr.mxu0 0.0
    %3559 = vmatpush1.msra.mxu0 %v3546
    %3560 = vmatprep.subr.mxu0 0.0
    %3561 = vmatpush1.msra.mxu0 %v3547
    %3562 = vmatprep.subr.mxu0 0.0
    %3563 = vmatpush1.msra.mxu0 %v3548
    %3564 = vmatprep.subr.mxu0 0.0
    %3565 = vmatpush1.msra.mxu0 %v3549
    %3566 = vmatprep.subr.mxu0 0.0
    %3567 = vmatpush1.msra.mxu0 %v3550
    %3568 = vmatprep.subr.mxu0 0.0
    %3569 = vmatpush1.msra.mxu0 %v3551
    %3570 = vmatprep.subr.mxu0 0.0
    %3571 = vmatpush1.msra.mxu0 %v3552
    %3572 = vmatprep.subr.mxu0 0.0
    %3573 = vmatpush1.msra.mxu0 0.0
    %3574 = vmatprep.subr.mxu0 0.0
    %3575 = vmatpush1.msra.mxu0 0.0
    %3576 = vmatprep.subr.mxu0 0.0
    %3577 = vmatpush1.msra.mxu0 0.0
    %3578 = vmatprep.subr.mxu0 0.0
    %3579 = vmatpush1.msra.mxu0 0.0
    %3580 = vmatprep.subr.mxu0 0.0
    %3581 = vmatpush1.msra.mxu0 0.0
    %3582 = vmatprep.subr.mxu0 0.0
    %3583 = vmatpush1.msra.mxu0 0.0
    %3584 = vmatprep.subr.mxu0 0.0
    %3585 = vmatpush1.msra.mxu0 0.0
    %3586 = vmatprep.subr.mxu0 0.0
    %3587 = vmatpush1.msra.mxu0 0.0
    %3588 = vmatprep.subr.mxu0 0.0
    %3589 = vmatpush1.msra.mxu0 0.0
    %3590 = vmatprep.subr.mxu0 0.0
    %3591 = vmatpush1.msra.mxu0 0.0
    %3592 = vmatprep.subr.mxu0 0.0
    %3593 = vmatpush1.msra.mxu0 0.0
    %3594 = vmatprep.subr.mxu0 0.0
    %3595 = vmatpush1.msra.mxu0 0.0
    %3596 = vmatprep.subr.mxu0 0.0
    %3597 = vmatpush1.msra.mxu0 0.0
    %3598 = vmatprep.subr.mxu0 0.0
    %3599 = vmatpush1.msra.mxu0 0.0
    %3600 = vmatprep.subr.mxu0 0.0
    %3601 = vmatpush1.msra.mxu0 0.0
    %3602 = vmatprep.subr.mxu0 0.0
    %3603 = vmatpush1.msra.mxu0 0.0
    %3604 = vmatprep.subr.mxu0 0.0
    %3605 = vmatpush1.msra.mxu0 0.0
    %3606 = vmatprep.subr.mxu0 0.0
    %3607 = vmatpush1.msra.mxu0 0.0
    %3608 = vmatprep.subr.mxu0 0.0
    %3609 = vmatpush1.msra.mxu0 0.0
    %3610 = vmatprep.subr.mxu0 0.0
    %3611 = vmatpush1.msra.mxu0 0.0
    %3612 = vmatprep.subr.mxu0 0.0
    %3613 = vmatpush1.msra.mxu0 0.0
    %3614 = vmatprep.subr.mxu0 0.0
    %3615 = vmatpush1.msra.mxu0 0.0
    %3616 = vmatprep.subr.mxu0 0.0
    %3617 = vmatpush1.msra.mxu0 0.0
    %3618 = vmatprep.subr.mxu0 0.0
    %3619 = vmatpush1.msra.mxu0 0.0
    %3620 = vmatprep.mubr.f32.mxu0 0.0
    %3621 = vmatmul.mubr.f32.gmra.mrb[0].mxu0 %v3554
    %v3622 = vpop.f32.mrb[0].mxu0
    %v3623 = vadd.f32 0.0, %v3622
    %v3624 = vpop.f32.mrb[0].mxu0
    %3625 = vdwg.mxu0
    %v3626 = vadd.f32 %v3542, %v3623
    %v3627 = vld [vmem:[%s9 + $0xc0] sm:$0xff]
    %v3628 = vld [vmem:[%s9 + $0xc8] sm:$0xff]
    %v3629 = vld [vmem:[%s9 + $0xd0] sm:$0xff]
    %v3630 = vld [vmem:[%s9 + $0xd8] sm:$0xff]
    %v3631 = vld [vmem:[%s9 + $0xe0] sm:$0xff]
    %v3632 = vld [vmem:[%s9 + $0xe8] sm:$0xff]
    %v3633 = vld [vmem:[%s9 + $0xf0] sm:$0xff]
    %v3634 = vld [vmem:[%s9 + $0xf8] sm:$0xff]
    %v3635 = vrot.slane %v3382, 3
    %v3636 = vsel %vm679, %v3635, 0
    %3638 = vmatprep.subr.mxu0 0.0
    %3639 = vmatpush1.msra.mxu0 %v3627
    %3640 = vmatprep.subr.mxu0 0.0
    %3641 = vmatpush1.msra.mxu0 %v3628
    %3642 = vmatprep.subr.mxu0 0.0
    %3643 = vmatpush1.msra.mxu0 %v3629
    %3644 = vmatprep.subr.mxu0 0.0
    %3645 = vmatpush1.msra.mxu0 %v3630
    %3646 = vmatprep.subr.mxu0 0.0
    %3647 = vmatpush1.msra.mxu0 %v3631
    %3648 = vmatprep.subr.mxu0 0.0
    %3649 = vmatpush1.msra.mxu0 %v3632
    %3650 = vmatprep.subr.mxu0 0.0
    %3651 = vmatpush1.msra.mxu0 %v3633
    %3652 = vmatprep.subr.mxu0 0.0
    %3653 = vmatpush1.msra.mxu0 %v3634
    %3654 = vmatprep.subr.mxu0 0.0
    %3655 = vmatpush1.msra.mxu0 0.0
    %3656 = vmatprep.subr.mxu0 0.0
    %3657 = vmatpush1.msra.mxu0 0.0
    %3658 = vmatprep.subr.mxu0 0.0
    %3659 = vmatpush1.msra.mxu0 0.0
    %3660 = vmatprep.subr.mxu0 0.0
    %3661 = vmatpush1.msra.mxu0 0.0
    %3662 = vmatprep.subr.mxu0 0.0
    %3663 = vmatpush1.msra.mxu0 0.0
    %3664 = vmatprep.subr.mxu0 0.0
    %3665 = vmatpush1.msra.mxu0 0.0
    %3666 = vmatprep.subr.mxu0 0.0
    %3667 = vmatpush1.msra.mxu0 0.0
    %3668 = vmatprep.subr.mxu0 0.0
    %3669 = vmatpush1.msra.mxu0 0.0
    %3670 = vmatprep.subr.mxu0 0.0
    %3671 = vmatpush1.msra.mxu0 0.0
    %3672 = vmatprep.subr.mxu0 0.0
    %3673 = vmatpush1.msra.mxu0 0.0
    %3674 = vmatprep.subr.mxu0 0.0
    %3675 = vmatpush1.msra.mxu0 0.0
    %3676 = vmatprep.subr.mxu0 0.0
    %3677 = vmatpush1.msra.mxu0 0.0
    %3678 = vmatprep.subr.mxu0 0.0
    %3679 = vmatpush1.msra.mxu0 0.0
    %3680 = vmatprep.subr.mxu0 0.0
    %3681 = vmatpush1.msra.mxu0 0.0
    %3682 = vmatprep.subr.mxu0 0.0
    %3683 = vmatpush1.msra.mxu0 0.0
    %3684 = vmatprep.subr.mxu0 0.0
    %3685 = vmatpush1.msra.mxu0 0.0
    %3686 = vmatprep.subr.mxu0 0.0
    %3687 = vmatpush1.msra.mxu0 0.0
    %3688 = vmatprep.subr.mxu0 0.0
    %3689 = vmatpush1.msra.mxu0 0.0
    %3690 = vmatprep.subr.mxu0 0.0
    %3691 = vmatpush1.msra.mxu0 0.0
    %3692 = vmatprep.subr.mxu0 0.0
    %3693 = vmatpush1.msra.mxu0 0.0
    %3694 = vmatprep.subr.mxu0 0.0
    %3695 = vmatpush1.msra.mxu0 0.0
    %3696 = vmatprep.subr.mxu0 0.0
    %3697 = vmatpush1.msra.mxu0 0.0
    %3698 = vmatprep.subr.mxu0 0.0
    %3699 = vmatpush1.msra.mxu0 0.0
    %3700 = vmatprep.subr.mxu0 0.0
    %3701 = vmatpush1.msra.mxu0 0.0
    %3702 = vmatprep.mubr.f32.mxu0 0.0
    %3703 = vmatmul.mubr.f32.gmra.mrb[0].mxu0 %v3636
    %v3704 = vpop.f32.mrb[0].mxu0
    %v3705 = vadd.f32 0.0, %v3704
    %v3706 = vpop.f32.mrb[0].mxu0
    %3707 = vdwg.mxu0
    %v3708 = vadd.f32 %v3626, %v3705
    %v3709 = vld [vmem:[%s10] sm:$0x1]
    %v3710 = vadd.f32 %v3708, %v3709
    %v3711 = vmax.f32 %v3710, 0.0
    %v3712 = vld [vmem:[%s11] sm:$0xff]
    %v3713 = vld [vmem:[%s11 + $0x8] sm:$0xff]
    %v3714 = vld [vmem:[%s11 + $0x10] sm:$0xff]
    %v3715 = vld [vmem:[%s11 + $0x18] sm:$0xff]
    %v3716 = vld [vmem:[%s12] sm:$0x1]
    %v3718 = vsel %vm1853, %v3711, 0
    %3720 = vmatprep.subr.mxu0 0.0
    %3721 = vmatpush1.msra.mxu0 %v3712
    %3722 = vmatprep.subr.mxu0 0.0
    %3723 = vmatpush1.msra.mxu0 %v3713
    %3724 = vmatprep.subr.mxu0 0.0
    %3725 = vmatpush1.msra.mxu0 %v3714
    %3726 = vmatprep.subr.mxu0 0.0
    %3727 = vmatpush1.msra.mxu0 %v3715
    %3728 = vmatprep.subr.mxu0 0.0
    %3729 = vmatpush1.msra.mxu0 0.0
    %3730 = vmatprep.subr.mxu0 0.0
    %3731 = vmatpush1.msra.mxu0 0.0
    %3732 = vmatprep.subr.mxu0 0.0
    %3733 = vmatpush1.msra.mxu0 0.0
    %3734 = vmatprep.subr.mxu0 0.0
    %3735 = vmatpush1.msra.mxu0 0.0
    %3736 = vmatprep.subr.mxu0 0.0
    %3737 = vmatpush1.msra.mxu0 0.0
    %3738 = vmatprep.subr.mxu0 0.0
    %3739 = vmatpush1.msra.mxu0 0.0
    %3740 = vmatprep.subr.mxu0 0.0
    %3741 = vmatpush1.msra.mxu0 0.0
    %3742 = vmatprep.subr.mxu0 0.0
    %3743 = vmatpush1.msra.mxu0 0.0
    %3744 = vmatprep.subr.mxu0 0.0
    %3745 = vmatpush1.msra.mxu0 0.0
    %3746 = vmatprep.subr.mxu0 0.0
    %3747 = vmatpush1.msra.mxu0 0.0
    %3748 = vmatprep.subr.mxu0 0.0
    %3749 = vmatpush1.msra.mxu0 0.0
    %3750 = vmatprep.subr.mxu0 0.0
    %3751 = vmatpush1.msra.mxu0 0.0
    %3752 = vmatprep.subr.mxu0 0.0
    %3753 = vmatpush1.msra.mxu0 0.0
    %3754 = vmatprep.subr.mxu0 0.0
    %3755 = vmatpush1.msra.mxu0 0.0
    %3756 = vmatprep.subr.mxu0 0.0
    %3757 = vmatpush1.msra.mxu0 0.0
    %3758 = vmatprep.subr.mxu0 0.0
    %3759 = vmatpush1.msra.mxu0 0.0
    %3760 = vmatprep.subr.mxu0 0.0
    %3761 = vmatpush1.msra.mxu0 0.0
    %3762 = vmatprep.subr.mxu0 0.0
    %3763 = vmatpush1.msra.mxu0 0.0
    %3764 = vmatprep.subr.mxu0 0.0
    %3765 = vmatpush1.msra.mxu0 0.0
    %3766 = vmatprep.subr.mxu0 0.0
    %3767 = vmatpush1.msra.mxu0 0.0
    %3768 = vmatprep.subr.mxu0 0.0
    %3769 = vmatpush1.msra.mxu0 0.0
    %3770 = vmatprep.subr.mxu0 0.0
    %3771 = vmatpush1.msra.mxu0 0.0
    %3772 = vmatprep.subr.mxu0 0.0
    %3773 = vmatpush1.msra.mxu0 0.0
    %3774 = vmatprep.subr.mxu0 0.0
    %3775 = vmatpush1.msra.mxu0 0.0
    %3776 = vmatprep.subr.mxu0 0.0
    %3777 = vmatpush1.msra.mxu0 0.0
    %3778 = vmatprep.subr.mxu0 0.0
    %3779 = vmatpush1.msra.mxu0 0.0
    %3780 = vmatprep.subr.mxu0 0.0
    %3781 = vmatpush1.msra.mxu0 0.0
    %3782 = vmatprep.subr.mxu0 0.0
    %3783 = vmatpush1.msra.mxu0 0.0
    %3784 = vmatprep.mubr.f32.mxu0 0.0
    %3785 = vmatmul.mubr.f32.gmra.mrb[0].mxu0 %v3718
    %v3786 = vpop.f32.mrb[0].mxu0
    %v3787 = vadd.f32 %v3716, %v3786
    %v3788 = vpop.f32.mrb[0].mxu0
    %3789 = vdwg.mxu0
    %v3790 = vsel %vm1927, %v3787, -inf
    %3791 = vmax.xlane.f32.xlu0 %v3790
    %v3792 = vpop.xlane.xlu0 %3791
    %v3793 = vsub.f32 %v3787, %v3792
    %v3794 = vmul.f32 %v3793, 1.442695
    %v3795 = vpow.pop %v3794
    %v3796 = vsel %vm1927, %v3795, 0.0
    %3797 = vadd.xlane.f32.xlu0 %v3796
    %v3798 = vpop.xlane.xlu0 %3797
    %v3799 = vlog2.pop %v3798
    %v3800 = vmul.f32 %v3799, 0.6931472
    %v3801 = vsub.f32 %v3793, %v3800
    %3802 = vst.msk [vmem:[#allocation7 + $0x1] sm:$0x1] %vm1927, %v3801
    // Predicated region
    $region58: #{experiment_network_forward.1} parent=1 // pred_check
      _
    $region59: #{experiment_network_forward.1} parent=1 // pred_check_branch
      %3804 = sbr.rel (0) target = $region61
    $region60: #{experiment_network_forward.1} parent=1 // pred_region
      %s3806 = ssub.s32 32, 32
      %3807 = vsyncadd [#allocation6], %s3806
      %s3809 = sshll.u32 [#allocation7], 4
      %s3810 = int_to_ptr.vmem [resolvable:$true] %s3809
      %3812 = dma.vmem_to_hbm [thread:$0]  %s3810, 32, %s13, [#allocation6]
    $region61: #{experiment_network_forward.1} parent=1 // pred_fallthru
      _
    // Predicated region
    $region62: #{experiment_network_forward.1} parent=1 // pred_check
      _
    $region63: #{experiment_network_forward.1} parent=1 // pred_check_branch
      %3814 = sbr.rel (0) target = $region65
    $region64: #{experiment_network_forward.1} parent=1 // pred_region
      %3815 = dma.done [#allocation6], 32
    $region65: #{experiment_network_forward.1} parent=1 // pred_fallthru
      _
    %3816 = vsyncpa [#allocation5], 1
    %3817 = vsyncpa [#allocation6], 1

</llo_original>
